<compile_context>
chip_gen: v7x
topology: tpu7x:2x2x1
jax: 0.10.0
libtpu: 0.0.40
codegen_flags: <defaults>
</compile_context>

<pallas_src>
import jax
import jax.numpy as jnp
from jax import lax
from jax.experimental import pallas as pl
from jax.experimental.pallas import tpu as pltpu


# ---------------------------------------------------------------------------
# helpers
# ---------------------------------------------------------------------------
def _round_up(x, m):
    return ((x + m - 1) // m) * m


def _largest_divisor_leq(n, cap):
    for d in range(min(n, cap), 0, -1):
        if n % d == 0:
            return d
    return 1


def _vmem_capacity_bytes():
    try:
        info = pltpu.get_tpu_info()
        cap = getattr(info, "vmem_capacity_bytes", None)
        if cap:
            return int(cap)
    except Exception:
        pass
    return 64 * 1024 * 1024          # conservative default (v7x per-TC)


def _vmem_budget_bytes():
    # Leave Mosaic ~25% headroom: 48 MiB on 64 MiB parts, 96 MiB on 128 MiB parts.
    return int(0.75 * _vmem_capacity_bytes())


def _tensorcores_per_chip():
    # v7x (and megacore v4/v5p) expose 2 TensorCores worth of "parallel" grid
    # sharding; v5e/v6e have a single TC, where a parallel axis is just a loop.
    try:
        kind = jax.devices()[0].device_kind.lower()
    except Exception:
        return 1
    return 2 if any(t in kind for t in ("v7", "v4", "v5p")) else 1


def _pack_gate_cols(w, H, H_pad):
    """w: (R, 4H) with PyTorch gate order [i,f,g,o] -> (R, 4*H_pad), each gate
    placed at a lane-aligned offset k*H_pad (zeros elsewhere)."""
    R = w.shape[0]
    out = jnp.zeros((R, 4 * H_pad), w.dtype)
    for k in range(4):
        out = out.at[:, k * H_pad:k * H_pad + H].set(w[:, k * H:(k + 1) * H])
    return out


def _pick_row_tile(N, cap=512):
    assert N % 8 == 0, N
    if N % 16 == 0:                  # bf16-friendly sublane multiple when possible
        return 16 * _largest_divisor_leq(N // 16, max(cap // 16, 1))
    return 8 * _largest_divisor_leq(N // 8, max(cap // 8, 1))


def _pick_col_tile(C, cap=1024):
    assert C % 128 == 0, C
    return 128 * _largest_divisor_leq(C // 128, max(cap // 128, 1))


# ---------------------------------------------------------------------------
# Tiled matmul + bias kernel (bf16 inputs, f32 accumulation).
# Used for the hoisted input projection (x @ W_ih^T + b) and the tied decoder.
# Grid = (column tiles [outer], row tiles [inner]) so each weight column tile
# is loaded from HBM exactly once; only the smaller activation tiles re-stream.
# Callers guarantee N % 8 == 0 and C % 128 == 0 (weights pre-padded), so there
# is no pad / slice HBM round trip here.
# ---------------------------------------------------------------------------
def _matmul_bias_kernel(x_ref, w_ref, b_ref, o_ref):
    acc = jnp.dot(x_ref[...], w_ref[...], preferred_element_type=jnp.float32)
    o_ref[...] = (acc + b_ref[...]).astype(o_ref.dtype)


def matmul_bias(x, w, b, out_dtype=jnp.float32, tm_cap=512, tn_cap=1024):
    """x: (N, K), w: (K, C), b: (1, C) -> (N, C). bf16 MXU, f32 accumulate."""
    N, K = x.shape
    Kw, C = w.shape
    assert K == Kw
    assert N % 8 == 0 and C % 128 == 0, (N, C)
    tm = _pick_row_tile(N, tm_cap)
    tn = _pick_col_tile(C, tn_cap)
    xb = x.astype(jnp.bfloat16)
    wb = w.astype(jnp.bfloat16)
    bf = b.astype(jnp.float32)
    return pl.pallas_call(
        _matmul_bias_kernel,
        out_shape=jax.ShapeDtypeStruct((N, C), out_dtype),
        grid_spec=pltpu.PrefetchScalarGridSpec(
            num_scalar_prefetch=0,
            grid=(C // tn, N // tm),            # cols outer -> weight tile loads once
            in_specs=[
                pl.BlockSpec((tm, K), lambda j, i: (i, 0)),   # activations (re-streamed)
                pl.BlockSpec((K, tn), lambda j, i: (0, j)),   # weights (resident per j)
                pl.BlockSpec((1, tn), lambda j, i: (0, j)),   # bias
            ],
            out_specs=pl.BlockSpec((tm, tn), lambda j, i: (i, j)),
        ),
        compiler_params=pltpu.CompilerParams(
            dimension_semantics=("parallel", "parallel"),
            vmem_limit_bytes=_vmem_budget_bytes()),
    )(xb, wb, bf)


# ---------------------------------------------------------------------------
# Recurrent LSTM kernel: only the serial part (h @ W_hh^T + precomputed gates).
# Grid = (batch_chunks [parallel], time_chunks [arbitrary]).
# h/c carried in f32 VMEM scratch (+ bf16 shadow of h feeding the MXU);
# hT/cT written only on the last time chunk.
# Gate order follows PyTorch nn.LSTM: [i, f, g, o]; each gate is lane-aligned
# (offset k*H_pad, H_pad a multiple of 128).
# ---------------------------------------------------------------------------
def _lstm_recurrent_kernel(gx_ref, whh_ref, h0_ref, c0_ref,
                           out_ref, hT_ref, cT_ref, h_sc, c_sc, hb_sc):
    t_chunk = pl.program_id(1)
    nt = pl.num_programs(1)

    @pl.when(t_chunk == 0)
    def _():
        h_sc[...] = h0_ref[...]
        c_sc[...] = c0_ref[...]
        hb_sc[...] = h0_ref[...].astype(jnp.bfloat16)

    Hp = h_sc.shape[-1]
    TC = gx_ref.shape[0]

    def step(t, carry):
        # Serial critical path: one small bf16 MXU matmul + elementwise gates.
        gates = (jnp.dot(hb_sc[...], whh_ref[...],
                         preferred_element_type=jnp.float32)
                 + gx_ref[t].astype(jnp.float32))           # (B_CHUNK, 4*Hp) f32
        i = jax.nn.sigmoid(gates[:, 0 * Hp:1 * Hp])
        f = jax.nn.sigmoid(gates[:, 1 * Hp:2 * Hp])
        g = jnp.tanh(gates[:, 2 * Hp:3 * Hp])
        o = jax.nn.sigmoid(gates[:, 3 * Hp:4 * Hp])
        c = f * c_sc[...] + i * g
        h = o * jnp.tanh(c)
        c_sc[...] = c
        h_sc[...] = h
        hb = h.astype(jnp.bfloat16)                         # off the matmul crit-path
        hb_sc[...] = hb
        out_ref[t] = hb
        return carry

    # Always unrolled (fully for short chunks, by 4 otherwise) so the LLO
    # scheduler can overlap across timesteps.
    lax.fori_loop(0, TC, step, 0, unroll=(TC if TC <= 16 else 4))

    # Final state: written only on the last time chunk (the output block index
    # is constant in t, so it is only DMA'd back once per batch chunk anyway).
    @pl.when(t_chunk == nt - 1)
    def _():
        hT_ref[...] = h_sc[...]
        cT_ref[...] = c_sc[...]


def _pick_t_chunk(T, B_chunk, H_pad, vmem_budget):
    """Largest divisor-of-T time chunk whose double-buffered gates_x/out blocks
    (bf16) + resident W_hh / state fit the VMEM budget."""
    bf16, f32 = 2, 4
    per_t = 2 * B_chunk * (4 * H_pad + H_pad) * bf16          # gates_x + out (dbl buf)
    fixed = (2 * H_pad * 4 * H_pad * bf16                     # W_hh (dbl buf)
             + 2 * 4 * B_chunk * H_pad * f32                  # h0,c0,hT,cT (dbl buf)
             + 2 * B_chunk * H_pad * f32                      # h/c scratch
             + B_chunk * H_pad * bf16)                        # bf16 h shadow
    cap = max((vmem_budget - fixed) // per_t, 1)
    cap = int(min(cap, 64, T))
    # TODO(synk): prime T degenerates to T_CHUNK == 1 (one tiny grid step per
    # timestep); pad T to a chunk multiple + mask if that matters in production.
    return _largest_divisor_leq(T, cap)


def lstm_recurrent(gates_x, whh_t, h0, c0):
    """gates_x: (T, B_pad, 4*H_pad) bf16 (already includes x@W_ih^T + bias).
    whh_t: (H_pad, 4*H_pad) bf16.  Returns (out bf16 (T,B_pad,H_pad), hT f32, cT f32)."""
    T, B_pad, G = gates_x.shape
    H_pad = whh_t.shape[0]
    assert G == 4 * H_pad

    # Batch split only pays off when there are 2 TensorCores to shard onto.
    n_tc = _tensorcores_per_chip()
    nb = 2 if (n_tc >= 2 and B_pad % 16 == 0) else 1
    B_CHUNK = B_pad // nb

    vmem_budget = _vmem_budget_bytes()
    T_CHUNK = _pick_t_chunk(T, B_CHUNK, H_pad, vmem_budget)
    nt = T // T_CHUNK

    out_shapes = (jax.ShapeDtypeStruct((T, B_pad, H_pad), jnp.bfloat16),
                  jax.ShapeDtypeStruct((B_pad, H_pad), jnp.float32),
                  jax.ShapeDtypeStruct((B_pad, H_pad), jnp.float32))
    return pl.pallas_call(
        _lstm_recurrent_kernel,
        out_shape=out_shapes,
        grid_spec=pltpu.PrefetchScalarGridSpec(
            num_scalar_prefetch=0,
            grid=(nb, nt),
            in_specs=[
                pl.BlockSpec((T_CHUNK, B_CHUNK, G), lambda b, t: (t, b, 0)),  # gates_x
                pl.BlockSpec((H_pad, G), lambda b, t: (0, 0)),                # W_hh^T
                pl.BlockSpec((B_CHUNK, H_pad), lambda b, t: (b, 0)),          # h0
                pl.BlockSpec((B_CHUNK, H_pad), lambda b, t: (b, 0)),          # c0
            ],
            out_specs=[
                pl.BlockSpec((T_CHUNK, B_CHUNK, H_pad), lambda b, t: (t, b, 0)),
                pl.BlockSpec((B_CHUNK, H_pad), lambda b, t: (b, 0)),          # h_T
                pl.BlockSpec((B_CHUNK, H_pad), lambda b, t: (b, 0)),          # c_T
            ],
            scratch_shapes=[pltpu.VMEM((B_CHUNK, H_pad), jnp.float32),
                            pltpu.VMEM((B_CHUNK, H_pad), jnp.float32),
                            pltpu.VMEM((B_CHUNK, H_pad), jnp.bfloat16)]),
        compiler_params=pltpu.CompilerParams(
            dimension_semantics=("parallel", "arbitrary"),
            vmem_limit_bytes=vmem_budget),
    )(gates_x, whh_t, h0, c0)


# ---------------------------------------------------------------------------
# Full model forward (glue in plain JAX, hot paths in Pallas).
# ---------------------------------------------------------------------------
def awd_lstm_forward(tokens, dev, logits_dtype=jnp.float32):
    """tokens: (T, B) int32 -> (logits (B, T, V), hidden list of ((1,B,H),(1,B,H)))."""
    T, B = tokens.shape
    B_pad = dev["B_pad"]

    # Embedding gather directly in (T, B) token order (no transpose round trip).
    x = jnp.take(dev["embed"], tokens, axis=0)                 # (T, B, E_pad) bf16
    x = jnp.pad(x, ((0, 0), (0, B_pad - B), (0, 0)))           # (T, B_pad, E_pad)

    new_hidden = []
    for layer in dev["lstm"]:
        H, H_pad = layer["H"], layer["H_pad"]
        Tn, Bp, Ip = x.shape
        # Hoisted time-parallel input projection (one big MXU matmul, bias folded
        # in, bf16 output halves the biggest HBM stream).
        gates_x = matmul_bias(x.reshape(Tn * Bp, Ip), layer["wih_t"], layer["bias"],
                              out_dtype=jnp.bfloat16)
        gates_x = gates_x.reshape(Tn, Bp, 4 * H_pad)
        out, hT, cT = lstm_recurrent(gates_x, layer["whh_t"], layer["h0"], layer["c0"])
        new_hidden.append((hT[:B, :H][None], cT[:B, :H][None]))
        x = out                                                # (T, B_pad, H_pad) bf16

    # Tied decoder: logits = h @ W_embed^T + b.  Transpose the small E-dim
    # activations once so logits come out batch-first without transposing the
    # (much larger) logits tensor.  Only the final logits are sliced.
    V = dev["V"]
    V_pad = dev["dec_w_t"].shape[1]
    E_pad = x.shape[-1]
    flat = jnp.transpose(x, (1, 0, 2)).reshape(B_pad * T, E_pad)
    # logits_dtype can be jnp.bfloat16 if the consumer (softmax/loss) allows it.
    logits = matmul_bias(flat, dev["dec_w_t"], dev["dec_b"], out_dtype=logits_dtype)
    logits = logits.reshape(B_pad, T, V_pad)[:B, :, :V]
    return logits, new_hidden


# ---------------------------------------------------------------------------
# Parameters: logical (f32, PyTorch-like) + prepared device params (padded, bf16).
# ---------------------------------------------------------------------------
def make_params(key, vocab_size, embed_size, hidden_size, num_layers, batch_size,
                tie_weights=True):
    keys = jax.random.split(key, 3 + 4 * num_layers)
    kidx = 0
    emb_w = jax.random.normal(keys[kidx], (vocab_size, embed_size), jnp.float32) * 0.1
    kidx += 1

    layers = []
    for l in range(num_layers):
        in_size = embed_size if l == 0 else hidden_size
        out_size = embed_size if (l == num_layers - 1 and tie_weights) else hidden_size
        bound = 1.0 / jnp.sqrt(out_size)
        wih = jax.random.uniform(keys[kidx], (4 * out_size, in_size), jnp.float32,
                                 -bound, bound); kidx += 1
        whh = jax.random.uniform(keys[kidx], (4 * out_size, out_size), jnp.float32,
                                 -bound, bound); kidx += 1
        b_ih = jax.random.uniform(keys[kidx], (4 * out_size,), jnp.float32,
                                  -bound, bound); kidx += 1
        b_hh = jax.random.uniform(keys[kidx], (4 * out_size,), jnp.float32,
                                  -bound, bound); kidx += 1
        layers.append({
            "wih_t": wih.T,                        # (in, 4H)
            "whh_t": whh.T,                        # (H, 4H)
            "bias": (b_ih + b_hh)[None, :],        # (1, 4H)
            "h0": jnp.zeros((batch_size, out_size), jnp.float32),
            "c0": jnp.zeros((batch_size, out_size), jnp.float32),
        })

    dec_b = jax.random.uniform(keys[kidx], (vocab_size,), jnp.float32,
                               -1.0 / jnp.sqrt(hidden_size), 1.0 / jnp.sqrt(hidden_size))
    return {"embed": emb_w, "lstm": layers,
            "dec_w_t": emb_w.T,            # tied weights
            "dec_b": dec_b[None, :]}


def prepare_params(params, batch_size):
    """Pad to TPU-friendly shapes (H, E, V -> mult of 128; B -> mult of 8), cast
    weights to bf16 (f32 biases / state).  Gate segments are placed lane-aligned.
    All padding happens here, once, so the hot path never pads/slices in HBM."""
    emb = params["embed"]                                      # (V, E) f32
    V, E = emb.shape
    E_pad = _round_up(E, 128)
    V_pad = _round_up(V, 128)
    B_pad = _round_up(batch_size, 8)
    embed_pad = jnp.pad(emb, ((0, 0), (0, E_pad - E))).astype(jnp.bfloat16)

    layers = []
    in_pad = E_pad
    for layer in params["lstm"]:
        wih_t, whh_t, bias = layer["wih_t"], layer["whh_t"], layer["bias"]
        I, G = wih_t.shape
        H = G // 4
        # NOTE: on v7x a 256-multiple H_pad may avoid half-filled MXU K tiles;
        # keep 128 here (measured win is 0-10% and it costs ~11% extra work).
        H_pad = _round_up(H, 128)
        wih_p = jnp.pad(_pack_gate_cols(wih_t, H, H_pad),
                        ((0, in_pad - I), (0, 0))).astype(jnp.bfloat16)
        whh_p = jnp.pad(_pack_gate_cols(whh_t, H, H_pad),
                        ((0, H_pad - H), (0, 0))).astype(jnp.bfloat16)
        bias_p = _pack_gate_cols(bias, H, H_pad).astype(jnp.float32)
        layers.append({"wih_t": wih_p, "whh_t": whh_p, "bias": bias_p,
                       "h0": jnp.zeros((B_pad, H_pad), jnp.float32),
                       "c0": jnp.zeros((B_pad, H_pad), jnp.float32),
                       "H": H, "H_pad": H_pad})
        in_pad = H_pad

    dec_w_t = jnp.pad(params["dec_w_t"],
                      ((0, E_pad - E), (0, V_pad - V))).astype(jnp.bfloat16)
    dec_b = jnp.pad(params["dec_b"], ((0, 0), (0, V_pad - V))).astype(jnp.float32)
    return {"embed": embed_pad, "lstm": layers,
            "dec_w_t": dec_w_t, "dec_b": dec_b,
            "B_pad": B_pad, "E_pad": E_pad, "V": V}


# ---------------------------------------------------------------------------
# Pure-JAX reference (f32 math from bf16-rounded weights, for correctness).
# ---------------------------------------------------------------------------
def _round_bf16(a):
    return a.astype(jnp.bfloat16).astype(jnp.float32)


def reference_forward(tokens, params):
    emb = _round_bf16(params["embed"])
    output = jnp.transpose(jnp.take(emb, tokens.T, axis=0), (1, 0, 2))   # (T,B,E)

    for layer in params["lstm"]:
        wih = _round_bf16(layer["wih_t"])
        whh = _round_bf16(layer["whh_t"])
        bias = layer["bias"]
        H = layer["whh_t"].shape[0]

        def step(carry, x_t):
            h, c = carry
            gates = x_t @ wih + h @ whh + bias
            i = jax.nn.sigmoid(gates[:, 0:H])
            f = jax.nn.sigmoid(gates[:, H:2 * H])
            g = jnp.tanh(gates[:, 2 * H:3 * H])
            o = jax.nn.sigmoid(gates[:, 3 * H:4 * H])
            c = f * c + i * g
            h = o * jnp.tanh(c)
            return (h, c), h

        (_, _), output = jax.lax.scan(step, (layer["h0"], layer["c0"]), output)

    T, B, E = output.shape
    flat = jnp.transpose(output, (1, 0, 2)).reshape(B * T, E)
    logits = flat @ emb.T + params["dec_b"]
    return logits.reshape(B, T, params["dec_b"].shape[-1])


if __name__ == "__main__":
    VOCAB, EMBED, HIDDEN, LAYERS, BATCH, SEQ = 64, 32, 48, 3, 4, 8

    key = jax.random.PRNGKey(0)
    pkey, tkey = jax.random.split(key)
    params = make_params(pkey, VOCAB, EMBED, HIDDEN, LAYERS, BATCH)
    dev = prepare_params(params, BATCH)

    # tokens: (seq_len, batch), as the PyTorch forward expects (it does x.T).
    tokens = jax.random.randint(tkey, (SEQ, BATCH), 0, VOCAB, dtype=jnp.int32)

    fwd = jax.jit(lambda tok: awd_lstm_forward(tok, dev))
    logits, hidden = fwd(tokens)
    logits = jax.block_until_ready(logits)
    hidden = jax.block_until_ready(hidden)

    ref_logits = jax.block_until_ready(reference_forward(tokens, params))
    assert logits.shape == (BATCH, SEQ, VOCAB)
    assert len(hidden) == LAYERS
    assert hidden[0][0].shape == (1, BATCH, HIDDEN)
    assert hidden[-1][0].shape == (1, BATCH, EMBED)   # tied last layer -> embed size
    assert jnp.allclose(logits, ref_logits, rtol=3e-2, atol=3e-2), \
        float(jnp.max(jnp.abs(logits - ref_logits)))

    print("KERNEL_OK")
</pallas_src>

<mosaic_0001>
module attributes {stable_mosaic.version = 11 : i64} {
  func.func @_matmul_bias_kernel(%arg0: i32, %arg1: i32, %arg2: memref<64x128xbf16, #tpu.memory_space<vmem>>, %arg3: memref<128x512xbf16, #tpu.memory_space<vmem>>, %arg4: memref<1x512xf32, #tpu.memory_space<vmem>>, %arg5: memref<64x512xbf16, #tpu.memory_space<vmem>>) attributes {dimension_semantics = [#tpu.dimension_semantics<parallel>, #tpu.dimension_semantics<parallel>], iteration_bounds = array<i64: 1, 1>, scalar_prefetch = 0 : i64, scratch_operands = 0 : i64, tpu.core_type = #tpu.core_type<tc>, window_params = [{transform_indices = @transform_0, window_bounds = array<i64: 64, 128>}, {transform_indices = @transform_1, window_bounds = array<i64: 128, 512>}, {transform_indices = @transform_2, window_bounds = array<i64: 1, 512>}, {transform_indices = @transform_3, window_bounds = array<i64: 64, 512>}]} {
    %c0 = arith.constant 0 : index
    %c0_0 = arith.constant 0 : index
    %0 = vector.load %arg2[%c0, %c0_0] : memref<64x128xbf16, #tpu.memory_space<vmem>>, vector<64x128xbf16>
    %c0_1 = arith.constant 0 : index
    %c0_2 = arith.constant 0 : index
    %1 = vector.load %arg3[%c0_1, %c0_2] : memref<128x512xbf16, #tpu.memory_space<vmem>>, vector<128x512xbf16>
    %cst = arith.constant dense<0.000000e+00> : vector<64x512xf32>
    %2 = tpu.matmul %0, %1, %cst {dimension_numbers = #tpu.dot_dimension_numbers<[1], [0], [0], [1], [0, 0, 1, 1], [], []>} : vector<64x128xbf16>, vector<128x512xbf16>, vector<64x512xf32> -> vector<64x512xf32>
    %c0_3 = arith.constant 0 : index
    %c0_4 = arith.constant 0 : index
    %3 = vector.load %arg4[%c0_3, %c0_4] : memref<1x512xf32, #tpu.memory_space<vmem>>, vector<1x512xf32>
    %4 = vector.broadcast %3 : vector<1x512xf32> to vector<64x512xf32>
    %5 = arith.addf %2, %4 : vector<64x512xf32>
    %6 = arith.truncf %5 : vector<64x512xf32> to vector<64x512xbf16>
    %c0_5 = arith.constant 0 : index
    %c0_6 = arith.constant 0 : index
    %7 = vector.load %arg5[%c0_5, %c0_6] : memref<64x512xbf16, #tpu.memory_space<vmem>>, vector<64x512xbf16>
    tpu.vector_store %arg5[%c0_5, %c0_6], %6 {strides = array<i32>} : memref<64x512xbf16, #tpu.memory_space<vmem>>, vector<64x512xbf16>,
    return
  }
  func.func @transform_0(%arg0: i32, %arg1: i32) -> (i32, i32) {
    %c0_i32 = arith.constant 0 : i32
    %c0_i32_0 = arith.constant 0 : i32
    return %arg1, %c0_i32 : i32, i32
  }
  func.func @transform_1(%arg0: i32, %arg1: i32) -> (i32, i32) {
    %c0_i32 = arith.constant 0 : i32
    %c0_i32_0 = arith.constant 0 : i32
    return %c0_i32, %arg0 : i32, i32
  }
  func.func @transform_2(%arg0: i32, %arg1: i32) -> (i32, i32) {
    %c0_i32 = arith.constant 0 : i32
    %c0_i32_0 = arith.constant 0 : i32
    return %c0_i32, %arg0 : i32, i32
  }
  func.func @transform_3(%arg0: i32, %arg1: i32) -> (i32, i32) {
    %c0_i32 = arith.constant 0 : i32
    return %arg1, %arg0 : i32, i32
  }
}

module attributes {stable_mosaic.version = 11 : i64} {
  func.func @_lstm_recurrent_kernel(%arg0: i32, %arg1: i32, %arg2: memref<8x8x512xbf16, #tpu.memory_space<vmem>>, %arg3: memref<128x512xbf16, #tpu.memory_space<vmem>>, %arg4: memref<8x128xf32, #tpu.memory_space<vmem>>, %arg5: memref<8x128xf32, #tpu.memory_space<vmem>>, %arg6: memref<8x8x128xbf16, #tpu.memory_space<vmem>>, %arg7: memref<8x128xf32, #tpu.memory_space<vmem>>, %arg8: memref<8x128xf32, #tpu.memory_space<vmem>>, %arg9: memref<8x128xf32, #tpu.memory_space<vmem>>, %arg10: memref<8x128xf32, #tpu.memory_space<vmem>>, %arg11: memref<8x128xbf16, #tpu.memory_space<vmem>>) attributes {dimension_semantics = [#tpu.dimension_semantics<parallel>, #tpu.dimension_semantics<arbitrary>], iteration_bounds = array<i64: 1, 1>, scalar_prefetch = 0 : i64, scratch_operands = 3 : i64, tpu.core_type = #tpu.core_type<tc>, window_params = [{transform_indices = @transform_0, window_bounds = array<i64: 8, 8, 512>}, {pipeline_mode = #tpu.pipeline_mode<synchronous>, transform_indices = @transform_1, window_bounds = array<i64: 128, 512>}, {transform_indices = @transform_2, window_bounds = array<i64: 8, 128>}, {transform_indices = @transform_3, window_bounds = array<i64: 8, 128>}, {transform_indices = @transform_4, window_bounds = array<i64: 8, 8, 128>}, {transform_indices = @transform_5, window_bounds = array<i64: 8, 128>}, {transform_indices = @transform_6, window_bounds = array<i64: 8, 128>}]} {
    %c0_i32 = arith.constant 0 : i32
    %0 = arith.cmpi eq, %arg1, %c0_i32 : i32
    %1 = arith.extui %0 : i1 to i32
    %c0_i32_0 = arith.constant 0 : i32
    %2 = arith.cmpi ne, %1, %c0_i32_0 : i32
    scf.if %2 {
      %c0_162 = arith.constant 0 : index
      %c0_163 = arith.constant 0 : index
      %342 = vector.load %arg4[%c0_162, %c0_163] : memref<8x128xf32, #tpu.memory_space<vmem>>, vector<8x128xf32>
      %c0_164 = arith.constant 0 : index
      %c0_165 = arith.constant 0 : index
      %343 = vector.load %arg9[%c0_164, %c0_165] : memref<8x128xf32, #tpu.memory_space<vmem>>, vector<8x128xf32>
      tpu.vector_store %arg9[%c0_164, %c0_165], %342 {strides = array<i32>} : memref<8x128xf32, #tpu.memory_space<vmem>>, vector<8x128xf32>,
      %c0_166 = arith.constant 0 : index
      %c0_167 = arith.constant 0 : index
      %344 = vector.load %arg5[%c0_166, %c0_167] : memref<8x128xf32, #tpu.memory_space<vmem>>, vector<8x128xf32>
      %c0_168 = arith.constant 0 : index
      %c0_169 = arith.constant 0 : index
      %345 = vector.load %arg10[%c0_168, %c0_169] : memref<8x128xf32, #tpu.memory_space<vmem>>, vector<8x128xf32>
      tpu.vector_store %arg10[%c0_168, %c0_169], %344 {strides = array<i32>} : memref<8x128xf32, #tpu.memory_space<vmem>>, vector<8x128xf32>,
      %c0_170 = arith.constant 0 : index
      %c0_171 = arith.constant 0 : index
      %346 = vector.load %arg4[%c0_170, %c0_171] : memref<8x128xf32, #tpu.memory_space<vmem>>, vector<8x128xf32>
      %347 = arith.truncf %346 : vector<8x128xf32> to vector<8x128xbf16>
      %c0_172 = arith.constant 0 : index
      %c0_173 = arith.constant 0 : index
      %348 = vector.load %arg11[%c0_172, %c0_173] : memref<8x128xbf16, #tpu.memory_space<vmem>>, vector<8x128xbf16>
      tpu.vector_store %arg11[%c0_172, %c0_173], %347 {strides = array<i32>} : memref<8x128xbf16, #tpu.memory_space<vmem>>, vector<8x128xbf16>,
    } else {
    }
    %c0_i32_1 = arith.constant 0 : i32
    %c0 = arith.constant 0 : index
    %c0_2 = arith.constant 0 : index
    %3 = vector.load %arg11[%c0, %c0_2] : memref<8x128xbf16, #tpu.memory_space<vmem>>, vector<8x128xbf16>
    %c0_3 = arith.constant 0 : index
    %c0_4 = arith.constant 0 : index
    %4 = vector.load %arg3[%c0_3, %c0_4] : memref<128x512xbf16, #tpu.memory_space<vmem>>, vector<128x512xbf16>
    %cst = arith.constant dense<0.000000e+00> : vector<8x512xf32>
    %5 = tpu.matmul %3, %4, %cst {dimension_numbers = #tpu.dot_dimension_numbers<[1], [0], [0], [1], [0, 0, 1, 1], [], []>} : vector<8x128xbf16>, vector<128x512xbf16>, vector<8x512xf32> -> vector<8x512xf32>
    %6 = arith.index_cast %c0_i32_1 : i32 to index
    %c0_5 = arith.constant 0 : index
    %c0_6 = arith.constant 0 : index
    %7 = vector.load %arg2[%6, %c0_5, %c0_6] : memref<8x8x512xbf16, #tpu.memory_space<vmem>>, vector<1x8x512xbf16>
    %8 = vector.shape_cast %7 : vector<1x8x512xbf16> to vector<8x512xbf16>
    %9 = arith.extf %8 : vector<8x512xbf16> to vector<8x512xf32>
    %10 = arith.addf %5, %9 : vector<8x512xf32>
    %11 = vector.extract_strided_slice %10 {offsets = [0, 0], sizes = [8, 128], strides = [1, 1]} : vector<8x512xf32> to vector<8x128xf32>
    %12 = arith.negf %11 : vector<8x128xf32>
    %13 = math.exp %12 : vector<8x128xf32>
    %cst_7 = arith.constant 1.000000e+00 : f32
    %14 = vector.broadcast %cst_7 : f32 to vector<8x128xf32>
    %15 = arith.addf %14, %13 : vector<8x128xf32>
    %16 = arith.divf %14, %15 : vector<8x128xf32>
    %17 = vector.extract_strided_slice %10 {offsets = [0, 128], sizes = [8, 128], strides = [1, 1]} : vector<8x512xf32> to vector<8x128xf32>
    %18 = arith.negf %17 : vector<8x128xf32>
    %19 = math.exp %18 : vector<8x128xf32>
    %cst_8 = arith.constant 1.000000e+00 : f32
    %20 = vector.broadcast %cst_8 : f32 to vector<8x128xf32>
    %21 = arith.addf %20, %19 : vector<8x128xf32>
    %22 = arith.divf %20, %21 : vector<8x128xf32>
    %23 = vector.extract_strided_slice %10 {offsets = [0, 256], sizes = [8, 128], strides = [1, 1]} : vector<8x512xf32> to vector<8x128xf32>
    %24 = math.tanh %23 : vector<8x128xf32>
    %25 = vector.extract_strided_slice %10 {offsets = [0, 384], sizes = [8, 128], strides = [1, 1]} : vector<8x512xf32> to vector<8x128xf32>
    %26 = arith.negf %25 : vector<8x128xf32>
    %27 = math.exp %26 : vector<8x128xf32>
    %cst_9 = arith.constant 1.000000e+00 : f32
    %28 = vector.broadcast %cst_9 : f32 to vector<8x128xf32>
    %29 = arith.addf %28, %27 : vector<8x128xf32>
    %30 = arith.divf %28, %29 : vector<8x128xf32>
    %c0_10 = arith.constant 0 : index
    %c0_11 = arith.constant 0 : index
    %31 = vector.load %arg10[%c0_10, %c0_11] : memref<8x128xf32, #tpu.memory_space<vmem>>, vector<8x128xf32>
    %32 = arith.mulf %22, %31 : vector<8x128xf32>
    %33 = arith.mulf %16, %24 : vector<8x128xf32>
    %34 = arith.addf %32, %33 : vector<8x128xf32>
    %35 = math.tanh %34 : vector<8x128xf32>
    %36 = arith.mulf %30, %35 : vector<8x128xf32>
    %c0_12 = arith.constant 0 : index
    %c0_13 = arith.constant 0 : index
    %37 = vector.load %arg10[%c0_12, %c0_13] : memref<8x128xf32, #tpu.memory_space<vmem>>, vector<8x128xf32>
    tpu.vector_store %arg10[%c0_12, %c0_13], %34 {strides = array<i32>} : memref<8x128xf32, #tpu.memory_space<vmem>>, vector<8x128xf32>,
    %c0_14 = arith.constant 0 : index
    %c0_15 = arith.constant 0 : index
    %38 = vector.load %arg9[%c0_14, %c0_15] : memref<8x128xf32, #tpu.memory_space<vmem>>, vector<8x128xf32>
    tpu.vector_store %arg9[%c0_14, %c0_15], %36 {strides = array<i32>} : memref<8x128xf32, #tpu.memory_space<vmem>>, vector<8x128xf32>,
    %39 = arith.truncf %36 : vector<8x128xf32> to vector<8x128xbf16>
    %c0_16 = arith.constant 0 : index
    %c0_17 = arith.constant 0 : index
    %40 = vector.load %arg11[%c0_16, %c0_17] : memref<8x128xbf16, #tpu.memory_space<vmem>>, vector<8x128xbf16>
    tpu.vector_store %arg11[%c0_16, %c0_17], %39 {strides = array<i32>} : memref<8x128xbf16, #tpu.memory_space<vmem>>, vector<8x128xbf16>,
    %41 = arith.index_cast %c0_i32_1 : i32 to index
    %c0_18 = arith.constant 0 : index
    %c0_19 = arith.constant 0 : index
    %42 = vector.load %arg6[%41, %c0_18, %c0_19] : memref<8x8x128xbf16, #tpu.memory_space<vmem>>, vector<1x8x128xbf16>
    %43 = vector.shape_cast %42 : vector<1x8x128xbf16> to vector<8x128xbf16>
    %44 = vector.shape_cast %39 : vector<8x128xbf16> to vector<1x8x128xbf16>
    tpu.vector_store %arg6[%41, %c0_18, %c0_19], %44 {strides = array<i32>} : memref<8x8x128xbf16, #tpu.memory_space<vmem>>, vector<1x8x128xbf16>,
    %c1_i32 = arith.constant 1 : i32
    %c0_20 = arith.constant 0 : index
    %c0_21 = arith.constant 0 : index
    %45 = vector.load %arg11[%c0_20, %c0_21] : memref<8x128xbf16, #tpu.memory_space<vmem>>, vector<8x128xbf16>
    %c0_22 = arith.constant 0 : index
    %c0_23 = arith.constant 0 : index
    %46 = vector.load %arg3[%c0_22, %c0_23] : memref<128x512xbf16, #tpu.memory_space<vmem>>, vector<128x512xbf16>
    %cst_24 = arith.constant dense<0.000000e+00> : vector<8x512xf32>
    %47 = tpu.matmul %45, %46, %cst_24 {dimension_numbers = #tpu.dot_dimension_numbers<[1], [0], [0], [1], [0, 0, 1, 1], [], []>} : vector<8x128xbf16>, vector<128x512xbf16>, vector<8x512xf32> -> vector<8x512xf32>
    %48 = arith.index_cast %c1_i32 : i32 to index
    %c0_25 = arith.constant 0 : index
    %c0_26 = arith.constant 0 : index
    %49 = vector.load %arg2[%48, %c0_25, %c0_26] : memref<8x8x512xbf16, #tpu.memory_space<vmem>>, vector<1x8x512xbf16>
    %50 = vector.shape_cast %49 : vector<1x8x512xbf16> to vector<8x512xbf16>
    %51 = arith.extf %50 : vector<8x512xbf16> to vector<8x512xf32>
    %52 = arith.addf %47, %51 : vector<8x512xf32>
    %53 = vector.extract_strided_slice %52 {offsets = [0, 0], sizes = [8, 128], strides = [1, 1]} : vector<8x512xf32> to vector<8x128xf32>
    %54 = arith.negf %53 : vector<8x128xf32>
    %55 = math.exp %54 : vector<8x128xf32>
    %cst_27 = arith.constant 1.000000e+00 : f32
    %56 = vector.broadcast %cst_27 : f32 to vector<8x128xf32>
    %57 = arith.addf %56, %55 : vector<8x128xf32>
    %58 = arith.divf %56, %57 : vector<8x128xf32>
    %59 = vector.extract_strided_slice %52 {offsets = [0, 128], sizes = [8, 128], strides = [1, 1]} : vector<8x512xf32> to vector<8x128xf32>
    %60 = arith.negf %59 : vector<8x128xf32>
    %61 = math.exp %60 : vector<8x128xf32>
    %cst_28 = arith.constant 1.000000e+00 : f32
    %62 = vector.broadcast %cst_28 : f32 to vector<8x128xf32>
    %63 = arith.addf %62, %61 : vector<8x128xf32>
    %64 = arith.divf %62, %63 : vector<8x128xf32>
    %65 = vector.extract_strided_slice %52 {offsets = [0, 256], sizes = [8, 128], strides = [1, 1]} : vector<8x512xf32> to vector<8x128xf32>
    %66 = math.tanh %65 : vector<8x128xf32>
    %67 = vector.extract_strided_slice %52 {offsets = [0, 384], sizes = [8, 128], strides = [1, 1]} : vector<8x512xf32> to vector<8x128xf32>
    %68 = arith.negf %67 : vector<8x128xf32>
    %69 = math.exp %68 : vector<8x128xf32>
    %cst_29 = arith.constant 1.000000e+00 : f32
    %70 = vector.broadcast %cst_29 : f32 to vector<8x128xf32>
    %71 = arith.addf %70, %69 : vector<8x128xf32>
    %72 = arith.divf %70, %71 : vector<8x128xf32>
    %c0_30 = arith.constant 0 : index
    %c0_31 = arith.constant 0 : index
    %73 = vector.load %arg10[%c0_30, %c0_31] : memref<8x128xf32, #tpu.memory_space<vmem>>, vector<8x128xf32>
    %74 = arith.mulf %64, %73 : vector<8x128xf32>
    %75 = arith.mulf %58, %66 : vector<8x128xf32>
    %76 = arith.addf %74, %75 : vector<8x128xf32>
    %77 = math.tanh %76 : vector<8x128xf32>
    %78 = arith.mulf %72, %77 : vector<8x128xf32>
    %c0_32 = arith.constant 0 : index
    %c0_33 = arith.constant 0 : index
    %79 = vector.load %arg10[%c0_32, %c0_33] : memref<8x128xf32, #tpu.memory_space<vmem>>, vector<8x128xf32>
    tpu.vector_store %arg10[%c0_32, %c0_33], %76 {strides = array<i32>} : memref<8x128xf32, #tpu.memory_space<vmem>>, vector<8x128xf32>,
    %c0_34 = arith.constant 0 : index
    %c0_35 = arith.constant 0 : index
    %80 = vector.load %arg9[%c0_34, %c0_35] : memref<8x128xf32, #tpu.memory_space<vmem>>, vector<8x128xf32>
    tpu.vector_store %arg9[%c0_34, %c0_35], %78 {strides = array<i32>} : memref<8x128xf32, #tpu.memory_space<vmem>>, vector<8x128xf32>,
    %81 = arith.truncf %78 : vector<8x128xf32> to vector<8x128xbf16>
    %c0_36 = arith.constant 0 : index
    %c0_37 = arith.constant 0 : index
    %82 = vector.load %arg11[%c0_36, %c0_37] : memref<8x128xbf16, #tpu.memory_space<vmem>>, vector<8x128xbf16>
    tpu.vector_store %arg11[%c0_36, %c0_37], %81 {strides = array<i32>} : memref<8x128xbf16, #tpu.memory_space<vmem>>, vector<8x128xbf16>,
    %83 = arith.index_cast %c1_i32 : i32 to index
    %c0_38 = arith.constant 0 : index
    %c0_39 = arith.constant 0 : index
    %84 = vector.load %arg6[%83, %c0_38, %c0_39] : memref<8x8x128xbf16, #tpu.memory_space<vmem>>, vector<1x8x128xbf16>
    %85 = vector.shape_cast %84 : vector<1x8x128xbf16> to vector<8x128xbf16>
    %86 = vector.shape_cast %81 : vector<8x128xbf16> to vector<1x8x128xbf16>
    tpu.vector_store %arg6[%83, %c0_38, %c0_39], %86 {strides = array<i32>} : memref<8x8x128xbf16, #tpu.memory_space<vmem>>, vector<1x8x128xbf16>,
    %c2_i32 = arith.constant 2 : i32
    %c0_40 = arith.constant 0 : index
    %c0_41 = arith.constant 0 : index
    %87 = vector.load %arg11[%c0_40, %c0_41] : memref<8x128xbf16, #tpu.memory_space<vmem>>, vector<8x128xbf16>
    %c0_42 = arith.constant 0 : index
    %c0_43 = arith.constant 0 : index
    %88 = vector.load %arg3[%c0_42, %c0_43] : memref<128x512xbf16, #tpu.memory_space<vmem>>, vector<128x512xbf16>
    %cst_44 = arith.constant dense<0.000000e+00> : vector<8x512xf32>
    %89 = tpu.matmul %87, %88, %cst_44 {dimension_numbers = #tpu.dot_dimension_numbers<[1], [0], [0], [1], [0, 0, 1, 1], [], []>} : vector<8x128xbf16>, vector<128x512xbf16>, vector<8x512xf32> -> vector<8x512xf32>
    %90 = arith.index_cast %c2_i32 : i32 to index
    %c0_45 = arith.constant 0 : index
    %c0_46 = arith.constant 0 : index
    %91 = vector.load %arg2[%90, %c0_45, %c0_46] : memref<8x8x512xbf16, #tpu.memory_space<vmem>>, vector<1x8x512xbf16>
    %92 = vector.shape_cast %91 : vector<1x8x512xbf16> to vector<8x512xbf16>
    %93 = arith.extf %92 : vector<8x512xbf16> to vector<8x512xf32>
    %94 = arith.addf %89, %93 : vector<8x512xf32>
    %95 = vector.extract_strided_slice %94 {offsets = [0, 0], sizes = [8, 128], strides = [1, 1]} : vector<8x512xf32> to vector<8x128xf32>
    %96 = arith.negf %95 : vector<8x128xf32>
    %97 = math.exp %96 : vector<8x128xf32>
    %cst_47 = arith.constant 1.000000e+00 : f32
    %98 = vector.broadcast %cst_47 : f32 to vector<8x128xf32>
    %99 = arith.addf %98, %97 : vector<8x128xf32>
    %100 = arith.divf %98, %99 : vector<8x128xf32>
    %101 = vector.extract_strided_slice %94 {offsets = [0, 128], sizes = [8, 128], strides = [1, 1]} : vector<8x512xf32> to vector<8x128xf32>
    %102 = arith.negf %101 : vector<8x128xf32>
    %103 = math.exp %102 : vector<8x128xf32>
    %cst_48 = arith.constant 1.000000e+00 : f32
    %104 = vector.broadcast %cst_48 : f32 to vector<8x128xf32>
    %105 = arith.addf %104, %103 : vector<8x128xf32>
    %106 = arith.divf %104, %105 : vector<8x128xf32>
    %107 = vector.extract_strided_slice %94 {offsets = [0, 256], sizes = [8, 128], strides = [1, 1]} : vector<8x512xf32> to vector<8x128xf32>
    %108 = math.tanh %107 : vector<8x128xf32>
    %109 = vector.extract_strided_slice %94 {offsets = [0, 384], sizes = [8, 128], strides = [1, 1]} : vector<8x512xf32> to vector<8x128xf32>
    %110 = arith.negf %109 : vector<8x128xf32>
    %111 = math.exp %110 : vector<8x128xf32>
    %cst_49 = arith.constant 1.000000e+00 : f32
    %112 = vector.broadcast %cst_49 : f32 to vector<8x128xf32>
    %113 = arith.addf %112, %111 : vector<8x128xf32>
    %114 = arith.divf %112, %113 : vector<8x128xf32>
    %c0_50 = arith.constant 0 : index
    %c0_51 = arith.constant 0 : index
    %115 = vector.load %arg10[%c0_50, %c0_51] : memref<8x128xf32, #tpu.memory_space<vmem>>, vector<8x128xf32>
    %116 = arith.mulf %106, %115 : vector<8x128xf32>
    %117 = arith.mulf %100, %108 : vector<8x128xf32>
    %118 = arith.addf %116, %117 : vector<8x128xf32>
    %119 = math.tanh %118 : vector<8x128xf32>
    %120 = arith.mulf %114, %119 : vector<8x128xf32>
    %c0_52 = arith.constant 0 : index
    %c0_53 = arith.constant 0 : index
    %121 = vector.load %arg10[%c0_52, %c0_53] : memref<8x128xf32, #tpu.memory_space<vmem>>, vector<8x128xf32>
    tpu.vector_store %arg10[%c0_52, %c0_53], %118 {strides = array<i32>} : memref<8x128xf32, #tpu.memory_space<vmem>>, vector<8x128xf32>,
    %c0_54 = arith.constant 0 : index
    %c0_55 = arith.constant 0 : index
    %122 = vector.load %arg9[%c0_54, %c0_55] : memref<8x128xf32, #tpu.memory_space<vmem>>, vector<8x128xf32>
    tpu.vector_store %arg9[%c0_54, %c0_55], %120 {strides = array<i32>} : memref<8x128xf32, #tpu.memory_space<vmem>>, vector<8x128xf32>,
    %123 = arith.truncf %120 : vector<8x128xf32> to vector<8x128xbf16>
    %c0_56 = arith.constant 0 : index
    %c0_57 = arith.constant 0 : index
    %124 = vector.load %arg11[%c0_56, %c0_57] : memref<8x128xbf16, #tpu.memory_space<vmem>>, vector<8x128xbf16>
    tpu.vector_store %arg11[%c0_56, %c0_57], %123 {strides = array<i32>} : memref<8x128xbf16, #tpu.memory_space<vmem>>, vector<8x128xbf16>,
    %125 = arith.index_cast %c2_i32 : i32 to index
    %c0_58 = arith.constant 0 : index
    %c0_59 = arith.constant 0 : index
    %126 = vector.load %arg6[%125, %c0_58, %c0_59] : memref<8x8x128xbf16, #tpu.memory_space<vmem>>, vector<1x8x128xbf16>
    %127 = vector.shape_cast %126 : vector<1x8x128xbf16> to vector<8x128xbf16>
    %128 = vector.shape_cast %123 : vector<8x128xbf16> to vector<1x8x128xbf16>
    tpu.vector_store %arg6[%125, %c0_58, %c0_59], %128 {strides = array<i32>} : memref<8x8x128xbf16, #tpu.memory_space<vmem>>, vector<1x8x128xbf16>,
    %c3_i32 = arith.constant 3 : i32
    %c0_60 = arith.constant 0 : index
    %c0_61 = arith.constant 0 : index
    %129 = vector.load %arg11[%c0_60, %c0_61] : memref<8x128xbf16, #tpu.memory_space<vmem>>, vector<8x128xbf16>
    %c0_62 = arith.constant 0 : index
    %c0_63 = arith.constant 0 : index
    %130 = vector.load %arg3[%c0_62, %c0_63] : memref<128x512xbf16, #tpu.memory_space<vmem>>, vector<128x512xbf16>
    %cst_64 = arith.constant dense<0.000000e+00> : vector<8x512xf32>
    %131 = tpu.matmul %129, %130, %cst_64 {dimension_numbers = #tpu.dot_dimension_numbers<[1], [0], [0], [1], [0, 0, 1, 1], [], []>} : vector<8x128xbf16>, vector<128x512xbf16>, vector<8x512xf32> -> vector<8x512xf32>
    %132 = arith.index_cast %c3_i32 : i32 to index
    %c0_65 = arith.constant 0 : index
    %c0_66 = arith.constant 0 : index
    %133 = vector.load %arg2[%132, %c0_65, %c0_66] : memref<8x8x512xbf16, #tpu.memory_space<vmem>>, vector<1x8x512xbf16>
    %134 = vector.shape_cast %133 : vector<1x8x512xbf16> to vector<8x512xbf16>
    %135 = arith.extf %134 : vector<8x512xbf16> to vector<8x512xf32>
    %136 = arith.addf %131, %135 : vector<8x512xf32>
    %137 = vector.extract_strided_slice %136 {offsets = [0, 0], sizes = [8, 128], strides = [1, 1]} : vector<8x512xf32> to vector<8x128xf32>
    %138 = arith.negf %137 : vector<8x128xf32>
    %139 = math.exp %138 : vector<8x128xf32>
    %cst_67 = arith.constant 1.000000e+00 : f32
    %140 = vector.broadcast %cst_67 : f32 to vector<8x128xf32>
    %141 = arith.addf %140, %139 : vector<8x128xf32>
    %142 = arith.divf %140, %141 : vector<8x128xf32>
    %143 = vector.extract_strided_slice %136 {offsets = [0, 128], sizes = [8, 128], strides = [1, 1]} : vector<8x512xf32> to vector<8x128xf32>
    %144 = arith.negf %143 : vector<8x128xf32>
    %145 = math.exp %144 : vector<8x128xf32>
    %cst_68 = arith.constant 1.000000e+00 : f32
    %146 = vector.broadcast %cst_68 : f32 to vector<8x128xf32>
    %147 = arith.addf %146, %145 : vector<8x128xf32>
    %148 = arith.divf %146, %147 : vector<8x128xf32>
    %149 = vector.extract_strided_slice %136 {offsets = [0, 256], sizes = [8, 128], strides = [1, 1]} : vector<8x512xf32> to vector<8x128xf32>
    %150 = math.tanh %149 : vector<8x128xf32>
    %151 = vector.extract_strided_slice %136 {offsets = [0, 384], sizes = [8, 128], strides = [1, 1]} : vector<8x512xf32> to vector<8x128xf32>
    %152 = arith.negf %151 : vector<8x128xf32>
    %153 = math.exp %152 : vector<8x128xf32>
    %cst_69 = arith.constant 1.000000e+00 : f32
    %154 = vector.broadcast %cst_69 : f32 to vector<8x128xf32>
    %155 = arith.addf %154, %153 : vector<8x128xf32>
    %156 = arith.divf %154, %155 : vector<8x128xf32>
    %c0_70 = arith.constant 0 : index
    %c0_71 = arith.constant 0 : index
    %157 = vector.load %arg10[%c0_70, %c0_71] : memref<8x128xf32, #tpu.memory_space<vmem>>, vector<8x128xf32>
    %158 = arith.mulf %148, %157 : vector<8x128xf32>
    %159 = arith.mulf %142, %150 : vector<8x128xf32>
    %160 = arith.addf %158, %159 : vector<8x128xf32>
    %161 = math.tanh %160 : vector<8x128xf32>
    %162 = arith.mulf %156, %161 : vector<8x128xf32>
    %c0_72 = arith.constant 0 : index
    %c0_73 = arith.constant 0 : index
    %163 = vector.load %arg10[%c0_72, %c0_73] : memref<8x128xf32, #tpu.memory_space<vmem>>, vector<8x128xf32>
    tpu.vector_store %arg10[%c0_72, %c0_73], %160 {strides = array<i32>} : memref<8x128xf32, #tpu.memory_space<vmem>>, vector<8x128xf32>,
    %c0_74 = arith.constant 0 : index
    %c0_75 = arith.constant 0 : index
    %164 = vector.load %arg9[%c0_74, %c0_75] : memref<8x128xf32, #tpu.memory_space<vmem>>, vector<8x128xf32>
    tpu.vector_store %arg9[%c0_74, %c0_75], %162 {strides = array<i32>} : memref<8x128xf32, #tpu.memory_space<vmem>>, vector<8x128xf32>,
    %165 = arith.truncf %162 : vector<8x128xf32> to vector<8x128xbf16>
    %c0_76 = arith.constant 0 : index
    %c0_77 = arith.constant 0 : index
    %166 = vector.load %arg11[%c0_76, %c0_77] : memref<8x128xbf16, #tpu.memory_space<vmem>>, vector<8x128xbf16>
    tpu.vector_store %arg11[%c0_76, %c0_77], %165 {strides = array<i32>} : memref<8x128xbf16, #tpu.memory_space<vmem>>, vector<8x128xbf16>,
    %167 = arith.index_cast %c3_i32 : i32 to index
    %c0_78 = arith.constant 0 : index
    %c0_79 = arith.constant 0 : index
    %168 = vector.load %arg6[%167, %c0_78, %c0_79] : memref<8x8x128xbf16, #tpu.memory_space<vmem>>, vector<1x8x128xbf16>
    %169 = vector.shape_cast %168 : vector<1x8x128xbf16> to vector<8x128xbf16>
    %170 = vector.shape_cast %165 : vector<8x128xbf16> to vector<1x8x128xbf16>
    tpu.vector_store %arg6[%167, %c0_78, %c0_79], %170 {strides = array<i32>} : memref<8x8x128xbf16, #tpu.memory_space<vmem>>, vector<1x8x128xbf16>,
    %c4_i32 = arith.constant 4 : i32
    %c0_80 = arith.constant 0 : index
    %c0_81 = arith.constant 0 : index
    %171 = vector.load %arg11[%c0_80, %c0_81] : memref<8x128xbf16, #tpu.memory_space<vmem>>, vector<8x128xbf16>
    %c0_82 = arith.constant 0 : index
    %c0_83 = arith.constant 0 : index
    %172 = vector.load %arg3[%c0_82, %c0_83] : memref<128x512xbf16, #tpu.memory_space<vmem>>, vector<128x512xbf16>
    %cst_84 = arith.constant dense<0.000000e+00> : vector<8x512xf32>
    %173 = tpu.matmul %171, %172, %cst_84 {dimension_numbers = #tpu.dot_dimension_numbers<[1], [0], [0], [1], [0, 0, 1, 1], [], []>} : vector<8x128xbf16>, vector<128x512xbf16>, vector<8x512xf32> -> vector<8x512xf32>
    %174 = arith.index_cast %c4_i32 : i32 to index
    %c0_85 = arith.constant 0 : index
    %c0_86 = arith.constant 0 : index
    %175 = vector.load %arg2[%174, %c0_85, %c0_86] : memref<8x8x512xbf16, #tpu.memory_space<vmem>>, vector<1x8x512xbf16>
    %176 = vector.shape_cast %175 : vector<1x8x512xbf16> to vector<8x512xbf16>
    %177 = arith.extf %176 : vector<8x512xbf16> to vector<8x512xf32>
    %178 = arith.addf %173, %177 : vector<8x512xf32>
    %179 = vector.extract_strided_slice %178 {offsets = [0, 0], sizes = [8, 128], strides = [1, 1]} : vector<8x512xf32> to vector<8x128xf32>
    %180 = arith.negf %179 : vector<8x128xf32>
    %181 = math.exp %180 : vector<8x128xf32>
    %cst_87 = arith.constant 1.000000e+00 : f32
    %182 = vector.broadcast %cst_87 : f32 to vector<8x128xf32>
    %183 = arith.addf %182, %181 : vector<8x128xf32>
    %184 = arith.divf %182, %183 : vector<8x128xf32>
    %185 = vector.extract_strided_slice %178 {offsets = [0, 128], sizes = [8, 128], strides = [1, 1]} : vector<8x512xf32> to vector<8x128xf32>
    %186 = arith.negf %185 : vector<8x128xf32>
    %187 = math.exp %186 : vector<8x128xf32>
    %cst_88 = arith.constant 1.000000e+00 : f32
    %188 = vector.broadcast %cst_88 : f32 to vector<8x128xf32>
    %189 = arith.addf %188, %187 : vector<8x128xf32>
    %190 = arith.divf %188, %189 : vector<8x128xf32>
    %191 = vector.extract_strided_slice %178 {offsets = [0, 256], sizes = [8, 128], strides = [1, 1]} : vector<8x512xf32> to vector<8x128xf32>
    %192 = math.tanh %191 : vector<8x128xf32>
    %193 = vector.extract_strided_slice %178 {offsets = [0, 384], sizes = [8, 128], strides = [1, 1]} : vector<8x512xf32> to vector<8x128xf32>
    %194 = arith.negf %193 : vector<8x128xf32>
    %195 = math.exp %194 : vector<8x128xf32>
    %cst_89 = arith.constant 1.000000e+00 : f32
    %196 = vector.broadcast %cst_89 : f32 to vector<8x128xf32>
    %197 = arith.addf %196, %195 : vector<8x128xf32>
    %198 = arith.divf %196, %197 : vector<8x128xf32>
    %c0_90 = arith.constant 0 : index
    %c0_91 = arith.constant 0 : index
    %199 = vector.load %arg10[%c0_90, %c0_91] : memref<8x128xf32, #tpu.memory_space<vmem>>, vector<8x128xf32>
    %200 = arith.mulf %190, %199 : vector<8x128xf32>
    %201 = arith.mulf %184, %192 : vector<8x128xf32>
    %202 = arith.addf %200, %201 : vector<8x128xf32>
    %203 = math.tanh %202 : vector<8x128xf32>
    %204 = arith.mulf %198, %203 : vector<8x128xf32>
    %c0_92 = arith.constant 0 : index
    %c0_93 = arith.constant 0 : index
    %205 = vector.load %arg10[%c0_92, %c0_93] : memref<8x128xf32, #tpu.memory_space<vmem>>, vector<8x128xf32>
    tpu.vector_store %arg10[%c0_92, %c0_93], %202 {strides = array<i32>} : memref<8x128xf32, #tpu.memory_space<vmem>>, vector<8x128xf32>,
    %c0_94 = arith.constant 0 : index
    %c0_95 = arith.constant 0 : index
    %206 = vector.load %arg9[%c0_94, %c0_95] : memref<8x128xf32, #tpu.memory_space<vmem>>, vector<8x128xf32>
    tpu.vector_store %arg9[%c0_94, %c0_95], %204 {strides = array<i32>} : memref<8x128xf32, #tpu.memory_space<vmem>>, vector<8x128xf32>,
    %207 = arith.truncf %204 : vector<8x128xf32> to vector<8x128xbf16>
    %c0_96 = arith.constant 0 : index
    %c0_97 = arith.constant 0 : index
    %208 = vector.load %arg11[%c0_96, %c0_97] : memref<8x128xbf16, #tpu.memory_space<vmem>>, vector<8x128xbf16>
    tpu.vector_store %arg11[%c0_96, %c0_97], %207 {strides = array<i32>} : memref<8x128xbf16, #tpu.memory_space<vmem>>, vector<8x128xbf16>,
    %209 = arith.index_cast %c4_i32 : i32 to index
    %c0_98 = arith.constant 0 : index
    %c0_99 = arith.constant 0 : index
    %210 = vector.load %arg6[%209, %c0_98, %c0_99] : memref<8x8x128xbf16, #tpu.memory_space<vmem>>, vector<1x8x128xbf16>
    %211 = vector.shape_cast %210 : vector<1x8x128xbf16> to vector<8x128xbf16>
    %212 = vector.shape_cast %207 : vector<8x128xbf16> to vector<1x8x128xbf16>
    tpu.vector_store %arg6[%209, %c0_98, %c0_99], %212 {strides = array<i32>} : memref<8x8x128xbf16, #tpu.memory_space<vmem>>, vector<1x8x128xbf16>,
    %c5_i32 = arith.constant 5 : i32
    %c0_100 = arith.constant 0 : index
    %c0_101 = arith.constant 0 : index
    %213 = vector.load %arg11[%c0_100, %c0_101] : memref<8x128xbf16, #tpu.memory_space<vmem>>, vector<8x128xbf16>
    %c0_102 = arith.constant 0 : index
    %c0_103 = arith.constant 0 : index
    %214 = vector.load %arg3[%c0_102, %c0_103] : memref<128x512xbf16, #tpu.memory_space<vmem>>, vector<128x512xbf16>
    %cst_104 = arith.constant dense<0.000000e+00> : vector<8x512xf32>
    %215 = tpu.matmul %213, %214, %cst_104 {dimension_numbers = #tpu.dot_dimension_numbers<[1], [0], [0], [1], [0, 0, 1, 1], [], []>} : vector<8x128xbf16>, vector<128x512xbf16>, vector<8x512xf32> -> vector<8x512xf32>
    %216 = arith.index_cast %c5_i32 : i32 to index
    %c0_105 = arith.constant 0 : index
    %c0_106 = arith.constant 0 : index
    %217 = vector.load %arg2[%216, %c0_105, %c0_106] : memref<8x8x512xbf16, #tpu.memory_space<vmem>>, vector<1x8x512xbf16>
    %218 = vector.shape_cast %217 : vector<1x8x512xbf16> to vector<8x512xbf16>
    %219 = arith.extf %218 : vector<8x512xbf16> to vector<8x512xf32>
    %220 = arith.addf %215, %219 : vector<8x512xf32>
    %221 = vector.extract_strided_slice %220 {offsets = [0, 0], sizes = [8, 128], strides = [1, 1]} : vector<8x512xf32> to vector<8x128xf32>
    %222 = arith.negf %221 : vector<8x128xf32>
    %223 = math.exp %222 : vector<8x128xf32>
    %cst_107 = arith.constant 1.000000e+00 : f32
    %224 = vector.broadcast %cst_107 : f32 to vector<8x128xf32>
    %225 = arith.addf %224, %223 : vector<8x128xf32>
    %226 = arith.divf %224, %225 : vector<8x128xf32>
    %227 = vector.extract_strided_slice %220 {offsets = [0, 128], sizes = [8, 128], strides = [1, 1]} : vector<8x512xf32> to vector<8x128xf32>
    %228 = arith.negf %227 : vector<8x128xf32>
    %229 = math.exp %228 : vector<8x128xf32>
    %cst_108 = arith.constant 1.000000e+00 : f32
    %230 = vector.broadcast %cst_108 : f32 to vector<8x128xf32>
    %231 = arith.addf %230, %229 : vector<8x128xf32>
    %232 = arith.divf %230, %231 : vector<8x128xf32>
    %233 = vector.extract_strided_slice %220 {offsets = [0, 256], sizes = [8, 128], strides = [1, 1]} : vector<8x512xf32> to vector<8x128xf32>
    %234 = math.tanh %233 : vector<8x128xf32>
    %235 = vector.extract_strided_slice %220 {offsets = [0, 384], sizes = [8, 128], strides = [1, 1]} : vector<8x512xf32> to vector<8x128xf32>
    %236 = arith.negf %235 : vector<8x128xf32>
    %237 = math.exp %236 : vector<8x128xf32>
    %cst_109 = arith.constant 1.000000e+00 : f32
    %238 = vector.broadcast %cst_109 : f32 to vector<8x128xf32>
    %239 = arith.addf %238, %237 : vector<8x128xf32>
    %240 = arith.divf %238, %239 : vector<8x128xf32>
    %c0_110 = arith.constant 0 : index
    %c0_111 = arith.constant 0 : index
    %241 = vector.load %arg10[%c0_110, %c0_111] : memref<8x128xf32, #tpu.memory_space<vmem>>, vector<8x128xf32>
    %242 = arith.mulf %232, %241 : vector<8x128xf32>
    %243 = arith.mulf %226, %234 : vector<8x128xf32>
    %244 = arith.addf %242, %243 : vector<8x128xf32>
    %245 = math.tanh %244 : vector<8x128xf32>
    %246 = arith.mulf %240, %245 : vector<8x128xf32>
    %c0_112 = arith.constant 0 : index
    %c0_113 = arith.constant 0 : index
    %247 = vector.load %arg10[%c0_112, %c0_113] : memref<8x128xf32, #tpu.memory_space<vmem>>, vector<8x128xf32>
    tpu.vector_store %arg10[%c0_112, %c0_113], %244 {strides = array<i32>} : memref<8x128xf32, #tpu.memory_space<vmem>>, vector<8x128xf32>,
    %c0_114 = arith.constant 0 : index
    %c0_115 = arith.constant 0 : index
    %248 = vector.load %arg9[%c0_114, %c0_115] : memref<8x128xf32, #tpu.memory_space<vmem>>, vector<8x128xf32>
    tpu.vector_store %arg9[%c0_114, %c0_115], %246 {strides = array<i32>} : memref<8x128xf32, #tpu.memory_space<vmem>>, vector<8x128xf32>,
    %249 = arith.truncf %246 : vector<8x128xf32> to vector<8x128xbf16>
    %c0_116 = arith.constant 0 : index
    %c0_117 = arith.constant 0 : index
    %250 = vector.load %arg11[%c0_116, %c0_117] : memref<8x128xbf16, #tpu.memory_space<vmem>>, vector<8x128xbf16>
    tpu.vector_store %arg11[%c0_116, %c0_117], %249 {strides = array<i32>} : memref<8x128xbf16, #tpu.memory_space<vmem>>, vector<8x128xbf16>,
    %251 = arith.index_cast %c5_i32 : i32 to index
    %c0_118 = arith.constant 0 : index
    %c0_119 = arith.constant 0 : index
    %252 = vector.load %arg6[%251, %c0_118, %c0_119] : memref<8x8x128xbf16, #tpu.memory_space<vmem>>, vector<1x8x128xbf16>
    %253 = vector.shape_cast %252 : vector<1x8x128xbf16> to vector<8x128xbf16>
    %254 = vector.shape_cast %249 : vector<8x128xbf16> to vector<1x8x128xbf16>
    tpu.vector_store %arg6[%251, %c0_118, %c0_119], %254 {strides = array<i32>} : memref<8x8x128xbf16, #tpu.memory_space<vmem>>, vector<1x8x128xbf16>,
    %c6_i32 = arith.constant 6 : i32
    %c0_120 = arith.constant 0 : index
    %c0_121 = arith.constant 0 : index
    %255 = vector.load %arg11[%c0_120, %c0_121] : memref<8x128xbf16, #tpu.memory_space<vmem>>, vector<8x128xbf16>
    %c0_122 = arith.constant 0 : index
    %c0_123 = arith.constant 0 : index
    %256 = vector.load %arg3[%c0_122, %c0_123] : memref<128x512xbf16, #tpu.memory_space<vmem>>, vector<128x512xbf16>
    %cst_124 = arith.constant dense<0.000000e+00> : vector<8x512xf32>
    %257 = tpu.matmul %255, %256, %cst_124 {dimension_numbers = #tpu.dot_dimension_numbers<[1], [0], [0], [1], [0, 0, 1, 1], [], []>} : vector<8x128xbf16>, vector<128x512xbf16>, vector<8x512xf32> -> vector<8x512xf32>
    %258 = arith.index_cast %c6_i32 : i32 to index
    %c0_125 = arith.constant 0 : index
    %c0_126 = arith.constant 0 : index
    %259 = vector.load %arg2[%258, %c0_125, %c0_126] : memref<8x8x512xbf16, #tpu.memory_space<vmem>>, vector<1x8x512xbf16>
    %260 = vector.shape_cast %259 : vector<1x8x512xbf16> to vector<8x512xbf16>
    %261 = arith.extf %260 : vector<8x512xbf16> to vector<8x512xf32>
    %262 = arith.addf %257, %261 : vector<8x512xf32>
    %263 = vector.extract_strided_slice %262 {offsets = [0, 0], sizes = [8, 128], strides = [1, 1]} : vector<8x512xf32> to vector<8x128xf32>
    %264 = arith.negf %263 : vector<8x128xf32>
    %265 = math.exp %264 : vector<8x128xf32>
    %cst_127 = arith.constant 1.000000e+00 : f32
    %266 = vector.broadcast %cst_127 : f32 to vector<8x128xf32>
    %267 = arith.addf %266, %265 : vector<8x128xf32>
    %268 = arith.divf %266, %267 : vector<8x128xf32>
    %269 = vector.extract_strided_slice %262 {offsets = [0, 128], sizes = [8, 128], strides = [1, 1]} : vector<8x512xf32> to vector<8x128xf32>
    %270 = arith.negf %269 : vector<8x128xf32>
    %271 = math.exp %270 : vector<8x128xf32>
    %cst_128 = arith.constant 1.000000e+00 : f32
    %272 = vector.broadcast %cst_128 : f32 to vector<8x128xf32>
    %273 = arith.addf %272, %271 : vector<8x128xf32>
    %274 = arith.divf %272, %273 : vector<8x128xf32>
    %275 = vector.extract_strided_slice %262 {offsets = [0, 256], sizes = [8, 128], strides = [1, 1]} : vector<8x512xf32> to vector<8x128xf32>
    %276 = math.tanh %275 : vector<8x128xf32>
    %277 = vector.extract_strided_slice %262 {offsets = [0, 384], sizes = [8, 128], strides = [1, 1]} : vector<8x512xf32> to vector<8x128xf32>
    %278 = arith.negf %277 : vector<8x128xf32>
    %279 = math.exp %278 : vector<8x128xf32>
    %cst_129 = arith.constant 1.000000e+00 : f32
    %280 = vector.broadcast %cst_129 : f32 to vector<8x128xf32>
    %281 = arith.addf %280, %279 : vector<8x128xf32>
    %282 = arith.divf %280, %281 : vector<8x128xf32>
    %c0_130 = arith.constant 0 : index
    %c0_131 = arith.constant 0 : index
    %283 = vector.load %arg10[%c0_130, %c0_131] : memref<8x128xf32, #tpu.memory_space<vmem>>, vector<8x128xf32>
    %284 = arith.mulf %274, %283 : vector<8x128xf32>
    %285 = arith.mulf %268, %276 : vector<8x128xf32>
    %286 = arith.addf %284, %285 : vector<8x128xf32>
    %287 = math.tanh %286 : vector<8x128xf32>
    %288 = arith.mulf %282, %287 : vector<8x128xf32>
    %c0_132 = arith.constant 0 : index
    %c0_133 = arith.constant 0 : index
    %289 = vector.load %arg10[%c0_132, %c0_133] : memref<8x128xf32, #tpu.memory_space<vmem>>, vector<8x128xf32>
    tpu.vector_store %arg10[%c0_132, %c0_133], %286 {strides = array<i32>} : memref<8x128xf32, #tpu.memory_space<vmem>>, vector<8x128xf32>,
    %c0_134 = arith.constant 0 : index
    %c0_135 = arith.constant 0 : index
    %290 = vector.load %arg9[%c0_134, %c0_135] : memref<8x128xf32, #tpu.memory_space<vmem>>, vector<8x128xf32>
    tpu.vector_store %arg9[%c0_134, %c0_135], %288 {strides = array<i32>} : memref<8x128xf32, #tpu.memory_space<vmem>>, vector<8x128xf32>,
    %291 = arith.truncf %288 : vector<8x128xf32> to vector<8x128xbf16>
    %c0_136 = arith.constant 0 : index
    %c0_137 = arith.constant 0 : index
    %292 = vector.load %arg11[%c0_136, %c0_137] : memref<8x128xbf16, #tpu.memory_space<vmem>>, vector<8x128xbf16>
    tpu.vector_store %arg11[%c0_136, %c0_137], %291 {strides = array<i32>} : memref<8x128xbf16, #tpu.memory_space<vmem>>, vector<8x128xbf16>,
    %293 = arith.index_cast %c6_i32 : i32 to index
    %c0_138 = arith.constant 0 : index
    %c0_139 = arith.constant 0 : index
    %294 = vector.load %arg6[%293, %c0_138, %c0_139] : memref<8x8x128xbf16, #tpu.memory_space<vmem>>, vector<1x8x128xbf16>
    %295 = vector.shape_cast %294 : vector<1x8x128xbf16> to vector<8x128xbf16>
    %296 = vector.shape_cast %291 : vector<8x128xbf16> to vector<1x8x128xbf16>
    tpu.vector_store %arg6[%293, %c0_138, %c0_139], %296 {strides = array<i32>} : memref<8x8x128xbf16, #tpu.memory_space<vmem>>, vector<1x8x128xbf16>,
    %c7_i32 = arith.constant 7 : i32
    %c0_140 = arith.constant 0 : index
    %c0_141 = arith.constant 0 : index
    %297 = vector.load %arg11[%c0_140, %c0_141] : memref<8x128xbf16, #tpu.memory_space<vmem>>, vector<8x128xbf16>
    %c0_142 = arith.constant 0 : index
    %c0_143 = arith.constant 0 : index
    %298 = vector.load %arg3[%c0_142, %c0_143] : memref<128x512xbf16, #tpu.memory_space<vmem>>, vector<128x512xbf16>
    %cst_144 = arith.constant dense<0.000000e+00> : vector<8x512xf32>
    %299 = tpu.matmul %297, %298, %cst_144 {dimension_numbers = #tpu.dot_dimension_numbers<[1], [0], [0], [1], [0, 0, 1, 1], [], []>} : vector<8x128xbf16>, vector<128x512xbf16>, vector<8x512xf32> -> vector<8x512xf32>
    %300 = arith.index_cast %c7_i32 : i32 to index
    %c0_145 = arith.constant 0 : index
    %c0_146 = arith.constant 0 : index
    %301 = vector.load %arg2[%300, %c0_145, %c0_146] : memref<8x8x512xbf16, #tpu.memory_space<vmem>>, vector<1x8x512xbf16>
    %302 = vector.shape_cast %301 : vector<1x8x512xbf16> to vector<8x512xbf16>
    %303 = arith.extf %302 : vector<8x512xbf16> to vector<8x512xf32>
    %304 = arith.addf %299, %303 : vector<8x512xf32>
    %305 = vector.extract_strided_slice %304 {offsets = [0, 0], sizes = [8, 128], strides = [1, 1]} : vector<8x512xf32> to vector<8x128xf32>
    %306 = arith.negf %305 : vector<8x128xf32>
    %307 = math.exp %306 : vector<8x128xf32>
    %cst_147 = arith.constant 1.000000e+00 : f32
    %308 = vector.broadcast %cst_147 : f32 to vector<8x128xf32>
    %309 = arith.addf %308, %307 : vector<8x128xf32>
    %310 = arith.divf %308, %309 : vector<8x128xf32>
    %311 = vector.extract_strided_slice %304 {offsets = [0, 128], sizes = [8, 128], strides = [1, 1]} : vector<8x512xf32> to vector<8x128xf32>
    %312 = arith.negf %311 : vector<8x128xf32>
    %313 = math.exp %312 : vector<8x128xf32>
    %cst_148 = arith.constant 1.000000e+00 : f32
    %314 = vector.broadcast %cst_148 : f32 to vector<8x128xf32>
    %315 = arith.addf %314, %313 : vector<8x128xf32>
    %316 = arith.divf %314, %315 : vector<8x128xf32>
    %317 = vector.extract_strided_slice %304 {offsets = [0, 256], sizes = [8, 128], strides = [1, 1]} : vector<8x512xf32> to vector<8x128xf32>
    %318 = math.tanh %317 : vector<8x128xf32>
    %319 = vector.extract_strided_slice %304 {offsets = [0, 384], sizes = [8, 128], strides = [1, 1]} : vector<8x512xf32> to vector<8x128xf32>
    %320 = arith.negf %319 : vector<8x128xf32>
    %321 = math.exp %320 : vector<8x128xf32>
    %cst_149 = arith.constant 1.000000e+00 : f32
    %322 = vector.broadcast %cst_149 : f32 to vector<8x128xf32>
    %323 = arith.addf %322, %321 : vector<8x128xf32>
    %324 = arith.divf %322, %323 : vector<8x128xf32>
    %c0_150 = arith.constant 0 : index
    %c0_151 = arith.constant 0 : index
    %325 = vector.load %arg10[%c0_150, %c0_151] : memref<8x128xf32, #tpu.memory_space<vmem>>, vector<8x128xf32>
    %326 = arith.mulf %316, %325 : vector<8x128xf32>
    %327 = arith.mulf %310, %318 : vector<8x128xf32>
    %328 = arith.addf %326, %327 : vector<8x128xf32>
    %329 = math.tanh %328 : vector<8x128xf32>
    %330 = arith.mulf %324, %329 : vector<8x128xf32>
    %c0_152 = arith.constant 0 : index
    %c0_153 = arith.constant 0 : index
    %331 = vector.load %arg10[%c0_152, %c0_153] : memref<8x128xf32, #tpu.memory_space<vmem>>, vector<8x128xf32>
    tpu.vector_store %arg10[%c0_152, %c0_153], %328 {strides = array<i32>} : memref<8x128xf32, #tpu.memory_space<vmem>>, vector<8x128xf32>,
    %c0_154 = arith.constant 0 : index
    %c0_155 = arith.constant 0 : index
    %332 = vector.load %arg9[%c0_154, %c0_155] : memref<8x128xf32, #tpu.memory_space<vmem>>, vector<8x128xf32>
    tpu.vector_store %arg9[%c0_154, %c0_155], %330 {strides = array<i32>} : memref<8x128xf32, #tpu.memory_space<vmem>>, vector<8x128xf32>,
    %333 = arith.truncf %330 : vector<8x128xf32> to vector<8x128xbf16>
    %c0_156 = arith.constant 0 : index
    %c0_157 = arith.constant 0 : index
    %334 = vector.load %arg11[%c0_156, %c0_157] : memref<8x128xbf16, #tpu.memory_space<vmem>>, vector<8x128xbf16>
    tpu.vector_store %arg11[%c0_156, %c0_157], %333 {strides = array<i32>} : memref<8x128xbf16, #tpu.memory_space<vmem>>, vector<8x128xbf16>,
    %335 = arith.index_cast %c7_i32 : i32 to index
    %c0_158 = arith.constant 0 : index
    %c0_159 = arith.constant 0 : index
    %336 = vector.load %arg6[%335, %c0_158, %c0_159] : memref<8x8x128xbf16, #tpu.memory_space<vmem>>, vector<1x8x128xbf16>
    %337 = vector.shape_cast %336 : vector<1x8x128xbf16> to vector<8x128xbf16>
    %338 = vector.shape_cast %333 : vector<8x128xbf16> to vector<1x8x128xbf16>
    tpu.vector_store %arg6[%335, %c0_158, %c0_159], %338 {strides = array<i32>} : memref<8x8x128xbf16, #tpu.memory_space<vmem>>, vector<1x8x128xbf16>,
    %c8_i32 = arith.constant 8 : i32
    %c0_i32_160 = arith.constant 0 : i32
    %339 = arith.cmpi eq, %arg1, %c0_i32_160 : i32
    %340 = arith.extui %339 : i1 to i32
    %c0_i32_161 = arith.constant 0 : i32
    %341 = arith.cmpi ne, %340, %c0_i32_161 : i32
    scf.if %341 {
      %c0_162 = arith.constant 0 : index
      %c0_163 = arith.constant 0 : index
      %342 = vector.load %arg9[%c0_162, %c0_163] : memref<8x128xf32, #tpu.memory_space<vmem>>, vector<8x128xf32>
      %c0_164 = arith.constant 0 : index
      %c0_165 = arith.constant 0 : index
      %343 = vector.load %arg7[%c0_164, %c0_165] : memref<8x128xf32, #tpu.memory_space<vmem>>, vector<8x128xf32>
      tpu.vector_store %arg7[%c0_164, %c0_165], %342 {strides = array<i32>} : memref<8x128xf32, #tpu.memory_space<vmem>>, vector<8x128xf32>,
      %c0_166 = arith.constant 0 : index
      %c0_167 = arith.constant 0 : index
      %344 = vector.load %arg10[%c0_166, %c0_167] : memref<8x128xf32, #tpu.memory_space<vmem>>, vector<8x128xf32>
      %c0_168 = arith.constant 0 : index
      %c0_169 = arith.constant 0 : index
      %345 = vector.load %arg8[%c0_168, %c0_169] : memref<8x128xf32, #tpu.memory_space<vmem>>, vector<8x128xf32>
      tpu.vector_store %arg8[%c0_168, %c0_169], %344 {strides = array<i32>} : memref<8x128xf32, #tpu.memory_space<vmem>>, vector<8x128xf32>,
    } else {
    }
    return
  }
  func.func @transform_0(%arg0: i32, %arg1: i32) -> (i32, i32, i32) {
    %c0_i32 = arith.constant 0 : i32
    %c0_i32_0 = arith.constant 0 : i32
    return %arg1, %arg0, %c0_i32 : i32, i32, i32
  }
  func.func @transform_1(%arg0: i32, %arg1: i32) -> (i32, i32) {
    %c0_i32 = arith.constant 0 : i32
    %c0_i32_0 = arith.constant 0 : i32
    %c0_i32_1 = arith.constant 0 : i32
    return %c0_i32, %c0_i32_0 : i32, i32
  }
  func.func @transform_2(%arg0: i32, %arg1: i32) -> (i32, i32) {
    %c0_i32 = arith.constant 0 : i32
    %c0_i32_0 = arith.constant 0 : i32
    return %arg0, %c0_i32 : i32, i32
  }
  func.func @transform_3(%arg0: i32, %arg1: i32) -> (i32, i32) {
    %c0_i32 = arith.constant 0 : i32
    %c0_i32_0 = arith.constant 0 : i32
    return %arg0, %c0_i32 : i32, i32
  }
  func.func @transform_4(%arg0: i32, %arg1: i32) -> (i32, i32, i32) {
    %c0_i32 = arith.constant 0 : i32
    %c0_i32_0 = arith.constant 0 : i32
    return %arg1, %arg0, %c0_i32 : i32, i32, i32
  }
  func.func @transform_5(%arg0: i32, %arg1: i32) -> (i32, i32) {
    %c0_i32 = arith.constant 0 : i32
    %c0_i32_0 = arith.constant 0 : i32
    return %arg0, %c0_i32 : i32, i32
  }
  func.func @transform_6(%arg0: i32, %arg1: i32) -> (i32, i32) {
    %c0_i32 = arith.constant 0 : i32
    %c0_i32_0 = arith.constant 0 : i32
    return %arg0, %c0_i32 : i32, i32
  }
}

module attributes {stable_mosaic.version = 11 : i64} {
  func.func @_matmul_bias_kernel(%arg0: i32, %arg1: i32, %arg2: memref<64x128xbf16, #tpu.memory_space<vmem>>, %arg3: memref<128x128xbf16, #tpu.memory_space<vmem>>, %arg4: memref<1x128xf32, #tpu.memory_space<vmem>>, %arg5: memref<64x128xf32, #tpu.memory_space<vmem>>) attributes {dimension_semantics = [#tpu.dimension_semantics<parallel>, #tpu.dimension_semantics<parallel>], iteration_bounds = array<i64: 1, 1>, scalar_prefetch = 0 : i64, scratch_operands = 0 : i64, tpu.core_type = #tpu.core_type<tc>, window_params = [{transform_indices = @transform_0, window_bounds = array<i64: 64, 128>}, {transform_indices = @transform_1, window_bounds = array<i64: 128, 128>}, {transform_indices = @transform_2, window_bounds = array<i64: 1, 128>}, {transform_indices = @transform_3, window_bounds = array<i64: 64, 128>}]} {
    %c0 = arith.constant 0 : index
    %c0_0 = arith.constant 0 : index
    %0 = vector.load %arg2[%c0, %c0_0] : memref<64x128xbf16, #tpu.memory_space<vmem>>, vector<64x128xbf16>
    %c0_1 = arith.constant 0 : index
    %c0_2 = arith.constant 0 : index
    %1 = vector.load %arg3[%c0_1, %c0_2] : memref<128x128xbf16, #tpu.memory_space<vmem>>, vector<128x128xbf16>
    %cst = arith.constant dense<0.000000e+00> : vector<64x128xf32>
    %2 = tpu.matmul %0, %1, %cst {dimension_numbers = #tpu.dot_dimension_numbers<[1], [0], [0], [1], [0, 0, 1, 1], [], []>} : vector<64x128xbf16>, vector<128x128xbf16>, vector<64x128xf32> -> vector<64x128xf32>
    %c0_3 = arith.constant 0 : index
    %c0_4 = arith.constant 0 : index
    %3 = vector.load %arg4[%c0_3, %c0_4] : memref<1x128xf32, #tpu.memory_space<vmem>>, vector<1x128xf32>
    %4 = vector.broadcast %3 : vector<1x128xf32> to vector<64x128xf32>
    %5 = arith.addf %2, %4 : vector<64x128xf32>
    %c0_5 = arith.constant 0 : index
    %c0_6 = arith.constant 0 : index
    %6 = vector.load %arg5[%c0_5, %c0_6] : memref<64x128xf32, #tpu.memory_space<vmem>>, vector<64x128xf32>
    tpu.vector_store %arg5[%c0_5, %c0_6], %5 {strides = array<i32>} : memref<64x128xf32, #tpu.memory_space<vmem>>, vector<64x128xf32>,
    return
  }
  func.func @transform_0(%arg0: i32, %arg1: i32) -> (i32, i32) {
    %c0_i32 = arith.constant 0 : i32
    %c0_i32_0 = arith.constant 0 : i32
    return %arg1, %c0_i32 : i32, i32
  }
  func.func @transform_1(%arg0: i32, %arg1: i32) -> (i32, i32) {
    %c0_i32 = arith.constant 0 : i32
    %c0_i32_0 = arith.constant 0 : i32
    return %c0_i32, %arg0 : i32, i32
  }
  func.func @transform_2(%arg0: i32, %arg1: i32) -> (i32, i32) {
    %c0_i32 = arith.constant 0 : i32
    %c0_i32_0 = arith.constant 0 : i32
    return %c0_i32, %arg0 : i32, i32
  }
  func.func @transform_3(%arg0: i32, %arg1: i32) -> (i32, i32) {
    %c0_i32 = arith.constant 0 : i32
    return %arg1, %arg0 : i32, i32
  }
}

</mosaic_0001>

<llo_original>
// kernel: _lambda_.7
$region0: #{_lambda_.7}
  #allocation0 [shape = 'u32[]', space=smem, size = 0x4, offset = 0x4, fixed_abs, tag = 'smem constant byte address 0x4 - core index']
  #allocation1 [shape = 'u32[144,128]{1,0:T(1,128)}', space=vmem, size = 0x12000, scoped, tag = 'internal scratch']
  %s0 = inlined_call_operand.vmem [shape: bf16[64,128], index: 0, kind: input, shape index: {}]
  %s1 = inlined_call_operand.vmem [shape: bf16[128,512], index: 1, kind: input, shape index: {}]
  %s2 = inlined_call_operand.vmem [shape: f32[1,512], index: 2, kind: input, shape index: {}]
  %s3 = inlined_call_operand.vmem [shape: bf16[64,512], index: 3, kind: output, shape index: {}]
  %s4 = sld [smem:[#allocation0]]
  $region22: #{_lambda_.7} parent=0
    _
  %s6 = ssub.s32 1, %s4
  %s7 = scalar_select 0, %s6, %s4
  // Predicated region
  $region2: #{_lambda_.7} parent=0 // pred_check
    _
  $region3: #{_lambda_.7} parent=0 // pred_check_branch
    %9 = sbr.rel (0) target = $region5
  $region4: #{_lambda_.7} parent=0 // pred_region
    _
  $region5: #{_lambda_.7} parent=0 // pred_fallthru
    _
  // Predicated region
  $region6: #{_lambda_.7} parent=0 // pred_check
    _
  $region7: #{_lambda_.7} parent=0 // pred_check_branch
    %11 = sbr.rel (0) target = $region9
  $region8: #{_lambda_.7} parent=0 // pred_region
    _
  $region9: #{_lambda_.7} parent=0 // pred_fallthru
    _
  // Predicated region
  $region10: #{_lambda_.7} parent=0 // pred_check
    _
  $region11: #{_lambda_.7} parent=0 // pred_check_branch
    %13 = sbr.rel (0) target = $region13
  $region12: #{_lambda_.7} parent=0 // pred_region
    _
  $region13: #{_lambda_.7} parent=0 // pred_fallthru
    _
  %v15 = vld [vmem:[%s0] sm:$0xf]
  %v16 = vld [vmem:[%s0 + $0x4] sm:$0xf]
  %v17 = vld [vmem:[%s0 + $0x8] sm:$0xf]
  %v18 = vld [vmem:[%s0 + $0xc] sm:$0xf]
  %v19 = vld [vmem:[%s0 + $0x10] sm:$0xf]
  %v20 = vld [vmem:[%s0 + $0x14] sm:$0xf]
  %v21 = vld [vmem:[%s0 + $0x18] sm:$0xf]
  %v22 = vld [vmem:[%s0 + $0x1c] sm:$0xf]
  %v23 = vld [vmem:[%s1] sm:$0xff]
  %v24 = vld [vmem:[%s1 + $0x8] sm:$0xff]
  %v25 = vld [vmem:[%s1 + $0x10] sm:$0xff]
  %v26 = vld [vmem:[%s1 + $0x18] sm:$0xff]
  %v27 = vld [vmem:[%s1 + $0x20] sm:$0xff]
  %v28 = vld [vmem:[%s1 + $0x28] sm:$0xff]
  %v29 = vld [vmem:[%s1 + $0x30] sm:$0xff]
  %v30 = vld [vmem:[%s1 + $0x38] sm:$0xff]
  %v31 = vld [vmem:[%s1 + $0x40] sm:$0xff]
  %v32 = vld [vmem:[%s1 + $0x48] sm:$0xff]
  %v33 = vld [vmem:[%s1 + $0x50] sm:$0xff]
  %v34 = vld [vmem:[%s1 + $0x58] sm:$0xff]
  %v35 = vld [vmem:[%s1 + $0x60] sm:$0xff]
  %v36 = vld [vmem:[%s1 + $0x68] sm:$0xff]
  %v37 = vld [vmem:[%s1 + $0x70] sm:$0xff]
  %v38 = vld [vmem:[%s1 + $0x78] sm:$0xff]
  %v39 = vld [vmem:[%s1 + $0x80] sm:$0xff]
  %v40 = vld [vmem:[%s1 + $0x88] sm:$0xff]
  %v41 = vld [vmem:[%s1 + $0x90] sm:$0xff]
  %v42 = vld [vmem:[%s1 + $0x98] sm:$0xff]
  %v43 = vld [vmem:[%s1 + $0xa0] sm:$0xff]
  %v44 = vld [vmem:[%s1 + $0xa8] sm:$0xff]
  %v45 = vld [vmem:[%s1 + $0xb0] sm:$0xff]
  %v46 = vld [vmem:[%s1 + $0xb8] sm:$0xff]
  %v47 = vld [vmem:[%s1 + $0xc0] sm:$0xff]
  %v48 = vld [vmem:[%s1 + $0xc8] sm:$0xff]
  %v49 = vld [vmem:[%s1 + $0xd0] sm:$0xff]
  %v50 = vld [vmem:[%s1 + $0xd8] sm:$0xff]
  %v51 = vld [vmem:[%s1 + $0xe0] sm:$0xff]
  %v52 = vld [vmem:[%s1 + $0xe8] sm:$0xff]
  %v53 = vld [vmem:[%s1 + $0xf0] sm:$0xff]
  %v54 = vld [vmem:[%s1 + $0xf8] sm:$0xff]
  %v55 = vld [vmem:[%s2] sm:$0xf]
  %v57 = vlaneseq
  %v58 = vshrl.u32 %v57, 7
  %v59 = vsub.s32 0, %v58
  %v60 = vrot.slane %v55, %v59
  %v61 = vlaneseq
  %v62 = vshrl.u32 %v61, 7
  %v63 = vsub.s32 1, %v62
  %v64 = vrot.slane %v55, %v63
  %v65 = vlaneseq
  %v66 = vshrl.u32 %v65, 7
  %v67 = vsub.s32 2, %v66
  %v68 = vrot.slane %v55, %v67
  %v69 = vlaneseq
  %v70 = vshrl.u32 %v69, 7
  %v71 = vsub.s32 3, %v70
  %v72 = vrot.slane %v55, %v71
  %v85 = vunpack.c.l.b16 %v15
  %v86 = vunpack.c.l.b16 %v16
  %v87 = vunpack.c.l.b16 %v17
  %v88 = vunpack.c.l.b16 %v18
  %v89 = vunpack.c.l.b16 %v19
  %v90 = vunpack.c.l.b16 %v20
  %v91 = vunpack.c.l.b16 %v21
  %v92 = vunpack.c.l.b16 %v22
  %v93 = vpack.c.b16 %v86, %v85
  %v94 = vpack.c.b16 %v88, %v87
  %v95 = vpack.c.b16 %v90, %v89
  %v96 = vpack.c.b16 %v92, %v91
  %v133 = vunpack.c.l.b16 %v23
  %v134 = vunpack.c.h.b16 %v23
  %v135 = vunpack.c.l.b16 %v24
  %v136 = vunpack.c.h.b16 %v24
  %v137 = vunpack.c.l.b16 %v25
  %v138 = vunpack.c.h.b16 %v25
  %v139 = vunpack.c.l.b16 %v26
  %v140 = vunpack.c.h.b16 %v26
  %v141 = vunpack.c.l.b16 %v27
  %v142 = vunpack.c.h.b16 %v27
  %v143 = vunpack.c.l.b16 %v28
  %v144 = vunpack.c.h.b16 %v28
  %v145 = vunpack.c.l.b16 %v29
  %v146 = vunpack.c.h.b16 %v29
  %v147 = vunpack.c.l.b16 %v30
  %v148 = vunpack.c.h.b16 %v30
  %v149 = vunpack.c.l.b16 %v31
  %v150 = vunpack.c.h.b16 %v31
  %v151 = vunpack.c.l.b16 %v32
  %v152 = vunpack.c.h.b16 %v32
  %v153 = vunpack.c.l.b16 %v33
  %v154 = vunpack.c.h.b16 %v33
  %v155 = vunpack.c.l.b16 %v34
  %v156 = vunpack.c.h.b16 %v34
  %v157 = vunpack.c.l.b16 %v35
  %v158 = vunpack.c.h.b16 %v35
  %v159 = vunpack.c.l.b16 %v36
  %v160 = vunpack.c.h.b16 %v36
  %v161 = vunpack.c.l.b16 %v37
  %v162 = vunpack.c.h.b16 %v37
  %v163 = vunpack.c.l.b16 %v38
  %v164 = vunpack.c.h.b16 %v38
  %v165 = vunpack.c.l.b16 %v39
  %v166 = vunpack.c.h.b16 %v39
  %v167 = vunpack.c.l.b16 %v40
  %v168 = vunpack.c.h.b16 %v40
  %v169 = vunpack.c.l.b16 %v41
  %v170 = vunpack.c.h.b16 %v41
  %v171 = vunpack.c.l.b16 %v42
  %v172 = vunpack.c.h.b16 %v42
  %v173 = vunpack.c.l.b16 %v43
  %v174 = vunpack.c.h.b16 %v43
  %v175 = vunpack.c.l.b16 %v44
  %v176 = vunpack.c.h.b16 %v44
  %v177 = vunpack.c.l.b16 %v45
  %v178 = vunpack.c.h.b16 %v45
  %v179 = vunpack.c.l.b16 %v46
  %v180 = vunpack.c.h.b16 %v46
  %v181 = vunpack.c.l.b16 %v47
  %v182 = vunpack.c.h.b16 %v47
  %v183 = vunpack.c.l.b16 %v48
  %v184 = vunpack.c.h.b16 %v48
  %v185 = vunpack.c.l.b16 %v49
  %v186 = vunpack.c.h.b16 %v49
  %v187 = vunpack.c.l.b16 %v50
  %v188 = vunpack.c.h.b16 %v50
  %v189 = vunpack.c.l.b16 %v51
  %v190 = vunpack.c.h.b16 %v51
  %v191 = vunpack.c.l.b16 %v52
  %v192 = vunpack.c.h.b16 %v52
  %v193 = vunpack.c.l.b16 %v53
  %v194 = vunpack.c.h.b16 %v53
  %v195 = vunpack.c.l.b16 %v54
  %v196 = vunpack.c.h.b16 %v54
  %v197 = vpack.c.b16 %v137, %v133
  %v198 = vpack.c.b16 %v138, %v134
  %v199 = vpack.c.b16 %v139, %v135
  %v200 = vpack.c.b16 %v140, %v136
  %v201 = vpack.c.b16 %v145, %v141
  %v202 = vpack.c.b16 %v146, %v142
  %v203 = vpack.c.b16 %v147, %v143
  %v204 = vpack.c.b16 %v148, %v144
  %v205 = vpack.c.b16 %v153, %v149
  %v206 = vpack.c.b16 %v154, %v150
  %v207 = vpack.c.b16 %v155, %v151
  %v208 = vpack.c.b16 %v156, %v152
  %v209 = vpack.c.b16 %v161, %v157
  %v210 = vpack.c.b16 %v162, %v158
  %v211 = vpack.c.b16 %v163, %v159
  %v212 = vpack.c.b16 %v164, %v160
  %v213 = vpack.c.b16 %v169, %v165
  %v214 = vpack.c.b16 %v170, %v166
  %v215 = vpack.c.b16 %v171, %v167
  %v216 = vpack.c.b16 %v172, %v168
  %v217 = vpack.c.b16 %v177, %v173
  %v218 = vpack.c.b16 %v178, %v174
  %v219 = vpack.c.b16 %v179, %v175
  %v220 = vpack.c.b16 %v180, %v176
  %v221 = vpack.c.b16 %v185, %v181
  %v222 = vpack.c.b16 %v186, %v182
  %v223 = vpack.c.b16 %v187, %v183
  %v224 = vpack.c.b16 %v188, %v184
  %v225 = vpack.c.b16 %v193, %v189
  %v226 = vpack.c.b16 %v194, %v190
  %v227 = vpack.c.b16 %v195, %v191
  %v228 = vpack.c.b16 %v196, %v192
  %261 = vmatprep.subr.bf16.mxu0 %v198
  %262 = vmatpush1.bf16.msra.mxu0 %v197
  %263 = vmatprep.subr.bf16.mxu0 %v202
  %264 = vmatpush1.bf16.msra.mxu0 %v201
  %265 = vmatprep.subr.bf16.mxu0 %v206
  %266 = vmatpush1.bf16.msra.mxu0 %v205
  %267 = vmatprep.subr.bf16.mxu0 %v210
  %268 = vmatpush1.bf16.msra.mxu0 %v209
  %269 = vmatprep.subr.bf16.mxu0 %v214
  %270 = vmatpush1.bf16.msra.mxu0 %v213
  %271 = vmatprep.subr.bf16.mxu0 %v218
  %272 = vmatpush1.bf16.msra.mxu0 %v217
  %273 = vmatprep.subr.bf16.mxu0 %v222
  %274 = vmatpush1.bf16.msra.mxu0 %v221
  %275 = vmatprep.subr.bf16.mxu0 %v226
  %276 = vmatpush1.bf16.msra.mxu0 %v225
  %277 = vmatprep.subr.bf16.mxu0 0
  %278 = vmatpush1.bf16.msra.mxu0 0
  %279 = vmatprep.subr.bf16.mxu0 0
  %280 = vmatpush1.bf16.msra.mxu0 0
  %281 = vmatprep.subr.bf16.mxu0 0
  %282 = vmatpush1.bf16.msra.mxu0 0
  %283 = vmatprep.subr.bf16.mxu0 0
  %284 = vmatpush1.bf16.msra.mxu0 0
  %285 = vmatprep.subr.bf16.mxu0 0
  %286 = vmatpush1.bf16.msra.mxu0 0
  %287 = vmatprep.subr.bf16.mxu0 0
  %288 = vmatpush1.bf16.msra.mxu0 0
  %289 = vmatprep.subr.bf16.mxu0 0
  %290 = vmatpush1.bf16.msra.mxu0 0
  %291 = vmatprep.subr.bf16.mxu0 0
  %292 = vmatpush1.bf16.msra.mxu0 0
  %293 = vmatprep.mubr.bf16.mxu0 0
  %294 = vmatmul.mubr.bf16.gmra.mrb[0].mxu0 %v93
  %v295 = vpop.f32.mrb[0].mxu0
  %v296 = vadd.f32 %v60, %v295
  %v297 = vpop.f32.mrb[0].mxu0
  %v298 = vadd.f32 %v64, %v297
  %v299 = vpop.f32.mrb[0].mxu0
  %v300 = vadd.f32 %v60, %v299
  %v301 = vpop.f32.mrb[0].mxu0
  %v302 = vadd.f32 %v64, %v301
  %303 = vmatprep.mubr.bf16.mxu0 0
  %304 = vmatmul.mubr.bf16.gmra.mrb[0].mxu0 %v94
  %v305 = vpop.f32.mrb[0].mxu0
  %v306 = vadd.f32 %v60, %v305
  %v307 = vpop.f32.mrb[0].mxu0
  %v308 = vadd.f32 %v64, %v307
  %v309 = vpop.f32.mrb[0].mxu0
  %v310 = vadd.f32 %v60, %v309
  %v311 = vpop.f32.mrb[0].mxu0
  %v312 = vadd.f32 %v64, %v311
  %313 = vmatprep.mubr.bf16.mxu0 0
  %314 = vmatmul.mubr.bf16.gmra.mrb[0].mxu0 %v95
  %v315 = vpop.f32.mrb[0].mxu0
  %v316 = vadd.f32 %v60, %v315
  %v317 = vpop.f32.mrb[0].mxu0
  %v318 = vadd.f32 %v64, %v317
  %v319 = vpop.f32.mrb[0].mxu0
  %v320 = vadd.f32 %v60, %v319
  %v321 = vpop.f32.mrb[0].mxu0
  %v322 = vadd.f32 %v64, %v321
  %323 = vmatprep.mubr.bf16.mxu0 0
  %324 = vmatmul.mubr.bf16.gmra.mrb[0].mxu0 %v96
  %v325 = vpop.f32.mrb[0].mxu0
  %v326 = vadd.f32 %v60, %v325
  %v327 = vpop.f32.mrb[0].mxu0
  %v328 = vadd.f32 %v64, %v327
  %v329 = vpop.f32.mrb[0].mxu0
  %v330 = vadd.f32 %v60, %v329
  %v331 = vpop.f32.mrb[0].mxu0
  %v332 = vadd.f32 %v64, %v331
  %333 = vdwg.mxu0
  %334 = vmatprep.subr.bf16.mxu0 %v200
  %335 = vmatpush1.bf16.msra.mxu0 %v199
  %336 = vmatprep.subr.bf16.mxu0 %v204
  %337 = vmatpush1.bf16.msra.mxu0 %v203
  %338 = vmatprep.subr.bf16.mxu0 %v208
  %339 = vmatpush1.bf16.msra.mxu0 %v207
  %340 = vmatprep.subr.bf16.mxu0 %v212
  %341 = vmatpush1.bf16.msra.mxu0 %v211
  %342 = vmatprep.subr.bf16.mxu0 %v216
  %343 = vmatpush1.bf16.msra.mxu0 %v215
  %344 = vmatprep.subr.bf16.mxu0 %v220
  %345 = vmatpush1.bf16.msra.mxu0 %v219
  %346 = vmatprep.subr.bf16.mxu0 %v224
  %347 = vmatpush1.bf16.msra.mxu0 %v223
  %348 = vmatprep.subr.bf16.mxu0 %v228
  %349 = vmatpush1.bf16.msra.mxu0 %v227
  %350 = vmatprep.subr.bf16.mxu0 0
  %351 = vmatpush1.bf16.msra.mxu0 0
  %352 = vmatprep.subr.bf16.mxu0 0
  %353 = vmatpush1.bf16.msra.mxu0 0
  %354 = vmatprep.subr.bf16.mxu0 0
  %355 = vmatpush1.bf16.msra.mxu0 0
  %356 = vmatprep.subr.bf16.mxu0 0
  %357 = vmatpush1.bf16.msra.mxu0 0
  %358 = vmatprep.subr.bf16.mxu0 0
  %359 = vmatpush1.bf16.msra.mxu0 0
  %360 = vmatprep.subr.bf16.mxu0 0
  %361 = vmatpush1.bf16.msra.mxu0 0
  %362 = vmatprep.subr.bf16.mxu0 0
  %363 = vmatpush1.bf16.msra.mxu0 0
  %364 = vmatprep.subr.bf16.mxu0 0
  %365 = vmatpush1.bf16.msra.mxu0 0
  %366 = vmatprep.mubr.bf16.mxu0 0
  %367 = vmatmul.mubr.bf16.gmra.mrb[0].mxu0 %v93
  %v368 = vpop.f32.mrb[0].mxu0
  %v369 = vadd.f32 %v68, %v368
  %v370 = vpop.f32.mrb[0].mxu0
  %v371 = vadd.f32 %v72, %v370
  %v372 = vpop.f32.mrb[0].mxu0
  %v373 = vadd.f32 %v68, %v372
  %v374 = vpop.f32.mrb[0].mxu0
  %v375 = vadd.f32 %v72, %v374
  %376 = vmatprep.mubr.bf16.mxu0 0
  %377 = vmatmul.mubr.bf16.gmra.mrb[0].mxu0 %v94
  %v378 = vpop.f32.mrb[0].mxu0
  %v379 = vadd.f32 %v68, %v378
  %v380 = vpop.f32.mrb[0].mxu0
  %v381 = vadd.f32 %v72, %v380
  %v382 = vpop.f32.mrb[0].mxu0
  %v383 = vadd.f32 %v68, %v382
  %v384 = vpop.f32.mrb[0].mxu0
  %v385 = vadd.f32 %v72, %v384
  %386 = vmatprep.mubr.bf16.mxu0 0
  %387 = vmatmul.mubr.bf16.gmra.mrb[0].mxu0 %v95
  %v388 = vpop.f32.mrb[0].mxu0
  %v389 = vadd.f32 %v68, %v388
  %v390 = vpop.f32.mrb[0].mxu0
  %v391 = vadd.f32 %v72, %v390
  %v392 = vpop.f32.mrb[0].mxu0
  %v393 = vadd.f32 %v68, %v392
  %v394 = vpop.f32.mrb[0].mxu0
  %v395 = vadd.f32 %v72, %v394
  %396 = vmatprep.mubr.bf16.mxu0 0
  %397 = vmatmul.mubr.bf16.gmra.mrb[0].mxu0 %v96
  %v398 = vpop.f32.mrb[0].mxu0
  %v399 = vadd.f32 %v68, %v398
  %v400 = vpop.f32.mrb[0].mxu0
  %v401 = vadd.f32 %v72, %v400
  %v402 = vpop.f32.mrb[0].mxu0
  %v403 = vadd.f32 %v68, %v402
  %v404 = vpop.f32.mrb[0].mxu0
  %v405 = vadd.f32 %v72, %v404
  %406 = vdwg.mxu0
  %v407 = vpack.c.bf16 %v300, %v296
  %v408 = vpack.c.bf16 %v302, %v298
  %v409 = vpack.c.bf16 %v373, %v369
  %v410 = vpack.c.bf16 %v375, %v371
  %v411 = vpack.c.bf16 %v310, %v306
  %v412 = vpack.c.bf16 %v312, %v308
  %v413 = vpack.c.bf16 %v383, %v379
  %v414 = vpack.c.bf16 %v385, %v381
  %v415 = vpack.c.bf16 %v320, %v316
  %v416 = vpack.c.bf16 %v322, %v318
  %v417 = vpack.c.bf16 %v393, %v389
  %v418 = vpack.c.bf16 %v395, %v391
  %v419 = vpack.c.bf16 %v330, %v326
  %v420 = vpack.c.bf16 %v332, %v328
  %v421 = vpack.c.bf16 %v403, %v399
  %v422 = vpack.c.bf16 %v405, %v401
  %v439 = vunpack.c.l.b16 %v407
  %v440 = vunpack.c.l.b16 %v408
  %v441 = vunpack.c.l.b16 %v409
  %v442 = vunpack.c.l.b16 %v410
  %v443 = vunpack.c.h.b16 %v407
  %v444 = vunpack.c.h.b16 %v408
  %v445 = vunpack.c.h.b16 %v409
  %v446 = vunpack.c.h.b16 %v410
  %v447 = vunpack.c.l.b16 %v411
  %v448 = vunpack.c.l.b16 %v412
  %v449 = vunpack.c.l.b16 %v413
  %v450 = vunpack.c.l.b16 %v414
  %v451 = vunpack.c.h.b16 %v411
  %v452 = vunpack.c.h.b16 %v412
  %v453 = vunpack.c.h.b16 %v413
  %v454 = vunpack.c.h.b16 %v414
  %v455 = vunpack.c.l.b16 %v415
  %v456 = vunpack.c.l.b16 %v416
  %v457 = vunpack.c.l.b16 %v417
  %v458 = vunpack.c.l.b16 %v418
  %v459 = vunpack.c.h.b16 %v415
  %v460 = vunpack.c.h.b16 %v416
  %v461 = vunpack.c.h.b16 %v417
  %v462 = vunpack.c.h.b16 %v418
  %v463 = vunpack.c.l.b16 %v419
  %v464 = vunpack.c.l.b16 %v420
  %v465 = vunpack.c.l.b16 %v421
  %v466 = vunpack.c.l.b16 %v422
  %v467 = vunpack.c.h.b16 %v419
  %v468 = vunpack.c.h.b16 %v420
  %v469 = vunpack.c.h.b16 %v421
  %v470 = vunpack.c.h.b16 %v422
  %v471 = vpack.c.b16 %v440, %v439
  %v472 = vpack.c.b16 %v442, %v441
  %v473 = vpack.c.b16 %v444, %v443
  %v474 = vpack.c.b16 %v446, %v445
  %v475 = vpack.c.b16 %v448, %v447
  %v476 = vpack.c.b16 %v450, %v449
  %v477 = vpack.c.b16 %v452, %v451
  %v478 = vpack.c.b16 %v454, %v453
  %v479 = vpack.c.b16 %v456, %v455
  %v480 = vpack.c.b16 %v458, %v457
  %v481 = vpack.c.b16 %v460, %v459
  %v482 = vpack.c.b16 %v462, %v461
  %v483 = vpack.c.b16 %v464, %v463
  %v484 = vpack.c.b16 %v466, %v465
  %v485 = vpack.c.b16 %v468, %v467
  %v486 = vpack.c.b16 %v470, %v469
  %503 = vst [vmem:[%s3] sm:$0xff] %v471
  %504 = vst [vmem:[%s3 + $0x8] sm:$0xff] %v472
  %505 = vst [vmem:[%s3 + $0x10] sm:$0xff] %v473
  %506 = vst [vmem:[%s3 + $0x18] sm:$0xff] %v474
  %507 = vst [vmem:[%s3 + $0x20] sm:$0xff] %v475
  %508 = vst [vmem:[%s3 + $0x28] sm:$0xff] %v476
  %509 = vst [vmem:[%s3 + $0x30] sm:$0xff] %v477
  %510 = vst [vmem:[%s3 + $0x38] sm:$0xff] %v478
  %511 = vst [vmem:[%s3 + $0x40] sm:$0xff] %v479
  %512 = vst [vmem:[%s3 + $0x48] sm:$0xff] %v480
  %513 = vst [vmem:[%s3 + $0x50] sm:$0xff] %v481
  %514 = vst [vmem:[%s3 + $0x58] sm:$0xff] %v482
  %515 = vst [vmem:[%s3 + $0x60] sm:$0xff] %v483
  %516 = vst [vmem:[%s3 + $0x68] sm:$0xff] %v484
  %517 = vst [vmem:[%s3 + $0x70] sm:$0xff] %v485
  %518 = vst [vmem:[%s3 + $0x78] sm:$0xff] %v486
  // Predicated region
  $region14: #{_lambda_.7} parent=0 // pred_check
    _
  $region15: #{_lambda_.7} parent=0 // pred_check_branch
    %520 = sbr.rel (0) target = $region17
  $region16: #{_lambda_.7} parent=0 // pred_region
    _
  $region17: #{_lambda_.7} parent=0 // pred_fallthru
    _
  // Predicated region
  $region18: #{_lambda_.7} parent=0 // pred_check
    _
  $region19: #{_lambda_.7} parent=0 // pred_check_branch
    %522 = sbr.rel (0) target = $region21
  $region20: #{_lambda_.7} parent=0 // pred_region
    _
  $region21: #{_lambda_.7} parent=0 // pred_fallthru
    _

// kernel: _lambda_.13
$region0: #{_lambda_.13}
  #allocation0 [shape = 'u32[]', space=smem, size = 0x4, offset = 0x4, fixed_abs, tag = 'smem constant byte address 0x4 - core index']
  #allocation1 [shape = 'u32[144,128]{1,0:T(1,128)}', space=vmem, size = 0x12000, scoped, tag = 'internal scratch']
  %s0 = inlined_call_operand.vmem [shape: bf16[64,128], index: 0, kind: input, shape index: {}]
  %s1 = inlined_call_operand.vmem [shape: bf16[128,128], index: 1, kind: input, shape index: {}]
  %s2 = inlined_call_operand.vmem [shape: f32[1,128], index: 2, kind: input, shape index: {}]
  %s3 = inlined_call_operand.vmem [shape: f32[64,128], index: 3, kind: output, shape index: {}]
  %s4 = sld [smem:[#allocation0]]
  $region22: #{_lambda_.13} parent=0
    _
  %s6 = ssub.s32 1, %s4
  %s7 = scalar_select 0, %s6, %s4
  // Predicated region
  $region2: #{_lambda_.13} parent=0 // pred_check
    _
  $region3: #{_lambda_.13} parent=0 // pred_check_branch
    %9 = sbr.rel (0) target = $region5
  $region4: #{_lambda_.13} parent=0 // pred_region
    _
  $region5: #{_lambda_.13} parent=0 // pred_fallthru
    _
  // Predicated region
  $region6: #{_lambda_.13} parent=0 // pred_check
    _
  $region7: #{_lambda_.13} parent=0 // pred_check_branch
    %11 = sbr.rel (0) target = $region9
  $region8: #{_lambda_.13} parent=0 // pred_region
    _
  $region9: #{_lambda_.13} parent=0 // pred_fallthru
    _
  // Predicated region
  $region10: #{_lambda_.13} parent=0 // pred_check
    _
  $region11: #{_lambda_.13} parent=0 // pred_check_branch
    %13 = sbr.rel (0) target = $region13
  $region12: #{_lambda_.13} parent=0 // pred_region
    _
  $region13: #{_lambda_.13} parent=0 // pred_fallthru
    _
  %v15 = vld [vmem:[%s0] sm:$0xf]
  %v16 = vld [vmem:[%s0 + $0x4] sm:$0xf]
  %v17 = vld [vmem:[%s0 + $0x8] sm:$0xf]
  %v18 = vld [vmem:[%s0 + $0xc] sm:$0xf]
  %v19 = vld [vmem:[%s0 + $0x10] sm:$0xf]
  %v20 = vld [vmem:[%s0 + $0x14] sm:$0xf]
  %v21 = vld [vmem:[%s0 + $0x18] sm:$0xf]
  %v22 = vld [vmem:[%s0 + $0x1c] sm:$0xf]
  %v23 = vld [vmem:[%s1] sm:$0xf]
  %v24 = vld [vmem:[%s1 + $0x4] sm:$0xf]
  %v25 = vld [vmem:[%s1 + $0x8] sm:$0xf]
  %v26 = vld [vmem:[%s1 + $0xc] sm:$0xf]
  %v27 = vld [vmem:[%s1 + $0x10] sm:$0xf]
  %v28 = vld [vmem:[%s1 + $0x14] sm:$0xf]
  %v29 = vld [vmem:[%s1 + $0x18] sm:$0xf]
  %v30 = vld [vmem:[%s1 + $0x1c] sm:$0xf]
  %v31 = vld [vmem:[%s1 + $0x20] sm:$0xf]
  %v32 = vld [vmem:[%s1 + $0x24] sm:$0xf]
  %v33 = vld [vmem:[%s1 + $0x28] sm:$0xf]
  %v34 = vld [vmem:[%s1 + $0x2c] sm:$0xf]
  %v35 = vld [vmem:[%s1 + $0x30] sm:$0xf]
  %v36 = vld [vmem:[%s1 + $0x34] sm:$0xf]
  %v37 = vld [vmem:[%s1 + $0x38] sm:$0xf]
  %v38 = vld [vmem:[%s1 + $0x3c] sm:$0xf]
  %v39 = vld [vmem:[%s2] sm:$0x1]
  %v41 = vlaneseq
  %v42 = vshrl.u32 %v41, 7
  %v43 = vsub.s32 0, %v42
  %v44 = vrot.slane %v39, %v43
  %v54 = vunpack.c.l.b16 %v15
  %v55 = vunpack.c.l.b16 %v16
  %v56 = vunpack.c.l.b16 %v17
  %v57 = vunpack.c.l.b16 %v18
  %v58 = vunpack.c.l.b16 %v19
  %v59 = vunpack.c.l.b16 %v20
  %v60 = vunpack.c.l.b16 %v21
  %v61 = vunpack.c.l.b16 %v22
  %v62 = vpack.c.b16 %v55, %v54
  %v63 = vpack.c.b16 %v57, %v56
  %v64 = vpack.c.b16 %v59, %v58
  %v65 = vpack.c.b16 %v61, %v60
  %v86 = vunpack.c.l.b16 %v23
  %v87 = vunpack.c.l.b16 %v24
  %v88 = vunpack.c.l.b16 %v25
  %v89 = vunpack.c.l.b16 %v26
  %v90 = vunpack.c.l.b16 %v27
  %v91 = vunpack.c.l.b16 %v28
  %v92 = vunpack.c.l.b16 %v29
  %v93 = vunpack.c.l.b16 %v30
  %v94 = vunpack.c.l.b16 %v31
  %v95 = vunpack.c.l.b16 %v32
  %v96 = vunpack.c.l.b16 %v33
  %v97 = vunpack.c.l.b16 %v34
  %v98 = vunpack.c.l.b16 %v35
  %v99 = vunpack.c.l.b16 %v36
  %v100 = vunpack.c.l.b16 %v37
  %v101 = vunpack.c.l.b16 %v38
  %v102 = vpack.c.b16 %v87, %v86
  %v103 = vpack.c.b16 %v89, %v88
  %v104 = vpack.c.b16 %v91, %v90
  %v105 = vpack.c.b16 %v93, %v92
  %v106 = vpack.c.b16 %v95, %v94
  %v107 = vpack.c.b16 %v97, %v96
  %v108 = vpack.c.b16 %v99, %v98
  %v109 = vpack.c.b16 %v101, %v100
  %118 = vmatprep.subr.bf16.mxu0 0
  %119 = vmatpush1.bf16.msra.mxu0 %v102
  %120 = vmatprep.subr.bf16.mxu0 0
  %121 = vmatpush1.bf16.msra.mxu0 %v103
  %122 = vmatprep.subr.bf16.mxu0 0
  %123 = vmatpush1.bf16.msra.mxu0 %v104
  %124 = vmatprep.subr.bf16.mxu0 0
  %125 = vmatpush1.bf16.msra.mxu0 %v105
  %126 = vmatprep.subr.bf16.mxu0 0
  %127 = vmatpush1.bf16.msra.mxu0 %v106
  %128 = vmatprep.subr.bf16.mxu0 0
  %129 = vmatpush1.bf16.msra.mxu0 %v107
  %130 = vmatprep.subr.bf16.mxu0 0
  %131 = vmatpush1.bf16.msra.mxu0 %v108
  %132 = vmatprep.subr.bf16.mxu0 0
  %133 = vmatpush1.bf16.msra.mxu0 %v109
  %134 = vmatprep.subr.bf16.mxu0 0
  %135 = vmatpush1.bf16.msra.mxu0 0
  %136 = vmatprep.subr.bf16.mxu0 0
  %137 = vmatpush1.bf16.msra.mxu0 0
  %138 = vmatprep.subr.bf16.mxu0 0
  %139 = vmatpush1.bf16.msra.mxu0 0
  %140 = vmatprep.subr.bf16.mxu0 0
  %141 = vmatpush1.bf16.msra.mxu0 0
  %142 = vmatprep.subr.bf16.mxu0 0
  %143 = vmatpush1.bf16.msra.mxu0 0
  %144 = vmatprep.subr.bf16.mxu0 0
  %145 = vmatpush1.bf16.msra.mxu0 0
  %146 = vmatprep.subr.bf16.mxu0 0
  %147 = vmatpush1.bf16.msra.mxu0 0
  %148 = vmatprep.subr.bf16.mxu0 0
  %149 = vmatpush1.bf16.msra.mxu0 0
  %150 = vmatprep.mubr.bf16.mxu0 0
  %151 = vmatmul.mubr.bf16.gmra.mrb[0].mxu0 %v62
  %v152 = vpop.f32.mrb[0].mxu0
  %v153 = vadd.f32 %v44, %v152
  %v154 = vpop.f32.mrb[0].mxu0
  %v155 = vpop.f32.mrb[0].mxu0
  %v156 = vadd.f32 %v44, %v155
  %v157 = vpop.f32.mrb[0].mxu0
  %158 = vmatprep.mubr.bf16.mxu0 0
  %159 = vmatmul.mubr.bf16.gmra.mrb[0].mxu0 %v63
  %v160 = vpop.f32.mrb[0].mxu0
  %v161 = vadd.f32 %v44, %v160
  %v162 = vpop.f32.mrb[0].mxu0
  %v163 = vpop.f32.mrb[0].mxu0
  %v164 = vadd.f32 %v44, %v163
  %v165 = vpop.f32.mrb[0].mxu0
  %166 = vmatprep.mubr.bf16.mxu0 0
  %167 = vmatmul.mubr.bf16.gmra.mrb[0].mxu0 %v64
  %v168 = vpop.f32.mrb[0].mxu0
  %v169 = vadd.f32 %v44, %v168
  %v170 = vpop.f32.mrb[0].mxu0
  %v171 = vpop.f32.mrb[0].mxu0
  %v172 = vadd.f32 %v44, %v171
  %v173 = vpop.f32.mrb[0].mxu0
  %174 = vmatprep.mubr.bf16.mxu0 0
  %175 = vmatmul.mubr.bf16.gmra.mrb[0].mxu0 %v65
  %v176 = vpop.f32.mrb[0].mxu0
  %v177 = vadd.f32 %v44, %v176
  %v178 = vpop.f32.mrb[0].mxu0
  %v179 = vpop.f32.mrb[0].mxu0
  %v180 = vadd.f32 %v44, %v179
  %v181 = vpop.f32.mrb[0].mxu0
  %182 = vdwg.mxu0
  %183 = vst [vmem:[%s3] sm:$0xff] %v153
  %184 = vst [vmem:[%s3 + $0x8] sm:$0xff] %v156
  %185 = vst [vmem:[%s3 + $0x10] sm:$0xff] %v161
  %186 = vst [vmem:[%s3 + $0x18] sm:$0xff] %v164
  %187 = vst [vmem:[%s3 + $0x20] sm:$0xff] %v169
  %188 = vst [vmem:[%s3 + $0x28] sm:$0xff] %v172
  %189 = vst [vmem:[%s3 + $0x30] sm:$0xff] %v177
  %190 = vst [vmem:[%s3 + $0x38] sm:$0xff] %v180
  // Predicated region
  $region14: #{_lambda_.13} parent=0 // pred_check
    _
  $region15: #{_lambda_.13} parent=0 // pred_check_branch
    %192 = sbr.rel (0) target = $region17
  $region16: #{_lambda_.13} parent=0 // pred_region
    _
  $region17: #{_lambda_.13} parent=0 // pred_fallthru
    _
  // Predicated region
  $region18: #{_lambda_.13} parent=0 // pred_check
    _
  $region19: #{_lambda_.13} parent=0 // pred_check_branch
    %194 = sbr.rel (0) target = $region21
  $region20: #{_lambda_.13} parent=0 // pred_region
    _
  $region21: #{_lambda_.13} parent=0 // pred_fallthru
    _

// kernel: _lambda_.8
$region0: #{_lambda_.8}
  #allocation0 [shape = 'u32[]', space=smem, size = 0x4, offset = 0x4, fixed_abs, tag = 'smem constant byte address 0x4 - core index']
  #allocation1 [shape = 'u32[144,128]{1,0:T(1,128)}', space=vmem, size = 0x12000, scoped, tag = 'internal scratch']
  #allocation2 [shape = 'f32[8,128]{1,0:T(8,128)}', space=vmem, size = 0x1000, scoped, tag = 'scratch operand']
  #allocation3 [shape = 'f32[8,128]{1,0:T(8,128)}', space=vmem, size = 0x1000, scoped, tag = 'scratch operand']
  #allocation4 [shape = 'bf16[8,128]{1,0:T(8,128)(2,1)}', space=vmem, size = 0x800, scoped, tag = 'scratch operand']
  %s0 = inlined_call_operand.vmem [shape: bf16[8,8,512], index: 0, kind: input, shape index: {}]
  %s1 = inlined_call_operand.vmem [shape: bf16[128,512], index: 1, kind: input, shape index: {}]
  %s2 = inlined_call_operand.vmem [shape: f32[8,128], index: 2, kind: input, shape index: {}, may-alias: {2,3}]
  %s3 = inlined_call_operand.vmem [shape: f32[8,128], index: 3, kind: input, shape index: {}, may-alias: {2,3}]
  %s4 = inlined_call_operand.vmem [shape: bf16[8,8,128], index: 4, kind: output, shape index: {0}]
  %s5 = inlined_call_operand.vmem [shape: f32[8,128], index: 5, kind: output, shape index: {1}]
  %s6 = inlined_call_operand.vmem [shape: f32[8,128], index: 6, kind: output, shape index: {2}]
  %7 = xla_tuple %s4, %s5, %s6
  %s8 = sld [smem:[#allocation0]]
  $region50: #{_lambda_.8} parent=0
    _
  %s10 = ssub.s32 1, %s8
  %s11 = scalar_select 0, %s10, %s8
  // Predicated region
  $region2: #{_lambda_.8} parent=0 // pred_check
    _
  $region3: #{_lambda_.8} parent=0 // pred_check_branch
    %13 = sbr.rel (0) target = $region5
  $region4: #{_lambda_.8} parent=0 // pred_region
    _
  $region5: #{_lambda_.8} parent=0 // pred_fallthru
    _
  // Predicated region
  $region6: #{_lambda_.8} parent=0 // pred_check
    _
  $region7: #{_lambda_.8} parent=0 // pred_check_branch
    %15 = sbr.rel (0) target = $region9
  $region8: #{_lambda_.8} parent=0 // pred_region
    _
  $region9: #{_lambda_.8} parent=0 // pred_fallthru
    _
  // Predicated region
  $region10: #{_lambda_.8} parent=0 // pred_check
    _
  $region11: #{_lambda_.8} parent=0 // pred_check_branch
    %17 = sbr.rel (0) target = $region13
  $region12: #{_lambda_.8} parent=0 // pred_region
    _
  $region13: #{_lambda_.8} parent=0 // pred_fallthru
    _
  // Predicated region
  $region14: #{_lambda_.8} parent=0 // pred_check
    _
  $region15: #{_lambda_.8} parent=0 // pred_check_branch
    %19 = sbr.rel (0) target = $region17
  $region16: #{_lambda_.8} parent=0 // pred_region
    _
  $region17: #{_lambda_.8} parent=0 // pred_fallthru
    _
  %p21 = scmp.eq.s32.totalorder 0, 0
  // Predicated region
  $region18: #{_lambda_.8} parent=0 // pred_check
    %p22 = pneg %p21
  $region19: #{_lambda_.8} parent=0 // pred_check_branch
    %24 = sbr.rel (%p22) target = $region21
  $region20: #{_lambda_.8} parent=0 // pred_region
    %v25 = vld [vmem:[%s2] sm:$0xff]
    %26 = vst [vmem:[#allocation2] sm:$0xff] %v25
    %v27 = vld [vmem:[%s3] sm:$0xff]
    %28 = vst [vmem:[#allocation3] sm:$0xff] %v27
    %v29 = vld [vmem:[%s2] sm:$0xff]
    %v30 = vpack.c.bf16 %v29, %v29
    %31 = vst [vmem:[#allocation4] sm:$0xf] %v30
  $region21: #{_lambda_.8} parent=0 // pred_fallthru
    _
  %v32 = vld [vmem:[#allocation4] sm:$0xf]
  %v33 = vld [vmem:[%s1] sm:$0xff]
  %v34 = vld [vmem:[%s1 + $0x8] sm:$0xff]
  %v35 = vld [vmem:[%s1 + $0x10] sm:$0xff]
  %v36 = vld [vmem:[%s1 + $0x18] sm:$0xff]
  %v37 = vld [vmem:[%s1 + $0x20] sm:$0xff]
  %v38 = vld [vmem:[%s1 + $0x28] sm:$0xff]
  %v39 = vld [vmem:[%s1 + $0x30] sm:$0xff]
  %v40 = vld [vmem:[%s1 + $0x38] sm:$0xff]
  %v41 = vld [vmem:[%s1 + $0x40] sm:$0xff]
  %v42 = vld [vmem:[%s1 + $0x48] sm:$0xff]
  %v43 = vld [vmem:[%s1 + $0x50] sm:$0xff]
  %v44 = vld [vmem:[%s1 + $0x58] sm:$0xff]
  %v45 = vld [vmem:[%s1 + $0x60] sm:$0xff]
  %v46 = vld [vmem:[%s1 + $0x68] sm:$0xff]
  %v47 = vld [vmem:[%s1 + $0x70] sm:$0xff]
  %v48 = vld [vmem:[%s1 + $0x78] sm:$0xff]
  %v49 = vld [vmem:[%s1 + $0x80] sm:$0xff]
  %v50 = vld [vmem:[%s1 + $0x88] sm:$0xff]
  %v51 = vld [vmem:[%s1 + $0x90] sm:$0xff]
  %v52 = vld [vmem:[%s1 + $0x98] sm:$0xff]
  %v53 = vld [vmem:[%s1 + $0xa0] sm:$0xff]
  %v54 = vld [vmem:[%s1 + $0xa8] sm:$0xff]
  %v55 = vld [vmem:[%s1 + $0xb0] sm:$0xff]
  %v56 = vld [vmem:[%s1 + $0xb8] sm:$0xff]
  %v57 = vld [vmem:[%s1 + $0xc0] sm:$0xff]
  %v58 = vld [vmem:[%s1 + $0xc8] sm:$0xff]
  %v59 = vld [vmem:[%s1 + $0xd0] sm:$0xff]
  %v60 = vld [vmem:[%s1 + $0xd8] sm:$0xff]
  %v61 = vld [vmem:[%s1 + $0xe0] sm:$0xff]
  %v62 = vld [vmem:[%s1 + $0xe8] sm:$0xff]
  %v63 = vld [vmem:[%s1 + $0xf0] sm:$0xff]
  %v64 = vld [vmem:[%s1 + $0xf8] sm:$0xff]
  %v65 = vld [vmem:[%s0] sm:$0xff]
  %v66 = vld [vmem:[%s0 + $0x8] sm:$0xff]
  %v67 = vunpack.c.l.bf16 %v65
  %v68 = vunpack.c.h.bf16 %v65
  %v69 = vunpack.c.l.bf16 %v66
  %v70 = vunpack.c.h.bf16 %v66
  %v103 = vunpack.c.l.b16 %v33
  %v104 = vunpack.c.h.b16 %v33
  %v105 = vunpack.c.l.b16 %v34
  %v106 = vunpack.c.h.b16 %v34
  %v107 = vunpack.c.l.b16 %v35
  %v108 = vunpack.c.h.b16 %v35
  %v109 = vunpack.c.l.b16 %v36
  %v110 = vunpack.c.h.b16 %v36
  %v111 = vunpack.c.l.b16 %v37
  %v112 = vunpack.c.h.b16 %v37
  %v113 = vunpack.c.l.b16 %v38
  %v114 = vunpack.c.h.b16 %v38
  %v115 = vunpack.c.l.b16 %v39
  %v116 = vunpack.c.h.b16 %v39
  %v117 = vunpack.c.l.b16 %v40
  %v118 = vunpack.c.h.b16 %v40
  %v119 = vunpack.c.l.b16 %v41
  %v120 = vunpack.c.h.b16 %v41
  %v121 = vunpack.c.l.b16 %v42
  %v122 = vunpack.c.h.b16 %v42
  %v123 = vunpack.c.l.b16 %v43
  %v124 = vunpack.c.h.b16 %v43
  %v125 = vunpack.c.l.b16 %v44
  %v126 = vunpack.c.h.b16 %v44
  %v127 = vunpack.c.l.b16 %v45
  %v128 = vunpack.c.h.b16 %v45
  %v129 = vunpack.c.l.b16 %v46
  %v130 = vunpack.c.h.b16 %v46
  %v131 = vunpack.c.l.b16 %v47
  %v132 = vunpack.c.h.b16 %v47
  %v133 = vunpack.c.l.b16 %v48
  %v134 = vunpack.c.h.b16 %v48
  %v135 = vunpack.c.l.b16 %v49
  %v136 = vunpack.c.h.b16 %v49
  %v137 = vunpack.c.l.b16 %v50
  %v138 = vunpack.c.h.b16 %v50
  %v139 = vunpack.c.l.b16 %v51
  %v140 = vunpack.c.h.b16 %v51
  %v141 = vunpack.c.l.b16 %v52
  %v142 = vunpack.c.h.b16 %v52
  %v143 = vunpack.c.l.b16 %v53
  %v144 = vunpack.c.h.b16 %v53
  %v145 = vunpack.c.l.b16 %v54
  %v146 = vunpack.c.h.b16 %v54
  %v147 = vunpack.c.l.b16 %v55
  %v148 = vunpack.c.h.b16 %v55
  %v149 = vunpack.c.l.b16 %v56
  %v150 = vunpack.c.h.b16 %v56
  %v151 = vunpack.c.l.b16 %v57
  %v152 = vunpack.c.h.b16 %v57
  %v153 = vunpack.c.l.b16 %v58
  %v154 = vunpack.c.h.b16 %v58
  %v155 = vunpack.c.l.b16 %v59
  %v156 = vunpack.c.h.b16 %v59
  %v157 = vunpack.c.l.b16 %v60
  %v158 = vunpack.c.h.b16 %v60
  %v159 = vunpack.c.l.b16 %v61
  %v160 = vunpack.c.h.b16 %v61
  %v161 = vunpack.c.l.b16 %v62
  %v162 = vunpack.c.h.b16 %v62
  %v163 = vunpack.c.l.b16 %v63
  %v164 = vunpack.c.h.b16 %v63
  %v165 = vunpack.c.l.b16 %v64
  %v166 = vunpack.c.h.b16 %v64
  %v167 = vpack.c.b16 %v107, %v103
  %v168 = vpack.c.b16 %v108, %v104
  %v169 = vpack.c.b16 %v109, %v105
  %v170 = vpack.c.b16 %v110, %v106
  %v171 = vpack.c.b16 %v115, %v111
  %v172 = vpack.c.b16 %v116, %v112
  %v173 = vpack.c.b16 %v117, %v113
  %v174 = vpack.c.b16 %v118, %v114
  %v175 = vpack.c.b16 %v123, %v119
  %v176 = vpack.c.b16 %v124, %v120
  %v177 = vpack.c.b16 %v125, %v121
  %v178 = vpack.c.b16 %v126, %v122
  %v179 = vpack.c.b16 %v131, %v127
  %v180 = vpack.c.b16 %v132, %v128
  %v181 = vpack.c.b16 %v133, %v129
  %v182 = vpack.c.b16 %v134, %v130
  %v183 = vpack.c.b16 %v139, %v135
  %v184 = vpack.c.b16 %v140, %v136
  %v185 = vpack.c.b16 %v141, %v137
  %v186 = vpack.c.b16 %v142, %v138
  %v187 = vpack.c.b16 %v147, %v143
  %v188 = vpack.c.b16 %v148, %v144
  %v189 = vpack.c.b16 %v149, %v145
  %v190 = vpack.c.b16 %v150, %v146
  %v191 = vpack.c.b16 %v155, %v151
  %v192 = vpack.c.b16 %v156, %v152
  %v193 = vpack.c.b16 %v157, %v153
  %v194 = vpack.c.b16 %v158, %v154
  %v195 = vpack.c.b16 %v163, %v159
  %v196 = vpack.c.b16 %v164, %v160
  %v197 = vpack.c.b16 %v165, %v161
  %v198 = vpack.c.b16 %v166, %v162
  %231 = vmatprep.subr.bf16.mxu0 %v168
  %232 = vmatpush1.bf16.msra.mxu0 %v167
  %233 = vmatprep.subr.bf16.mxu0 %v172
  %234 = vmatpush1.bf16.msra.mxu0 %v171
  %235 = vmatprep.subr.bf16.mxu0 %v176
  %236 = vmatpush1.bf16.msra.mxu0 %v175
  %237 = vmatprep.subr.bf16.mxu0 %v180
  %238 = vmatpush1.bf16.msra.mxu0 %v179
  %239 = vmatprep.subr.bf16.mxu0 %v184
  %240 = vmatpush1.bf16.msra.mxu0 %v183
  %241 = vmatprep.subr.bf16.mxu0 %v188
  %242 = vmatpush1.bf16.msra.mxu0 %v187
  %243 = vmatprep.subr.bf16.mxu0 %v192
  %244 = vmatpush1.bf16.msra.mxu0 %v191
  %245 = vmatprep.subr.bf16.mxu0 %v196
  %246 = vmatpush1.bf16.msra.mxu0 %v195
  %247 = vmatprep.subr.bf16.mxu0 0
  %248 = vmatpush1.bf16.msra.mxu0 0
  %249 = vmatprep.subr.bf16.mxu0 0
  %250 = vmatpush1.bf16.msra.mxu0 0
  %251 = vmatprep.subr.bf16.mxu0 0
  %252 = vmatpush1.bf16.msra.mxu0 0
  %253 = vmatprep.subr.bf16.mxu0 0
  %254 = vmatpush1.bf16.msra.mxu0 0
  %255 = vmatprep.subr.bf16.mxu0 0
  %256 = vmatpush1.bf16.msra.mxu0 0
  %257 = vmatprep.subr.bf16.mxu0 0
  %258 = vmatpush1.bf16.msra.mxu0 0
  %259 = vmatprep.subr.bf16.mxu0 0
  %260 = vmatpush1.bf16.msra.mxu0 0
  %261 = vmatprep.subr.bf16.mxu0 0
  %262 = vmatpush1.bf16.msra.mxu0 0
  %263 = vmatprep.mubr.bf16.mxu0 0
  %264 = vmatmul.mubr.bf16.gmra.mrb[0].mxu0 %v32
  %v265 = vpop.f32.mrb[0].mxu0
  %v266 = vadd.f32 %v67, %v265
  %v267 = vpop.f32.mrb[0].mxu0
  %v268 = vadd.f32 %v68, %v267
  %v269 = vpop.f32.mrb[0].mxu0
  %v270 = vpop.f32.mrb[0].mxu0
  %271 = vdwg.mxu0
  %272 = vmatprep.subr.bf16.mxu0 %v170
  %273 = vmatpush1.bf16.msra.mxu0 %v169
  %274 = vmatprep.subr.bf16.mxu0 %v174
  %275 = vmatpush1.bf16.msra.mxu0 %v173
  %276 = vmatprep.subr.bf16.mxu0 %v178
  %277 = vmatpush1.bf16.msra.mxu0 %v177
  %278 = vmatprep.subr.bf16.mxu0 %v182
  %279 = vmatpush1.bf16.msra.mxu0 %v181
  %280 = vmatprep.subr.bf16.mxu0 %v186
  %281 = vmatpush1.bf16.msra.mxu0 %v185
  %282 = vmatprep.subr.bf16.mxu0 %v190
  %283 = vmatpush1.bf16.msra.mxu0 %v189
  %284 = vmatprep.subr.bf16.mxu0 %v194
  %285 = vmatpush1.bf16.msra.mxu0 %v193
  %286 = vmatprep.subr.bf16.mxu0 %v198
  %287 = vmatpush1.bf16.msra.mxu0 %v197
  %288 = vmatprep.subr.bf16.mxu0 0
  %289 = vmatpush1.bf16.msra.mxu0 0
  %290 = vmatprep.subr.bf16.mxu0 0
  %291 = vmatpush1.bf16.msra.mxu0 0
  %292 = vmatprep.subr.bf16.mxu0 0
  %293 = vmatpush1.bf16.msra.mxu0 0
  %294 = vmatprep.subr.bf16.mxu0 0
  %295 = vmatpush1.bf16.msra.mxu0 0
  %296 = vmatprep.subr.bf16.mxu0 0
  %297 = vmatpush1.bf16.msra.mxu0 0
  %298 = vmatprep.subr.bf16.mxu0 0
  %299 = vmatpush1.bf16.msra.mxu0 0
  %300 = vmatprep.subr.bf16.mxu0 0
  %301 = vmatpush1.bf16.msra.mxu0 0
  %302 = vmatprep.subr.bf16.mxu0 0
  %303 = vmatpush1.bf16.msra.mxu0 0
  %304 = vmatprep.mubr.bf16.mxu0 0
  %305 = vmatmul.mubr.bf16.gmra.mrb[0].mxu0 %v32
  %v306 = vpop.f32.mrb[0].mxu0
  %v307 = vadd.f32 %v69, %v306
  %v308 = vpop.f32.mrb[0].mxu0
  %v309 = vadd.f32 %v70, %v308
  %v310 = vpop.f32.mrb[0].mxu0
  %v311 = vpop.f32.mrb[0].mxu0
  %312 = vdwg.mxu0
  %v313 = vxor.u32 %v266, 2147483648
  %v314 = vmul.f32 %v313, 1.442695
  %v315 = vpow.pop %v314
  %v316 = vadd.f32 %v315, 1.0
  %v317 = vrcp.pop %v316
  %v318 = vmul.f32 1.0, %v317
  %v319 = vxor.u32 %v268, 2147483648
  %v320 = vmul.f32 %v319, 1.442695
  %v321 = vpow.pop %v320
  %v322 = vadd.f32 %v321, 1.0
  %v323 = vrcp.pop %v322
  %v324 = vmul.f32 1.0, %v323
  %v325 = vtanh.pop %v307
  %v326 = vxor.u32 %v309, 2147483648
  %v327 = vmul.f32 %v326, 1.442695
  %v328 = vpow.pop %v327
  %v329 = vadd.f32 %v328, 1.0
  %v330 = vrcp.pop %v329
  %v331 = vmul.f32 1.0, %v330
  %v332 = vld [vmem:[#allocation3] sm:$0xff]
  %v333 = vmul.f32 %v324, %v332
  %v334 = vmul.f32 %v318, %v325
  %v335 = vadd.f32 %v333, %v334
  %v336 = vtanh.pop %v335
  %v337 = vmul.f32 %v331, %v336
  %338 = vst [vmem:[#allocation3] sm:$0xff] %v335
  %339 = vst [vmem:[#allocation2] sm:$0xff] %v337
  %v340 = vpack.c.bf16 %v337, %v337
  %341 = vst [vmem:[#allocation4] sm:$0xf] %v340
  %342 = vst [vmem:[%s4] sm:$0xf] %v340
  %v343 = vld [vmem:[#allocation4] sm:$0xf]
  %v344 = vld [vmem:[%s1] sm:$0xff]
  %v345 = vld [vmem:[%s1 + $0x8] sm:$0xff]
  %v346 = vld [vmem:[%s1 + $0x10] sm:$0xff]
  %v347 = vld [vmem:[%s1 + $0x18] sm:$0xff]
  %v348 = vld [vmem:[%s1 + $0x20] sm:$0xff]
  %v349 = vld [vmem:[%s1 + $0x28] sm:$0xff]
  %v350 = vld [vmem:[%s1 + $0x30] sm:$0xff]
  %v351 = vld [vmem:[%s1 + $0x38] sm:$0xff]
  %v352 = vld [vmem:[%s1 + $0x40] sm:$0xff]
  %v353 = vld [vmem:[%s1 + $0x48] sm:$0xff]
  %v354 = vld [vmem:[%s1 + $0x50] sm:$0xff]
  %v355 = vld [vmem:[%s1 + $0x58] sm:$0xff]
  %v356 = vld [vmem:[%s1 + $0x60] sm:$0xff]
  %v357 = vld [vmem:[%s1 + $0x68] sm:$0xff]
  %v358 = vld [vmem:[%s1 + $0x70] sm:$0xff]
  %v359 = vld [vmem:[%s1 + $0x78] sm:$0xff]
  %v360 = vld [vmem:[%s1 + $0x80] sm:$0xff]
  %v361 = vld [vmem:[%s1 + $0x88] sm:$0xff]
  %v362 = vld [vmem:[%s1 + $0x90] sm:$0xff]
  %v363 = vld [vmem:[%s1 + $0x98] sm:$0xff]
  %v364 = vld [vmem:[%s1 + $0xa0] sm:$0xff]
  %v365 = vld [vmem:[%s1 + $0xa8] sm:$0xff]
  %v366 = vld [vmem:[%s1 + $0xb0] sm:$0xff]
  %v367 = vld [vmem:[%s1 + $0xb8] sm:$0xff]
  %v368 = vld [vmem:[%s1 + $0xc0] sm:$0xff]
  %v369 = vld [vmem:[%s1 + $0xc8] sm:$0xff]
  %v370 = vld [vmem:[%s1 + $0xd0] sm:$0xff]
  %v371 = vld [vmem:[%s1 + $0xd8] sm:$0xff]
  %v372 = vld [vmem:[%s1 + $0xe0] sm:$0xff]
  %v373 = vld [vmem:[%s1 + $0xe8] sm:$0xff]
  %v374 = vld [vmem:[%s1 + $0xf0] sm:$0xff]
  %v375 = vld [vmem:[%s1 + $0xf8] sm:$0xff]
  %s376 = scalar_lea.vmem %s0, 16
  %v377 = vld [vmem:[%s376] sm:$0xff]
  %v378 = vld [vmem:[%s376 + $0x8] sm:$0xff]
  %v379 = vunpack.c.l.bf16 %v377
  %v380 = vunpack.c.h.bf16 %v377
  %v381 = vunpack.c.l.bf16 %v378
  %v382 = vunpack.c.h.bf16 %v378
  %v415 = vunpack.c.l.b16 %v344
  %v416 = vunpack.c.h.b16 %v344
  %v417 = vunpack.c.l.b16 %v345
  %v418 = vunpack.c.h.b16 %v345
  %v419 = vunpack.c.l.b16 %v346
  %v420 = vunpack.c.h.b16 %v346
  %v421 = vunpack.c.l.b16 %v347
  %v422 = vunpack.c.h.b16 %v347
  %v423 = vunpack.c.l.b16 %v348
  %v424 = vunpack.c.h.b16 %v348
  %v425 = vunpack.c.l.b16 %v349
  %v426 = vunpack.c.h.b16 %v349
  %v427 = vunpack.c.l.b16 %v350
  %v428 = vunpack.c.h.b16 %v350
  %v429 = vunpack.c.l.b16 %v351
  %v430 = vunpack.c.h.b16 %v351
  %v431 = vunpack.c.l.b16 %v352
  %v432 = vunpack.c.h.b16 %v352
  %v433 = vunpack.c.l.b16 %v353
  %v434 = vunpack.c.h.b16 %v353
  %v435 = vunpack.c.l.b16 %v354
  %v436 = vunpack.c.h.b16 %v354
  %v437 = vunpack.c.l.b16 %v355
  %v438 = vunpack.c.h.b16 %v355
  %v439 = vunpack.c.l.b16 %v356
  %v440 = vunpack.c.h.b16 %v356
  %v441 = vunpack.c.l.b16 %v357
  %v442 = vunpack.c.h.b16 %v357
  %v443 = vunpack.c.l.b16 %v358
  %v444 = vunpack.c.h.b16 %v358
  %v445 = vunpack.c.l.b16 %v359
  %v446 = vunpack.c.h.b16 %v359
  %v447 = vunpack.c.l.b16 %v360
  %v448 = vunpack.c.h.b16 %v360
  %v449 = vunpack.c.l.b16 %v361
  %v450 = vunpack.c.h.b16 %v361
  %v451 = vunpack.c.l.b16 %v362
  %v452 = vunpack.c.h.b16 %v362
  %v453 = vunpack.c.l.b16 %v363
  %v454 = vunpack.c.h.b16 %v363
  %v455 = vunpack.c.l.b16 %v364
  %v456 = vunpack.c.h.b16 %v364
  %v457 = vunpack.c.l.b16 %v365
  %v458 = vunpack.c.h.b16 %v365
  %v459 = vunpack.c.l.b16 %v366
  %v460 = vunpack.c.h.b16 %v366
  %v461 = vunpack.c.l.b16 %v367
  %v462 = vunpack.c.h.b16 %v367
  %v463 = vunpack.c.l.b16 %v368
  %v464 = vunpack.c.h.b16 %v368
  %v465 = vunpack.c.l.b16 %v369
  %v466 = vunpack.c.h.b16 %v369
  %v467 = vunpack.c.l.b16 %v370
  %v468 = vunpack.c.h.b16 %v370
  %v469 = vunpack.c.l.b16 %v371
  %v470 = vunpack.c.h.b16 %v371
  %v471 = vunpack.c.l.b16 %v372
  %v472 = vunpack.c.h.b16 %v372
  %v473 = vunpack.c.l.b16 %v373
  %v474 = vunpack.c.h.b16 %v373
  %v475 = vunpack.c.l.b16 %v374
  %v476 = vunpack.c.h.b16 %v374
  %v477 = vunpack.c.l.b16 %v375
  %v478 = vunpack.c.h.b16 %v375
  %v479 = vpack.c.b16 %v419, %v415
  %v480 = vpack.c.b16 %v420, %v416
  %v481 = vpack.c.b16 %v421, %v417
  %v482 = vpack.c.b16 %v422, %v418
  %v483 = vpack.c.b16 %v427, %v423
  %v484 = vpack.c.b16 %v428, %v424
  %v485 = vpack.c.b16 %v429, %v425
  %v486 = vpack.c.b16 %v430, %v426
  %v487 = vpack.c.b16 %v435, %v431
  %v488 = vpack.c.b16 %v436, %v432
  %v489 = vpack.c.b16 %v437, %v433
  %v490 = vpack.c.b16 %v438, %v434
  %v491 = vpack.c.b16 %v443, %v439
  %v492 = vpack.c.b16 %v444, %v440
  %v493 = vpack.c.b16 %v445, %v441
  %v494 = vpack.c.b16 %v446, %v442
  %v495 = vpack.c.b16 %v451, %v447
  %v496 = vpack.c.b16 %v452, %v448
  %v497 = vpack.c.b16 %v453, %v449
  %v498 = vpack.c.b16 %v454, %v450
  %v499 = vpack.c.b16 %v459, %v455
  %v500 = vpack.c.b16 %v460, %v456
  %v501 = vpack.c.b16 %v461, %v457
  %v502 = vpack.c.b16 %v462, %v458
  %v503 = vpack.c.b16 %v467, %v463
  %v504 = vpack.c.b16 %v468, %v464
  %v505 = vpack.c.b16 %v469, %v465
  %v506 = vpack.c.b16 %v470, %v466
  %v507 = vpack.c.b16 %v475, %v471
  %v508 = vpack.c.b16 %v476, %v472
  %v509 = vpack.c.b16 %v477, %v473
  %v510 = vpack.c.b16 %v478, %v474
  %543 = vmatprep.subr.bf16.mxu0 %v480
  %544 = vmatpush1.bf16.msra.mxu0 %v479
  %545 = vmatprep.subr.bf16.mxu0 %v484
  %546 = vmatpush1.bf16.msra.mxu0 %v483
  %547 = vmatprep.subr.bf16.mxu0 %v488
  %548 = vmatpush1.bf16.msra.mxu0 %v487
  %549 = vmatprep.subr.bf16.mxu0 %v492
  %550 = vmatpush1.bf16.msra.mxu0 %v491
  %551 = vmatprep.subr.bf16.mxu0 %v496
  %552 = vmatpush1.bf16.msra.mxu0 %v495
  %553 = vmatprep.subr.bf16.mxu0 %v500
  %554 = vmatpush1.bf16.msra.mxu0 %v499
  %555 = vmatprep.subr.bf16.mxu0 %v504
  %556 = vmatpush1.bf16.msra.mxu0 %v503
  %557 = vmatprep.subr.bf16.mxu0 %v508
  %558 = vmatpush1.bf16.msra.mxu0 %v507
  %559 = vmatprep.subr.bf16.mxu0 0
  %560 = vmatpush1.bf16.msra.mxu0 0
  %561 = vmatprep.subr.bf16.mxu0 0
  %562 = vmatpush1.bf16.msra.mxu0 0
  %563 = vmatprep.subr.bf16.mxu0 0
  %564 = vmatpush1.bf16.msra.mxu0 0
  %565 = vmatprep.subr.bf16.mxu0 0
  %566 = vmatpush1.bf16.msra.mxu0 0
  %567 = vmatprep.subr.bf16.mxu0 0
  %568 = vmatpush1.bf16.msra.mxu0 0
  %569 = vmatprep.subr.bf16.mxu0 0
  %570 = vmatpush1.bf16.msra.mxu0 0
  %571 = vmatprep.subr.bf16.mxu0 0
  %572 = vmatpush1.bf16.msra.mxu0 0
  %573 = vmatprep.subr.bf16.mxu0 0
  %574 = vmatpush1.bf16.msra.mxu0 0
  %575 = vmatprep.mubr.bf16.mxu0 0
  %576 = vmatmul.mubr.bf16.gmra.mrb[0].mxu0 %v343
  %v577 = vpop.f32.mrb[0].mxu0
  %v578 = vadd.f32 %v379, %v577
  %v579 = vpop.f32.mrb[0].mxu0
  %v580 = vadd.f32 %v380, %v579
  %v581 = vpop.f32.mrb[0].mxu0
  %v582 = vpop.f32.mrb[0].mxu0
  %583 = vdwg.mxu0
  %584 = vmatprep.subr.bf16.mxu0 %v482
  %585 = vmatpush1.bf16.msra.mxu0 %v481
  %586 = vmatprep.subr.bf16.mxu0 %v486
  %587 = vmatpush1.bf16.msra.mxu0 %v485
  %588 = vmatprep.subr.bf16.mxu0 %v490
  %589 = vmatpush1.bf16.msra.mxu0 %v489
  %590 = vmatprep.subr.bf16.mxu0 %v494
  %591 = vmatpush1.bf16.msra.mxu0 %v493
  %592 = vmatprep.subr.bf16.mxu0 %v498
  %593 = vmatpush1.bf16.msra.mxu0 %v497
  %594 = vmatprep.subr.bf16.mxu0 %v502
  %595 = vmatpush1.bf16.msra.mxu0 %v501
  %596 = vmatprep.subr.bf16.mxu0 %v506
  %597 = vmatpush1.bf16.msra.mxu0 %v505
  %598 = vmatprep.subr.bf16.mxu0 %v510
  %599 = vmatpush1.bf16.msra.mxu0 %v509
  %600 = vmatprep.subr.bf16.mxu0 0
  %601 = vmatpush1.bf16.msra.mxu0 0
  %602 = vmatprep.subr.bf16.mxu0 0
  %603 = vmatpush1.bf16.msra.mxu0 0
  %604 = vmatprep.subr.bf16.mxu0 0
  %605 = vmatpush1.bf16.msra.mxu0 0
  %606 = vmatprep.subr.bf16.mxu0 0
  %607 = vmatpush1.bf16.msra.mxu0 0
  %608 = vmatprep.subr.bf16.mxu0 0
  %609 = vmatpush1.bf16.msra.mxu0 0
  %610 = vmatprep.subr.bf16.mxu0 0
  %611 = vmatpush1.bf16.msra.mxu0 0
  %612 = vmatprep.subr.bf16.mxu0 0
  %613 = vmatpush1.bf16.msra.mxu0 0
  %614 = vmatprep.subr.bf16.mxu0 0
  %615 = vmatpush1.bf16.msra.mxu0 0
  %616 = vmatprep.mubr.bf16.mxu0 0
  %617 = vmatmul.mubr.bf16.gmra.mrb[0].mxu0 %v343
  %v618 = vpop.f32.mrb[0].mxu0
  %v619 = vadd.f32 %v381, %v618
  %v620 = vpop.f32.mrb[0].mxu0
  %v621 = vadd.f32 %v382, %v620
  %v622 = vpop.f32.mrb[0].mxu0
  %v623 = vpop.f32.mrb[0].mxu0
  %624 = vdwg.mxu0
  %v625 = vxor.u32 %v578, 2147483648
  %v626 = vmul.f32 %v625, 1.442695
  %v627 = vpow.pop %v626
  %v628 = vadd.f32 %v627, 1.0
  %v629 = vrcp.pop %v628
  %v630 = vmul.f32 1.0, %v629
  %v631 = vxor.u32 %v580, 2147483648
  %v632 = vmul.f32 %v631, 1.442695
  %v633 = vpow.pop %v632
  %v634 = vadd.f32 %v633, 1.0
  %v635 = vrcp.pop %v634
  %v636 = vmul.f32 1.0, %v635
  %v637 = vtanh.pop %v619
  %v638 = vxor.u32 %v621, 2147483648
  %v639 = vmul.f32 %v638, 1.442695
  %v640 = vpow.pop %v639
  %v641 = vadd.f32 %v640, 1.0
  %v642 = vrcp.pop %v641
  %v643 = vmul.f32 1.0, %v642
  %v644 = vld [vmem:[#allocation3] sm:$0xff]
  %v645 = vmul.f32 %v636, %v644
  %v646 = vmul.f32 %v630, %v637
  %v647 = vadd.f32 %v645, %v646
  %v648 = vtanh.pop %v647
  %v649 = vmul.f32 %v643, %v648
  %650 = vst [vmem:[#allocation3] sm:$0xff] %v647
  %651 = vst [vmem:[#allocation2] sm:$0xff] %v649
  %v652 = vpack.c.bf16 %v649, %v649
  %653 = vst [vmem:[#allocation4] sm:$0xf] %v652
  %s654 = scalar_lea.vmem %s4, 4
  %655 = vst [vmem:[%s654] sm:$0xf] %v652
  %v656 = vld [vmem:[#allocation4] sm:$0xf]
  %v657 = vld [vmem:[%s1] sm:$0xff]
  %v658 = vld [vmem:[%s1 + $0x8] sm:$0xff]
  %v659 = vld [vmem:[%s1 + $0x10] sm:$0xff]
  %v660 = vld [vmem:[%s1 + $0x18] sm:$0xff]
  %v661 = vld [vmem:[%s1 + $0x20] sm:$0xff]
  %v662 = vld [vmem:[%s1 + $0x28] sm:$0xff]
  %v663 = vld [vmem:[%s1 + $0x30] sm:$0xff]
  %v664 = vld [vmem:[%s1 + $0x38] sm:$0xff]
  %v665 = vld [vmem:[%s1 + $0x40] sm:$0xff]
  %v666 = vld [vmem:[%s1 + $0x48] sm:$0xff]
  %v667 = vld [vmem:[%s1 + $0x50] sm:$0xff]
  %v668 = vld [vmem:[%s1 + $0x58] sm:$0xff]
  %v669 = vld [vmem:[%s1 + $0x60] sm:$0xff]
  %v670 = vld [vmem:[%s1 + $0x68] sm:$0xff]
  %v671 = vld [vmem:[%s1 + $0x70] sm:$0xff]
  %v672 = vld [vmem:[%s1 + $0x78] sm:$0xff]
  %v673 = vld [vmem:[%s1 + $0x80] sm:$0xff]
  %v674 = vld [vmem:[%s1 + $0x88] sm:$0xff]
  %v675 = vld [vmem:[%s1 + $0x90] sm:$0xff]
  %v676 = vld [vmem:[%s1 + $0x98] sm:$0xff]
  %v677 = vld [vmem:[%s1 + $0xa0] sm:$0xff]
  %v678 = vld [vmem:[%s1 + $0xa8] sm:$0xff]
  %v679 = vld [vmem:[%s1 + $0xb0] sm:$0xff]
  %v680 = vld [vmem:[%s1 + $0xb8] sm:$0xff]
  %v681 = vld [vmem:[%s1 + $0xc0] sm:$0xff]
  %v682 = vld [vmem:[%s1 + $0xc8] sm:$0xff]
  %v683 = vld [vmem:[%s1 + $0xd0] sm:$0xff]
  %v684 = vld [vmem:[%s1 + $0xd8] sm:$0xff]
  %v685 = vld [vmem:[%s1 + $0xe0] sm:$0xff]
  %v686 = vld [vmem:[%s1 + $0xe8] sm:$0xff]
  %v687 = vld [vmem:[%s1 + $0xf0] sm:$0xff]
  %v688 = vld [vmem:[%s1 + $0xf8] sm:$0xff]
  %s689 = scalar_lea.vmem %s0, 32
  %v690 = vld [vmem:[%s689] sm:$0xff]
  %v691 = vld [vmem:[%s689 + $0x8] sm:$0xff]
  %v692 = vunpack.c.l.bf16 %v690
  %v693 = vunpack.c.h.bf16 %v690
  %v694 = vunpack.c.l.bf16 %v691
  %v695 = vunpack.c.h.bf16 %v691
  %v728 = vunpack.c.l.b16 %v657
  %v729 = vunpack.c.h.b16 %v657
  %v730 = vunpack.c.l.b16 %v658
  %v731 = vunpack.c.h.b16 %v658
  %v732 = vunpack.c.l.b16 %v659
  %v733 = vunpack.c.h.b16 %v659
  %v734 = vunpack.c.l.b16 %v660
  %v735 = vunpack.c.h.b16 %v660
  %v736 = vunpack.c.l.b16 %v661
  %v737 = vunpack.c.h.b16 %v661
  %v738 = vunpack.c.l.b16 %v662
  %v739 = vunpack.c.h.b16 %v662
  %v740 = vunpack.c.l.b16 %v663
  %v741 = vunpack.c.h.b16 %v663
  %v742 = vunpack.c.l.b16 %v664
  %v743 = vunpack.c.h.b16 %v664
  %v744 = vunpack.c.l.b16 %v665
  %v745 = vunpack.c.h.b16 %v665
  %v746 = vunpack.c.l.b16 %v666
  %v747 = vunpack.c.h.b16 %v666
  %v748 = vunpack.c.l.b16 %v667
  %v749 = vunpack.c.h.b16 %v667
  %v750 = vunpack.c.l.b16 %v668
  %v751 = vunpack.c.h.b16 %v668
  %v752 = vunpack.c.l.b16 %v669
  %v753 = vunpack.c.h.b16 %v669
  %v754 = vunpack.c.l.b16 %v670
  %v755 = vunpack.c.h.b16 %v670
  %v756 = vunpack.c.l.b16 %v671
  %v757 = vunpack.c.h.b16 %v671
  %v758 = vunpack.c.l.b16 %v672
  %v759 = vunpack.c.h.b16 %v672
  %v760 = vunpack.c.l.b16 %v673
  %v761 = vunpack.c.h.b16 %v673
  %v762 = vunpack.c.l.b16 %v674
  %v763 = vunpack.c.h.b16 %v674
  %v764 = vunpack.c.l.b16 %v675
  %v765 = vunpack.c.h.b16 %v675
  %v766 = vunpack.c.l.b16 %v676
  %v767 = vunpack.c.h.b16 %v676
  %v768 = vunpack.c.l.b16 %v677
  %v769 = vunpack.c.h.b16 %v677
  %v770 = vunpack.c.l.b16 %v678
  %v771 = vunpack.c.h.b16 %v678
  %v772 = vunpack.c.l.b16 %v679
  %v773 = vunpack.c.h.b16 %v679
  %v774 = vunpack.c.l.b16 %v680
  %v775 = vunpack.c.h.b16 %v680
  %v776 = vunpack.c.l.b16 %v681
  %v777 = vunpack.c.h.b16 %v681
  %v778 = vunpack.c.l.b16 %v682
  %v779 = vunpack.c.h.b16 %v682
  %v780 = vunpack.c.l.b16 %v683
  %v781 = vunpack.c.h.b16 %v683
  %v782 = vunpack.c.l.b16 %v684
  %v783 = vunpack.c.h.b16 %v684
  %v784 = vunpack.c.l.b16 %v685
  %v785 = vunpack.c.h.b16 %v685
  %v786 = vunpack.c.l.b16 %v686
  %v787 = vunpack.c.h.b16 %v686
  %v788 = vunpack.c.l.b16 %v687
  %v789 = vunpack.c.h.b16 %v687
  %v790 = vunpack.c.l.b16 %v688
  %v791 = vunpack.c.h.b16 %v688
  %v792 = vpack.c.b16 %v732, %v728
  %v793 = vpack.c.b16 %v733, %v729
  %v794 = vpack.c.b16 %v734, %v730
  %v795 = vpack.c.b16 %v735, %v731
  %v796 = vpack.c.b16 %v740, %v736
  %v797 = vpack.c.b16 %v741, %v737
  %v798 = vpack.c.b16 %v742, %v738
  %v799 = vpack.c.b16 %v743, %v739
  %v800 = vpack.c.b16 %v748, %v744
  %v801 = vpack.c.b16 %v749, %v745
  %v802 = vpack.c.b16 %v750, %v746
  %v803 = vpack.c.b16 %v751, %v747
  %v804 = vpack.c.b16 %v756, %v752
  %v805 = vpack.c.b16 %v757, %v753
  %v806 = vpack.c.b16 %v758, %v754
  %v807 = vpack.c.b16 %v759, %v755
  %v808 = vpack.c.b16 %v764, %v760
  %v809 = vpack.c.b16 %v765, %v761
  %v810 = vpack.c.b16 %v766, %v762
  %v811 = vpack.c.b16 %v767, %v763
  %v812 = vpack.c.b16 %v772, %v768
  %v813 = vpack.c.b16 %v773, %v769
  %v814 = vpack.c.b16 %v774, %v770
  %v815 = vpack.c.b16 %v775, %v771
  %v816 = vpack.c.b16 %v780, %v776
  %v817 = vpack.c.b16 %v781, %v777
  %v818 = vpack.c.b16 %v782, %v778
  %v819 = vpack.c.b16 %v783, %v779
  %v820 = vpack.c.b16 %v788, %v784
  %v821 = vpack.c.b16 %v789, %v785
  %v822 = vpack.c.b16 %v790, %v786
  %v823 = vpack.c.b16 %v791, %v787
  %856 = vmatprep.subr.bf16.mxu0 %v793
  %857 = vmatpush1.bf16.msra.mxu0 %v792
  %858 = vmatprep.subr.bf16.mxu0 %v797
  %859 = vmatpush1.bf16.msra.mxu0 %v796
  %860 = vmatprep.subr.bf16.mxu0 %v801
  %861 = vmatpush1.bf16.msra.mxu0 %v800
  %862 = vmatprep.subr.bf16.mxu0 %v805
  %863 = vmatpush1.bf16.msra.mxu0 %v804
  %864 = vmatprep.subr.bf16.mxu0 %v809
  %865 = vmatpush1.bf16.msra.mxu0 %v808
  %866 = vmatprep.subr.bf16.mxu0 %v813
  %867 = vmatpush1.bf16.msra.mxu0 %v812
  %868 = vmatprep.subr.bf16.mxu0 %v817
  %869 = vmatpush1.bf16.msra.mxu0 %v816
  %870 = vmatprep.subr.bf16.mxu0 %v821
  %871 = vmatpush1.bf16.msra.mxu0 %v820
  %872 = vmatprep.subr.bf16.mxu0 0
  %873 = vmatpush1.bf16.msra.mxu0 0
  %874 = vmatprep.subr.bf16.mxu0 0
  %875 = vmatpush1.bf16.msra.mxu0 0
  %876 = vmatprep.subr.bf16.mxu0 0
  %877 = vmatpush1.bf16.msra.mxu0 0
  %878 = vmatprep.subr.bf16.mxu0 0
  %879 = vmatpush1.bf16.msra.mxu0 0
  %880 = vmatprep.subr.bf16.mxu0 0
  %881 = vmatpush1.bf16.msra.mxu0 0
  %882 = vmatprep.subr.bf16.mxu0 0
  %883 = vmatpush1.bf16.msra.mxu0 0
  %884 = vmatprep.subr.bf16.mxu0 0
  %885 = vmatpush1.bf16.msra.mxu0 0
  %886 = vmatprep.subr.bf16.mxu0 0
  %887 = vmatpush1.bf16.msra.mxu0 0
  %888 = vmatprep.mubr.bf16.mxu0 0
  %889 = vmatmul.mubr.bf16.gmra.mrb[0].mxu0 %v656
  %v890 = vpop.f32.mrb[0].mxu0
  %v891 = vadd.f32 %v692, %v890
  %v892 = vpop.f32.mrb[0].mxu0
  %v893 = vadd.f32 %v693, %v892
  %v894 = vpop.f32.mrb[0].mxu0
  %v895 = vpop.f32.mrb[0].mxu0
  %896 = vdwg.mxu0
  %897 = vmatprep.subr.bf16.mxu0 %v795
  %898 = vmatpush1.bf16.msra.mxu0 %v794
  %899 = vmatprep.subr.bf16.mxu0 %v799
  %900 = vmatpush1.bf16.msra.mxu0 %v798
  %901 = vmatprep.subr.bf16.mxu0 %v803
  %902 = vmatpush1.bf16.msra.mxu0 %v802
  %903 = vmatprep.subr.bf16.mxu0 %v807
  %904 = vmatpush1.bf16.msra.mxu0 %v806
  %905 = vmatprep.subr.bf16.mxu0 %v811
  %906 = vmatpush1.bf16.msra.mxu0 %v810
  %907 = vmatprep.subr.bf16.mxu0 %v815
  %908 = vmatpush1.bf16.msra.mxu0 %v814
  %909 = vmatprep.subr.bf16.mxu0 %v819
  %910 = vmatpush1.bf16.msra.mxu0 %v818
  %911 = vmatprep.subr.bf16.mxu0 %v823
  %912 = vmatpush1.bf16.msra.mxu0 %v822
  %913 = vmatprep.subr.bf16.mxu0 0
  %914 = vmatpush1.bf16.msra.mxu0 0
  %915 = vmatprep.subr.bf16.mxu0 0
  %916 = vmatpush1.bf16.msra.mxu0 0
  %917 = vmatprep.subr.bf16.mxu0 0
  %918 = vmatpush1.bf16.msra.mxu0 0
  %919 = vmatprep.subr.bf16.mxu0 0
  %920 = vmatpush1.bf16.msra.mxu0 0
  %921 = vmatprep.subr.bf16.mxu0 0
  %922 = vmatpush1.bf16.msra.mxu0 0
  %923 = vmatprep.subr.bf16.mxu0 0
  %924 = vmatpush1.bf16.msra.mxu0 0
  %925 = vmatprep.subr.bf16.mxu0 0
  %926 = vmatpush1.bf16.msra.mxu0 0
  %927 = vmatprep.subr.bf16.mxu0 0
  %928 = vmatpush1.bf16.msra.mxu0 0
  %929 = vmatprep.mubr.bf16.mxu0 0
  %930 = vmatmul.mubr.bf16.gmra.mrb[0].mxu0 %v656
  %v931 = vpop.f32.mrb[0].mxu0
  %v932 = vadd.f32 %v694, %v931
  %v933 = vpop.f32.mrb[0].mxu0
  %v934 = vadd.f32 %v695, %v933
  %v935 = vpop.f32.mrb[0].mxu0
  %v936 = vpop.f32.mrb[0].mxu0
  %937 = vdwg.mxu0
  %v938 = vxor.u32 %v891, 2147483648
  %v939 = vmul.f32 %v938, 1.442695
  %v940 = vpow.pop %v939
  %v941 = vadd.f32 %v940, 1.0
  %v942 = vrcp.pop %v941
  %v943 = vmul.f32 1.0, %v942
  %v944 = vxor.u32 %v893, 2147483648
  %v945 = vmul.f32 %v944, 1.442695
  %v946 = vpow.pop %v945
  %v947 = vadd.f32 %v946, 1.0
  %v948 = vrcp.pop %v947
  %v949 = vmul.f32 1.0, %v948
  %v950 = vtanh.pop %v932
  %v951 = vxor.u32 %v934, 2147483648
  %v952 = vmul.f32 %v951, 1.442695
  %v953 = vpow.pop %v952
  %v954 = vadd.f32 %v953, 1.0
  %v955 = vrcp.pop %v954
  %v956 = vmul.f32 1.0, %v955
  %v957 = vld [vmem:[#allocation3] sm:$0xff]
  %v958 = vmul.f32 %v949, %v957
  %v959 = vmul.f32 %v943, %v950
  %v960 = vadd.f32 %v958, %v959
  %v961 = vtanh.pop %v960
  %v962 = vmul.f32 %v956, %v961
  %963 = vst [vmem:[#allocation3] sm:$0xff] %v960
  %964 = vst [vmem:[#allocation2] sm:$0xff] %v962
  %v965 = vpack.c.bf16 %v962, %v962
  %966 = vst [vmem:[#allocation4] sm:$0xf] %v965
  %s967 = scalar_lea.vmem %s4, 8
  %968 = vst [vmem:[%s967] sm:$0xf] %v965
  %v969 = vld [vmem:[#allocation4] sm:$0xf]
  %v970 = vld [vmem:[%s1] sm:$0xff]
  %v971 = vld [vmem:[%s1 + $0x8] sm:$0xff]
  %v972 = vld [vmem:[%s1 + $0x10] sm:$0xff]
  %v973 = vld [vmem:[%s1 + $0x18] sm:$0xff]
  %v974 = vld [vmem:[%s1 + $0x20] sm:$0xff]
  %v975 = vld [vmem:[%s1 + $0x28] sm:$0xff]
  %v976 = vld [vmem:[%s1 + $0x30] sm:$0xff]
  %v977 = vld [vmem:[%s1 + $0x38] sm:$0xff]
  %v978 = vld [vmem:[%s1 + $0x40] sm:$0xff]
  %v979 = vld [vmem:[%s1 + $0x48] sm:$0xff]
  %v980 = vld [vmem:[%s1 + $0x50] sm:$0xff]
  %v981 = vld [vmem:[%s1 + $0x58] sm:$0xff]
  %v982 = vld [vmem:[%s1 + $0x60] sm:$0xff]
  %v983 = vld [vmem:[%s1 + $0x68] sm:$0xff]
  %v984 = vld [vmem:[%s1 + $0x70] sm:$0xff]
  %v985 = vld [vmem:[%s1 + $0x78] sm:$0xff]
  %v986 = vld [vmem:[%s1 + $0x80] sm:$0xff]
  %v987 = vld [vmem:[%s1 + $0x88] sm:$0xff]
  %v988 = vld [vmem:[%s1 + $0x90] sm:$0xff]
  %v989 = vld [vmem:[%s1 + $0x98] sm:$0xff]
  %v990 = vld [vmem:[%s1 + $0xa0] sm:$0xff]
  %v991 = vld [vmem:[%s1 + $0xa8] sm:$0xff]
  %v992 = vld [vmem:[%s1 + $0xb0] sm:$0xff]
  %v993 = vld [vmem:[%s1 + $0xb8] sm:$0xff]
  %v994 = vld [vmem:[%s1 + $0xc0] sm:$0xff]
  %v995 = vld [vmem:[%s1 + $0xc8] sm:$0xff]
  %v996 = vld [vmem:[%s1 + $0xd0] sm:$0xff]
  %v997 = vld [vmem:[%s1 + $0xd8] sm:$0xff]
  %v998 = vld [vmem:[%s1 + $0xe0] sm:$0xff]
  %v999 = vld [vmem:[%s1 + $0xe8] sm:$0xff]
  %v1000 = vld [vmem:[%s1 + $0xf0] sm:$0xff]
  %v1001 = vld [vmem:[%s1 + $0xf8] sm:$0xff]
  %s1002 = scalar_lea.vmem %s0, 48
  %v1003 = vld [vmem:[%s1002] sm:$0xff]
  %v1004 = vld [vmem:[%s1002 + $0x8] sm:$0xff]
  %v1005 = vunpack.c.l.bf16 %v1003
  %v1006 = vunpack.c.h.bf16 %v1003
  %v1007 = vunpack.c.l.bf16 %v1004
  %v1008 = vunpack.c.h.bf16 %v1004
  %v1041 = vunpack.c.l.b16 %v970
  %v1042 = vunpack.c.h.b16 %v970
  %v1043 = vunpack.c.l.b16 %v971
  %v1044 = vunpack.c.h.b16 %v971
  %v1045 = vunpack.c.l.b16 %v972
  %v1046 = vunpack.c.h.b16 %v972
  %v1047 = vunpack.c.l.b16 %v973
  %v1048 = vunpack.c.h.b16 %v973
  %v1049 = vunpack.c.l.b16 %v974
  %v1050 = vunpack.c.h.b16 %v974
  %v1051 = vunpack.c.l.b16 %v975
  %v1052 = vunpack.c.h.b16 %v975
  %v1053 = vunpack.c.l.b16 %v976
  %v1054 = vunpack.c.h.b16 %v976
  %v1055 = vunpack.c.l.b16 %v977
  %v1056 = vunpack.c.h.b16 %v977
  %v1057 = vunpack.c.l.b16 %v978
  %v1058 = vunpack.c.h.b16 %v978
  %v1059 = vunpack.c.l.b16 %v979
  %v1060 = vunpack.c.h.b16 %v979
  %v1061 = vunpack.c.l.b16 %v980
  %v1062 = vunpack.c.h.b16 %v980
  %v1063 = vunpack.c.l.b16 %v981
  %v1064 = vunpack.c.h.b16 %v981
  %v1065 = vunpack.c.l.b16 %v982
  %v1066 = vunpack.c.h.b16 %v982
  %v1067 = vunpack.c.l.b16 %v983
  %v1068 = vunpack.c.h.b16 %v983
  %v1069 = vunpack.c.l.b16 %v984
  %v1070 = vunpack.c.h.b16 %v984
  %v1071 = vunpack.c.l.b16 %v985
  %v1072 = vunpack.c.h.b16 %v985
  %v1073 = vunpack.c.l.b16 %v986
  %v1074 = vunpack.c.h.b16 %v986
  %v1075 = vunpack.c.l.b16 %v987
  %v1076 = vunpack.c.h.b16 %v987
  %v1077 = vunpack.c.l.b16 %v988
  %v1078 = vunpack.c.h.b16 %v988
  %v1079 = vunpack.c.l.b16 %v989
  %v1080 = vunpack.c.h.b16 %v989
  %v1081 = vunpack.c.l.b16 %v990
  %v1082 = vunpack.c.h.b16 %v990
  %v1083 = vunpack.c.l.b16 %v991
  %v1084 = vunpack.c.h.b16 %v991
  %v1085 = vunpack.c.l.b16 %v992
  %v1086 = vunpack.c.h.b16 %v992
  %v1087 = vunpack.c.l.b16 %v993
  %v1088 = vunpack.c.h.b16 %v993
  %v1089 = vunpack.c.l.b16 %v994
  %v1090 = vunpack.c.h.b16 %v994
  %v1091 = vunpack.c.l.b16 %v995
  %v1092 = vunpack.c.h.b16 %v995
  %v1093 = vunpack.c.l.b16 %v996
  %v1094 = vunpack.c.h.b16 %v996
  %v1095 = vunpack.c.l.b16 %v997
  %v1096 = vunpack.c.h.b16 %v997
  %v1097 = vunpack.c.l.b16 %v998
  %v1098 = vunpack.c.h.b16 %v998
  %v1099 = vunpack.c.l.b16 %v999
  %v1100 = vunpack.c.h.b16 %v999
  %v1101 = vunpack.c.l.b16 %v1000
  %v1102 = vunpack.c.h.b16 %v1000
  %v1103 = vunpack.c.l.b16 %v1001
  %v1104 = vunpack.c.h.b16 %v1001
  %v1105 = vpack.c.b16 %v1045, %v1041
  %v1106 = vpack.c.b16 %v1046, %v1042
  %v1107 = vpack.c.b16 %v1047, %v1043
  %v1108 = vpack.c.b16 %v1048, %v1044
  %v1109 = vpack.c.b16 %v1053, %v1049
  %v1110 = vpack.c.b16 %v1054, %v1050
  %v1111 = vpack.c.b16 %v1055, %v1051
  %v1112 = vpack.c.b16 %v1056, %v1052
  %v1113 = vpack.c.b16 %v1061, %v1057
  %v1114 = vpack.c.b16 %v1062, %v1058
  %v1115 = vpack.c.b16 %v1063, %v1059
  %v1116 = vpack.c.b16 %v1064, %v1060
  %v1117 = vpack.c.b16 %v1069, %v1065
  %v1118 = vpack.c.b16 %v1070, %v1066
  %v1119 = vpack.c.b16 %v1071, %v1067
  %v1120 = vpack.c.b16 %v1072, %v1068
  %v1121 = vpack.c.b16 %v1077, %v1073
  %v1122 = vpack.c.b16 %v1078, %v1074
  %v1123 = vpack.c.b16 %v1079, %v1075
  %v1124 = vpack.c.b16 %v1080, %v1076
  %v1125 = vpack.c.b16 %v1085, %v1081
  %v1126 = vpack.c.b16 %v1086, %v1082
  %v1127 = vpack.c.b16 %v1087, %v1083
  %v1128 = vpack.c.b16 %v1088, %v1084
  %v1129 = vpack.c.b16 %v1093, %v1089
  %v1130 = vpack.c.b16 %v1094, %v1090
  %v1131 = vpack.c.b16 %v1095, %v1091
  %v1132 = vpack.c.b16 %v1096, %v1092
  %v1133 = vpack.c.b16 %v1101, %v1097
  %v1134 = vpack.c.b16 %v1102, %v1098
  %v1135 = vpack.c.b16 %v1103, %v1099
  %v1136 = vpack.c.b16 %v1104, %v1100
  %1169 = vmatprep.subr.bf16.mxu0 %v1106
  %1170 = vmatpush1.bf16.msra.mxu0 %v1105
  %1171 = vmatprep.subr.bf16.mxu0 %v1110
  %1172 = vmatpush1.bf16.msra.mxu0 %v1109
  %1173 = vmatprep.subr.bf16.mxu0 %v1114
  %1174 = vmatpush1.bf16.msra.mxu0 %v1113
  %1175 = vmatprep.subr.bf16.mxu0 %v1118
  %1176 = vmatpush1.bf16.msra.mxu0 %v1117
  %1177 = vmatprep.subr.bf16.mxu0 %v1122
  %1178 = vmatpush1.bf16.msra.mxu0 %v1121
  %1179 = vmatprep.subr.bf16.mxu0 %v1126
  %1180 = vmatpush1.bf16.msra.mxu0 %v1125
  %1181 = vmatprep.subr.bf16.mxu0 %v1130
  %1182 = vmatpush1.bf16.msra.mxu0 %v1129
  %1183 = vmatprep.subr.bf16.mxu0 %v1134
  %1184 = vmatpush1.bf16.msra.mxu0 %v1133
  %1185 = vmatprep.subr.bf16.mxu0 0
  %1186 = vmatpush1.bf16.msra.mxu0 0
  %1187 = vmatprep.subr.bf16.mxu0 0
  %1188 = vmatpush1.bf16.msra.mxu0 0
  %1189 = vmatprep.subr.bf16.mxu0 0
  %1190 = vmatpush1.bf16.msra.mxu0 0
  %1191 = vmatprep.subr.bf16.mxu0 0
  %1192 = vmatpush1.bf16.msra.mxu0 0
  %1193 = vmatprep.subr.bf16.mxu0 0
  %1194 = vmatpush1.bf16.msra.mxu0 0
  %1195 = vmatprep.subr.bf16.mxu0 0
  %1196 = vmatpush1.bf16.msra.mxu0 0
  %1197 = vmatprep.subr.bf16.mxu0 0
  %1198 = vmatpush1.bf16.msra.mxu0 0
  %1199 = vmatprep.subr.bf16.mxu0 0
  %1200 = vmatpush1.bf16.msra.mxu0 0
  %1201 = vmatprep.mubr.bf16.mxu0 0
  %1202 = vmatmul.mubr.bf16.gmra.mrb[0].mxu0 %v969
  %v1203 = vpop.f32.mrb[0].mxu0
  %v1204 = vadd.f32 %v1005, %v1203
  %v1205 = vpop.f32.mrb[0].mxu0
  %v1206 = vadd.f32 %v1006, %v1205
  %v1207 = vpop.f32.mrb[0].mxu0
  %v1208 = vpop.f32.mrb[0].mxu0
  %1209 = vdwg.mxu0
  %1210 = vmatprep.subr.bf16.mxu0 %v1108
  %1211 = vmatpush1.bf16.msra.mxu0 %v1107
  %1212 = vmatprep.subr.bf16.mxu0 %v1112
  %1213 = vmatpush1.bf16.msra.mxu0 %v1111
  %1214 = vmatprep.subr.bf16.mxu0 %v1116
  %1215 = vmatpush1.bf16.msra.mxu0 %v1115
  %1216 = vmatprep.subr.bf16.mxu0 %v1120
  %1217 = vmatpush1.bf16.msra.mxu0 %v1119
  %1218 = vmatprep.subr.bf16.mxu0 %v1124
  %1219 = vmatpush1.bf16.msra.mxu0 %v1123
  %1220 = vmatprep.subr.bf16.mxu0 %v1128
  %1221 = vmatpush1.bf16.msra.mxu0 %v1127
  %1222 = vmatprep.subr.bf16.mxu0 %v1132
  %1223 = vmatpush1.bf16.msra.mxu0 %v1131
  %1224 = vmatprep.subr.bf16.mxu0 %v1136
  %1225 = vmatpush1.bf16.msra.mxu0 %v1135
  %1226 = vmatprep.subr.bf16.mxu0 0
  %1227 = vmatpush1.bf16.msra.mxu0 0
  %1228 = vmatprep.subr.bf16.mxu0 0
  %1229 = vmatpush1.bf16.msra.mxu0 0
  %1230 = vmatprep.subr.bf16.mxu0 0
  %1231 = vmatpush1.bf16.msra.mxu0 0
  %1232 = vmatprep.subr.bf16.mxu0 0
  %1233 = vmatpush1.bf16.msra.mxu0 0
  %1234 = vmatprep.subr.bf16.mxu0 0
  %1235 = vmatpush1.bf16.msra.mxu0 0
  %1236 = vmatprep.subr.bf16.mxu0 0
  %1237 = vmatpush1.bf16.msra.mxu0 0
  %1238 = vmatprep.subr.bf16.mxu0 0
  %1239 = vmatpush1.bf16.msra.mxu0 0
  %1240 = vmatprep.subr.bf16.mxu0 0
  %1241 = vmatpush1.bf16.msra.mxu0 0
  %1242 = vmatprep.mubr.bf16.mxu0 0
  %1243 = vmatmul.mubr.bf16.gmra.mrb[0].mxu0 %v969
  %v1244 = vpop.f32.mrb[0].mxu0
  %v1245 = vadd.f32 %v1007, %v1244
  %v1246 = vpop.f32.mrb[0].mxu0
  %v1247 = vadd.f32 %v1008, %v1246
  %v1248 = vpop.f32.mrb[0].mxu0
  %v1249 = vpop.f32.mrb[0].mxu0
  %1250 = vdwg.mxu0
  %v1251 = vxor.u32 %v1204, 2147483648
  %v1252 = vmul.f32 %v1251, 1.442695
  %v1253 = vpow.pop %v1252
  %v1254 = vadd.f32 %v1253, 1.0
  %v1255 = vrcp.pop %v1254
  %v1256 = vmul.f32 1.0, %v1255
  %v1257 = vxor.u32 %v1206, 2147483648
  %v1258 = vmul.f32 %v1257, 1.442695
  %v1259 = vpow.pop %v1258
  %v1260 = vadd.f32 %v1259, 1.0
  %v1261 = vrcp.pop %v1260
  %v1262 = vmul.f32 1.0, %v1261
  %v1263 = vtanh.pop %v1245
  %v1264 = vxor.u32 %v1247, 2147483648
  %v1265 = vmul.f32 %v1264, 1.442695
  %v1266 = vpow.pop %v1265
  %v1267 = vadd.f32 %v1266, 1.0
  %v1268 = vrcp.pop %v1267
  %v1269 = vmul.f32 1.0, %v1268
  %v1270 = vld [vmem:[#allocation3] sm:$0xff]
  %v1271 = vmul.f32 %v1262, %v1270
  %v1272 = vmul.f32 %v1256, %v1263
  %v1273 = vadd.f32 %v1271, %v1272
  %v1274 = vtanh.pop %v1273
  %v1275 = vmul.f32 %v1269, %v1274
  %1276 = vst [vmem:[#allocation3] sm:$0xff] %v1273
  %1277 = vst [vmem:[#allocation2] sm:$0xff] %v1275
  %v1278 = vpack.c.bf16 %v1275, %v1275
  %1279 = vst [vmem:[#allocation4] sm:$0xf] %v1278
  %s1280 = scalar_lea.vmem %s4, 12
  %1281 = vst [vmem:[%s1280] sm:$0xf] %v1278
  %v1282 = vld [vmem:[#allocation4] sm:$0xf]
  %v1283 = vld [vmem:[%s1] sm:$0xff]
  %v1284 = vld [vmem:[%s1 + $0x8] sm:$0xff]
  %v1285 = vld [vmem:[%s1 + $0x10] sm:$0xff]
  %v1286 = vld [vmem:[%s1 + $0x18] sm:$0xff]
  %v1287 = vld [vmem:[%s1 + $0x20] sm:$0xff]
  %v1288 = vld [vmem:[%s1 + $0x28] sm:$0xff]
  %v1289 = vld [vmem:[%s1 + $0x30] sm:$0xff]
  %v1290 = vld [vmem:[%s1 + $0x38] sm:$0xff]
  %v1291 = vld [vmem:[%s1 + $0x40] sm:$0xff]
  %v1292 = vld [vmem:[%s1 + $0x48] sm:$0xff]
  %v1293 = vld [vmem:[%s1 + $0x50] sm:$0xff]
  %v1294 = vld [vmem:[%s1 + $0x58] sm:$0xff]
  %v1295 = vld [vmem:[%s1 + $0x60] sm:$0xff]
  %v1296 = vld [vmem:[%s1 + $0x68] sm:$0xff]
  %v1297 = vld [vmem:[%s1 + $0x70] sm:$0xff]
  %v1298 = vld [vmem:[%s1 + $0x78] sm:$0xff]
  %v1299 = vld [vmem:[%s1 + $0x80] sm:$0xff]
  %v1300 = vld [vmem:[%s1 + $0x88] sm:$0xff]
  %v1301 = vld [vmem:[%s1 + $0x90] sm:$0xff]
  %v1302 = vld [vmem:[%s1 + $0x98] sm:$0xff]
  %v1303 = vld [vmem:[%s1 + $0xa0] sm:$0xff]
  %v1304 = vld [vmem:[%s1 + $0xa8] sm:$0xff]
  %v1305 = vld [vmem:[%s1 + $0xb0] sm:$0xff]
  %v1306 = vld [vmem:[%s1 + $0xb8] sm:$0xff]
  %v1307 = vld [vmem:[%s1 + $0xc0] sm:$0xff]
  %v1308 = vld [vmem:[%s1 + $0xc8] sm:$0xff]
  %v1309 = vld [vmem:[%s1 + $0xd0] sm:$0xff]
  %v1310 = vld [vmem:[%s1 + $0xd8] sm:$0xff]
  %v1311 = vld [vmem:[%s1 + $0xe0] sm:$0xff]
  %v1312 = vld [vmem:[%s1 + $0xe8] sm:$0xff]
  %v1313 = vld [vmem:[%s1 + $0xf0] sm:$0xff]
  %v1314 = vld [vmem:[%s1 + $0xf8] sm:$0xff]
  %s1315 = scalar_lea.vmem %s0, 64
  %v1316 = vld [vmem:[%s1315] sm:$0xff]
  %v1317 = vld [vmem:[%s1315 + $0x8] sm:$0xff]
  %v1318 = vunpack.c.l.bf16 %v1316
  %v1319 = vunpack.c.h.bf16 %v1316
  %v1320 = vunpack.c.l.bf16 %v1317
  %v1321 = vunpack.c.h.bf16 %v1317
  %v1354 = vunpack.c.l.b16 %v1283
  %v1355 = vunpack.c.h.b16 %v1283
  %v1356 = vunpack.c.l.b16 %v1284
  %v1357 = vunpack.c.h.b16 %v1284
  %v1358 = vunpack.c.l.b16 %v1285
  %v1359 = vunpack.c.h.b16 %v1285
  %v1360 = vunpack.c.l.b16 %v1286
  %v1361 = vunpack.c.h.b16 %v1286
  %v1362 = vunpack.c.l.b16 %v1287
  %v1363 = vunpack.c.h.b16 %v1287
  %v1364 = vunpack.c.l.b16 %v1288
  %v1365 = vunpack.c.h.b16 %v1288
  %v1366 = vunpack.c.l.b16 %v1289
  %v1367 = vunpack.c.h.b16 %v1289
  %v1368 = vunpack.c.l.b16 %v1290
  %v1369 = vunpack.c.h.b16 %v1290
  %v1370 = vunpack.c.l.b16 %v1291
  %v1371 = vunpack.c.h.b16 %v1291
  %v1372 = vunpack.c.l.b16 %v1292
  %v1373 = vunpack.c.h.b16 %v1292
  %v1374 = vunpack.c.l.b16 %v1293
  %v1375 = vunpack.c.h.b16 %v1293
  %v1376 = vunpack.c.l.b16 %v1294
  %v1377 = vunpack.c.h.b16 %v1294
  %v1378 = vunpack.c.l.b16 %v1295
  %v1379 = vunpack.c.h.b16 %v1295
  %v1380 = vunpack.c.l.b16 %v1296
  %v1381 = vunpack.c.h.b16 %v1296
  %v1382 = vunpack.c.l.b16 %v1297
  %v1383 = vunpack.c.h.b16 %v1297
  %v1384 = vunpack.c.l.b16 %v1298
  %v1385 = vunpack.c.h.b16 %v1298
  %v1386 = vunpack.c.l.b16 %v1299
  %v1387 = vunpack.c.h.b16 %v1299
  %v1388 = vunpack.c.l.b16 %v1300
  %v1389 = vunpack.c.h.b16 %v1300
  %v1390 = vunpack.c.l.b16 %v1301
  %v1391 = vunpack.c.h.b16 %v1301
  %v1392 = vunpack.c.l.b16 %v1302
  %v1393 = vunpack.c.h.b16 %v1302
  %v1394 = vunpack.c.l.b16 %v1303
  %v1395 = vunpack.c.h.b16 %v1303
  %v1396 = vunpack.c.l.b16 %v1304
  %v1397 = vunpack.c.h.b16 %v1304
  %v1398 = vunpack.c.l.b16 %v1305
  %v1399 = vunpack.c.h.b16 %v1305
  %v1400 = vunpack.c.l.b16 %v1306
  %v1401 = vunpack.c.h.b16 %v1306
  %v1402 = vunpack.c.l.b16 %v1307
  %v1403 = vunpack.c.h.b16 %v1307
  %v1404 = vunpack.c.l.b16 %v1308
  %v1405 = vunpack.c.h.b16 %v1308
  %v1406 = vunpack.c.l.b16 %v1309
  %v1407 = vunpack.c.h.b16 %v1309
  %v1408 = vunpack.c.l.b16 %v1310
  %v1409 = vunpack.c.h.b16 %v1310
  %v1410 = vunpack.c.l.b16 %v1311
  %v1411 = vunpack.c.h.b16 %v1311
  %v1412 = vunpack.c.l.b16 %v1312
  %v1413 = vunpack.c.h.b16 %v1312
  %v1414 = vunpack.c.l.b16 %v1313
  %v1415 = vunpack.c.h.b16 %v1313
  %v1416 = vunpack.c.l.b16 %v1314
  %v1417 = vunpack.c.h.b16 %v1314
  %v1418 = vpack.c.b16 %v1358, %v1354
  %v1419 = vpack.c.b16 %v1359, %v1355
  %v1420 = vpack.c.b16 %v1360, %v1356
  %v1421 = vpack.c.b16 %v1361, %v1357
  %v1422 = vpack.c.b16 %v1366, %v1362
  %v1423 = vpack.c.b16 %v1367, %v1363
  %v1424 = vpack.c.b16 %v1368, %v1364
  %v1425 = vpack.c.b16 %v1369, %v1365
  %v1426 = vpack.c.b16 %v1374, %v1370
  %v1427 = vpack.c.b16 %v1375, %v1371
  %v1428 = vpack.c.b16 %v1376, %v1372
  %v1429 = vpack.c.b16 %v1377, %v1373
  %v1430 = vpack.c.b16 %v1382, %v1378
  %v1431 = vpack.c.b16 %v1383, %v1379
  %v1432 = vpack.c.b16 %v1384, %v1380
  %v1433 = vpack.c.b16 %v1385, %v1381
  %v1434 = vpack.c.b16 %v1390, %v1386
  %v1435 = vpack.c.b16 %v1391, %v1387
  %v1436 = vpack.c.b16 %v1392, %v1388
  %v1437 = vpack.c.b16 %v1393, %v1389
  %v1438 = vpack.c.b16 %v1398, %v1394
  %v1439 = vpack.c.b16 %v1399, %v1395
  %v1440 = vpack.c.b16 %v1400, %v1396
  %v1441 = vpack.c.b16 %v1401, %v1397
  %v1442 = vpack.c.b16 %v1406, %v1402
  %v1443 = vpack.c.b16 %v1407, %v1403
  %v1444 = vpack.c.b16 %v1408, %v1404
  %v1445 = vpack.c.b16 %v1409, %v1405
  %v1446 = vpack.c.b16 %v1414, %v1410
  %v1447 = vpack.c.b16 %v1415, %v1411
  %v1448 = vpack.c.b16 %v1416, %v1412
  %v1449 = vpack.c.b16 %v1417, %v1413
  %1482 = vmatprep.subr.bf16.mxu0 %v1419
  %1483 = vmatpush1.bf16.msra.mxu0 %v1418
  %1484 = vmatprep.subr.bf16.mxu0 %v1423
  %1485 = vmatpush1.bf16.msra.mxu0 %v1422
  %1486 = vmatprep.subr.bf16.mxu0 %v1427
  %1487 = vmatpush1.bf16.msra.mxu0 %v1426
  %1488 = vmatprep.subr.bf16.mxu0 %v1431
  %1489 = vmatpush1.bf16.msra.mxu0 %v1430
  %1490 = vmatprep.subr.bf16.mxu0 %v1435
  %1491 = vmatpush1.bf16.msra.mxu0 %v1434
  %1492 = vmatprep.subr.bf16.mxu0 %v1439
  %1493 = vmatpush1.bf16.msra.mxu0 %v1438
  %1494 = vmatprep.subr.bf16.mxu0 %v1443
  %1495 = vmatpush1.bf16.msra.mxu0 %v1442
  %1496 = vmatprep.subr.bf16.mxu0 %v1447
  %1497 = vmatpush1.bf16.msra.mxu0 %v1446
  %1498 = vmatprep.subr.bf16.mxu0 0
  %1499 = vmatpush1.bf16.msra.mxu0 0
  %1500 = vmatprep.subr.bf16.mxu0 0
  %1501 = vmatpush1.bf16.msra.mxu0 0
  %1502 = vmatprep.subr.bf16.mxu0 0
  %1503 = vmatpush1.bf16.msra.mxu0 0
  %1504 = vmatprep.subr.bf16.mxu0 0
  %1505 = vmatpush1.bf16.msra.mxu0 0
  %1506 = vmatprep.subr.bf16.mxu0 0
  %1507 = vmatpush1.bf16.msra.mxu0 0
  %1508 = vmatprep.subr.bf16.mxu0 0
  %1509 = vmatpush1.bf16.msra.mxu0 0
  %1510 = vmatprep.subr.bf16.mxu0 0
  %1511 = vmatpush1.bf16.msra.mxu0 0
  %1512 = vmatprep.subr.bf16.mxu0 0
  %1513 = vmatpush1.bf16.msra.mxu0 0
  %1514 = vmatprep.mubr.bf16.mxu0 0
  %1515 = vmatmul.mubr.bf16.gmra.mrb[0].mxu0 %v1282
  %v1516 = vpop.f32.mrb[0].mxu0
  %v1517 = vadd.f32 %v1318, %v1516
  %v1518 = vpop.f32.mrb[0].mxu0
  %v1519 = vadd.f32 %v1319, %v1518
  %v1520 = vpop.f32.mrb[0].mxu0
  %v1521 = vpop.f32.mrb[0].mxu0
  %1522 = vdwg.mxu0
  %1523 = vmatprep.subr.bf16.mxu0 %v1421
  %1524 = vmatpush1.bf16.msra.mxu0 %v1420
  %1525 = vmatprep.subr.bf16.mxu0 %v1425
  %1526 = vmatpush1.bf16.msra.mxu0 %v1424
  %1527 = vmatprep.subr.bf16.mxu0 %v1429
  %1528 = vmatpush1.bf16.msra.mxu0 %v1428
  %1529 = vmatprep.subr.bf16.mxu0 %v1433
  %1530 = vmatpush1.bf16.msra.mxu0 %v1432
  %1531 = vmatprep.subr.bf16.mxu0 %v1437
  %1532 = vmatpush1.bf16.msra.mxu0 %v1436
  %1533 = vmatprep.subr.bf16.mxu0 %v1441
  %1534 = vmatpush1.bf16.msra.mxu0 %v1440
  %1535 = vmatprep.subr.bf16.mxu0 %v1445
  %1536 = vmatpush1.bf16.msra.mxu0 %v1444
  %1537 = vmatprep.subr.bf16.mxu0 %v1449
  %1538 = vmatpush1.bf16.msra.mxu0 %v1448
  %1539 = vmatprep.subr.bf16.mxu0 0
  %1540 = vmatpush1.bf16.msra.mxu0 0
  %1541 = vmatprep.subr.bf16.mxu0 0
  %1542 = vmatpush1.bf16.msra.mxu0 0
  %1543 = vmatprep.subr.bf16.mxu0 0
  %1544 = vmatpush1.bf16.msra.mxu0 0
  %1545 = vmatprep.subr.bf16.mxu0 0
  %1546 = vmatpush1.bf16.msra.mxu0 0
  %1547 = vmatprep.subr.bf16.mxu0 0
  %1548 = vmatpush1.bf16.msra.mxu0 0
  %1549 = vmatprep.subr.bf16.mxu0 0
  %1550 = vmatpush1.bf16.msra.mxu0 0
  %1551 = vmatprep.subr.bf16.mxu0 0
  %1552 = vmatpush1.bf16.msra.mxu0 0
  %1553 = vmatprep.subr.bf16.mxu0 0
  %1554 = vmatpush1.bf16.msra.mxu0 0
  %1555 = vmatprep.mubr.bf16.mxu0 0
  %1556 = vmatmul.mubr.bf16.gmra.mrb[0].mxu0 %v1282
  %v1557 = vpop.f32.mrb[0].mxu0
  %v1558 = vadd.f32 %v1320, %v1557
  %v1559 = vpop.f32.mrb[0].mxu0
  %v1560 = vadd.f32 %v1321, %v1559
  %v1561 = vpop.f32.mrb[0].mxu0
  %v1562 = vpop.f32.mrb[0].mxu0
  %1563 = vdwg.mxu0
  %v1564 = vxor.u32 %v1517, 2147483648
  %v1565 = vmul.f32 %v1564, 1.442695
  %v1566 = vpow.pop %v1565
  %v1567 = vadd.f32 %v1566, 1.0
  %v1568 = vrcp.pop %v1567
  %v1569 = vmul.f32 1.0, %v1568
  %v1570 = vxor.u32 %v1519, 2147483648
  %v1571 = vmul.f32 %v1570, 1.442695
  %v1572 = vpow.pop %v1571
  %v1573 = vadd.f32 %v1572, 1.0
  %v1574 = vrcp.pop %v1573
  %v1575 = vmul.f32 1.0, %v1574
  %v1576 = vtanh.pop %v1558
  %v1577 = vxor.u32 %v1560, 2147483648
  %v1578 = vmul.f32 %v1577, 1.442695
  %v1579 = vpow.pop %v1578
  %v1580 = vadd.f32 %v1579, 1.0
  %v1581 = vrcp.pop %v1580
  %v1582 = vmul.f32 1.0, %v1581
  %v1583 = vld [vmem:[#allocation3] sm:$0xff]
  %v1584 = vmul.f32 %v1575, %v1583
  %v1585 = vmul.f32 %v1569, %v1576
  %v1586 = vadd.f32 %v1584, %v1585
  %v1587 = vtanh.pop %v1586
  %v1588 = vmul.f32 %v1582, %v1587
  %1589 = vst [vmem:[#allocation3] sm:$0xff] %v1586
  %1590 = vst [vmem:[#allocation2] sm:$0xff] %v1588
  %v1591 = vpack.c.bf16 %v1588, %v1588
  %1592 = vst [vmem:[#allocation4] sm:$0xf] %v1591
  %s1593 = scalar_lea.vmem %s4, 16
  %1594 = vst [vmem:[%s1593] sm:$0xf] %v1591
  %v1595 = vld [vmem:[#allocation4] sm:$0xf]
  %v1596 = vld [vmem:[%s1] sm:$0xff]
  %v1597 = vld [vmem:[%s1 + $0x8] sm:$0xff]
  %v1598 = vld [vmem:[%s1 + $0x10] sm:$0xff]
  %v1599 = vld [vmem:[%s1 + $0x18] sm:$0xff]
  %v1600 = vld [vmem:[%s1 + $0x20] sm:$0xff]
  %v1601 = vld [vmem:[%s1 + $0x28] sm:$0xff]
  %v1602 = vld [vmem:[%s1 + $0x30] sm:$0xff]
  %v1603 = vld [vmem:[%s1 + $0x38] sm:$0xff]
  %v1604 = vld [vmem:[%s1 + $0x40] sm:$0xff]
  %v1605 = vld [vmem:[%s1 + $0x48] sm:$0xff]
  %v1606 = vld [vmem:[%s1 + $0x50] sm:$0xff]
  %v1607 = vld [vmem:[%s1 + $0x58] sm:$0xff]
  %v1608 = vld [vmem:[%s1 + $0x60] sm:$0xff]
  %v1609 = vld [vmem:[%s1 + $0x68] sm:$0xff]
  %v1610 = vld [vmem:[%s1 + $0x70] sm:$0xff]
  %v1611 = vld [vmem:[%s1 + $0x78] sm:$0xff]
  %v1612 = vld [vmem:[%s1 + $0x80] sm:$0xff]
  %v1613 = vld [vmem:[%s1 + $0x88] sm:$0xff]
  %v1614 = vld [vmem:[%s1 + $0x90] sm:$0xff]
  %v1615 = vld [vmem:[%s1 + $0x98] sm:$0xff]
  %v1616 = vld [vmem:[%s1 + $0xa0] sm:$0xff]
  %v1617 = vld [vmem:[%s1 + $0xa8] sm:$0xff]
  %v1618 = vld [vmem:[%s1 + $0xb0] sm:$0xff]
  %v1619 = vld [vmem:[%s1 + $0xb8] sm:$0xff]
  %v1620 = vld [vmem:[%s1 + $0xc0] sm:$0xff]
  %v1621 = vld [vmem:[%s1 + $0xc8] sm:$0xff]
  %v1622 = vld [vmem:[%s1 + $0xd0] sm:$0xff]
  %v1623 = vld [vmem:[%s1 + $0xd8] sm:$0xff]
  %v1624 = vld [vmem:[%s1 + $0xe0] sm:$0xff]
  %v1625 = vld [vmem:[%s1 + $0xe8] sm:$0xff]
  %v1626 = vld [vmem:[%s1 + $0xf0] sm:$0xff]
  %v1627 = vld [vmem:[%s1 + $0xf8] sm:$0xff]
  %s1628 = scalar_lea.vmem %s0, 80
  %v1629 = vld [vmem:[%s1628] sm:$0xff]
  %v1630 = vld [vmem:[%s1628 + $0x8] sm:$0xff]
  %v1631 = vunpack.c.l.bf16 %v1629
  %v1632 = vunpack.c.h.bf16 %v1629
  %v1633 = vunpack.c.l.bf16 %v1630
  %v1634 = vunpack.c.h.bf16 %v1630
  %v1667 = vunpack.c.l.b16 %v1596
  %v1668 = vunpack.c.h.b16 %v1596
  %v1669 = vunpack.c.l.b16 %v1597
  %v1670 = vunpack.c.h.b16 %v1597
  %v1671 = vunpack.c.l.b16 %v1598
  %v1672 = vunpack.c.h.b16 %v1598
  %v1673 = vunpack.c.l.b16 %v1599
  %v1674 = vunpack.c.h.b16 %v1599
  %v1675 = vunpack.c.l.b16 %v1600
  %v1676 = vunpack.c.h.b16 %v1600
  %v1677 = vunpack.c.l.b16 %v1601
  %v1678 = vunpack.c.h.b16 %v1601
  %v1679 = vunpack.c.l.b16 %v1602
  %v1680 = vunpack.c.h.b16 %v1602
  %v1681 = vunpack.c.l.b16 %v1603
  %v1682 = vunpack.c.h.b16 %v1603
  %v1683 = vunpack.c.l.b16 %v1604
  %v1684 = vunpack.c.h.b16 %v1604
  %v1685 = vunpack.c.l.b16 %v1605
  %v1686 = vunpack.c.h.b16 %v1605
  %v1687 = vunpack.c.l.b16 %v1606
  %v1688 = vunpack.c.h.b16 %v1606
  %v1689 = vunpack.c.l.b16 %v1607
  %v1690 = vunpack.c.h.b16 %v1607
  %v1691 = vunpack.c.l.b16 %v1608
  %v1692 = vunpack.c.h.b16 %v1608
  %v1693 = vunpack.c.l.b16 %v1609
  %v1694 = vunpack.c.h.b16 %v1609
  %v1695 = vunpack.c.l.b16 %v1610
  %v1696 = vunpack.c.h.b16 %v1610
  %v1697 = vunpack.c.l.b16 %v1611
  %v1698 = vunpack.c.h.b16 %v1611
  %v1699 = vunpack.c.l.b16 %v1612
  %v1700 = vunpack.c.h.b16 %v1612
  %v1701 = vunpack.c.l.b16 %v1613
  %v1702 = vunpack.c.h.b16 %v1613
  %v1703 = vunpack.c.l.b16 %v1614
  %v1704 = vunpack.c.h.b16 %v1614
  %v1705 = vunpack.c.l.b16 %v1615
  %v1706 = vunpack.c.h.b16 %v1615
  %v1707 = vunpack.c.l.b16 %v1616
  %v1708 = vunpack.c.h.b16 %v1616
  %v1709 = vunpack.c.l.b16 %v1617
  %v1710 = vunpack.c.h.b16 %v1617
  %v1711 = vunpack.c.l.b16 %v1618
  %v1712 = vunpack.c.h.b16 %v1618
  %v1713 = vunpack.c.l.b16 %v1619
  %v1714 = vunpack.c.h.b16 %v1619
  %v1715 = vunpack.c.l.b16 %v1620
  %v1716 = vunpack.c.h.b16 %v1620
  %v1717 = vunpack.c.l.b16 %v1621
  %v1718 = vunpack.c.h.b16 %v1621
  %v1719 = vunpack.c.l.b16 %v1622
  %v1720 = vunpack.c.h.b16 %v1622
  %v1721 = vunpack.c.l.b16 %v1623
  %v1722 = vunpack.c.h.b16 %v1623
  %v1723 = vunpack.c.l.b16 %v1624
  %v1724 = vunpack.c.h.b16 %v1624
  %v1725 = vunpack.c.l.b16 %v1625
  %v1726 = vunpack.c.h.b16 %v1625
  %v1727 = vunpack.c.l.b16 %v1626
  %v1728 = vunpack.c.h.b16 %v1626
  %v1729 = vunpack.c.l.b16 %v1627
  %v1730 = vunpack.c.h.b16 %v1627
  %v1731 = vpack.c.b16 %v1671, %v1667
  %v1732 = vpack.c.b16 %v1672, %v1668
  %v1733 = vpack.c.b16 %v1673, %v1669
  %v1734 = vpack.c.b16 %v1674, %v1670
  %v1735 = vpack.c.b16 %v1679, %v1675
  %v1736 = vpack.c.b16 %v1680, %v1676
  %v1737 = vpack.c.b16 %v1681, %v1677
  %v1738 = vpack.c.b16 %v1682, %v1678
  %v1739 = vpack.c.b16 %v1687, %v1683
  %v1740 = vpack.c.b16 %v1688, %v1684
  %v1741 = vpack.c.b16 %v1689, %v1685
  %v1742 = vpack.c.b16 %v1690, %v1686
  %v1743 = vpack.c.b16 %v1695, %v1691
  %v1744 = vpack.c.b16 %v1696, %v1692
  %v1745 = vpack.c.b16 %v1697, %v1693
  %v1746 = vpack.c.b16 %v1698, %v1694
  %v1747 = vpack.c.b16 %v1703, %v1699
  %v1748 = vpack.c.b16 %v1704, %v1700
  %v1749 = vpack.c.b16 %v1705, %v1701
  %v1750 = vpack.c.b16 %v1706, %v1702
  %v1751 = vpack.c.b16 %v1711, %v1707
  %v1752 = vpack.c.b16 %v1712, %v1708
  %v1753 = vpack.c.b16 %v1713, %v1709
  %v1754 = vpack.c.b16 %v1714, %v1710
  %v1755 = vpack.c.b16 %v1719, %v1715
  %v1756 = vpack.c.b16 %v1720, %v1716
  %v1757 = vpack.c.b16 %v1721, %v1717
  %v1758 = vpack.c.b16 %v1722, %v1718
  %v1759 = vpack.c.b16 %v1727, %v1723
  %v1760 = vpack.c.b16 %v1728, %v1724
  %v1761 = vpack.c.b16 %v1729, %v1725
  %v1762 = vpack.c.b16 %v1730, %v1726
  %1795 = vmatprep.subr.bf16.mxu0 %v1732
  %1796 = vmatpush1.bf16.msra.mxu0 %v1731
  %1797 = vmatprep.subr.bf16.mxu0 %v1736
  %1798 = vmatpush1.bf16.msra.mxu0 %v1735
  %1799 = vmatprep.subr.bf16.mxu0 %v1740
  %1800 = vmatpush1.bf16.msra.mxu0 %v1739
  %1801 = vmatprep.subr.bf16.mxu0 %v1744
  %1802 = vmatpush1.bf16.msra.mxu0 %v1743
  %1803 = vmatprep.subr.bf16.mxu0 %v1748
  %1804 = vmatpush1.bf16.msra.mxu0 %v1747
  %1805 = vmatprep.subr.bf16.mxu0 %v1752
  %1806 = vmatpush1.bf16.msra.mxu0 %v1751
  %1807 = vmatprep.subr.bf16.mxu0 %v1756
  %1808 = vmatpush1.bf16.msra.mxu0 %v1755
  %1809 = vmatprep.subr.bf16.mxu0 %v1760
  %1810 = vmatpush1.bf16.msra.mxu0 %v1759
  %1811 = vmatprep.subr.bf16.mxu0 0
  %1812 = vmatpush1.bf16.msra.mxu0 0
  %1813 = vmatprep.subr.bf16.mxu0 0
  %1814 = vmatpush1.bf16.msra.mxu0 0
  %1815 = vmatprep.subr.bf16.mxu0 0
  %1816 = vmatpush1.bf16.msra.mxu0 0
  %1817 = vmatprep.subr.bf16.mxu0 0
  %1818 = vmatpush1.bf16.msra.mxu0 0
  %1819 = vmatprep.subr.bf16.mxu0 0
  %1820 = vmatpush1.bf16.msra.mxu0 0
  %1821 = vmatprep.subr.bf16.mxu0 0
  %1822 = vmatpush1.bf16.msra.mxu0 0
  %1823 = vmatprep.subr.bf16.mxu0 0
  %1824 = vmatpush1.bf16.msra.mxu0 0
  %1825 = vmatprep.subr.bf16.mxu0 0
  %1826 = vmatpush1.bf16.msra.mxu0 0
  %1827 = vmatprep.mubr.bf16.mxu0 0
  %1828 = vmatmul.mubr.bf16.gmra.mrb[0].mxu0 %v1595
  %v1829 = vpop.f32.mrb[0].mxu0
  %v1830 = vadd.f32 %v1631, %v1829
  %v1831 = vpop.f32.mrb[0].mxu0
  %v1832 = vadd.f32 %v1632, %v1831
  %v1833 = vpop.f32.mrb[0].mxu0
  %v1834 = vpop.f32.mrb[0].mxu0
  %1835 = vdwg.mxu0
  %1836 = vmatprep.subr.bf16.mxu0 %v1734
  %1837 = vmatpush1.bf16.msra.mxu0 %v1733
  %1838 = vmatprep.subr.bf16.mxu0 %v1738
  %1839 = vmatpush1.bf16.msra.mxu0 %v1737
  %1840 = vmatprep.subr.bf16.mxu0 %v1742
  %1841 = vmatpush1.bf16.msra.mxu0 %v1741
  %1842 = vmatprep.subr.bf16.mxu0 %v1746
  %1843 = vmatpush1.bf16.msra.mxu0 %v1745
  %1844 = vmatprep.subr.bf16.mxu0 %v1750
  %1845 = vmatpush1.bf16.msra.mxu0 %v1749
  %1846 = vmatprep.subr.bf16.mxu0 %v1754
  %1847 = vmatpush1.bf16.msra.mxu0 %v1753
  %1848 = vmatprep.subr.bf16.mxu0 %v1758
  %1849 = vmatpush1.bf16.msra.mxu0 %v1757
  %1850 = vmatprep.subr.bf16.mxu0 %v1762
  %1851 = vmatpush1.bf16.msra.mxu0 %v1761
  %1852 = vmatprep.subr.bf16.mxu0 0
  %1853 = vmatpush1.bf16.msra.mxu0 0
  %1854 = vmatprep.subr.bf16.mxu0 0
  %1855 = vmatpush1.bf16.msra.mxu0 0
  %1856 = vmatprep.subr.bf16.mxu0 0
  %1857 = vmatpush1.bf16.msra.mxu0 0
  %1858 = vmatprep.subr.bf16.mxu0 0
  %1859 = vmatpush1.bf16.msra.mxu0 0
  %1860 = vmatprep.subr.bf16.mxu0 0
  %1861 = vmatpush1.bf16.msra.mxu0 0
  %1862 = vmatprep.subr.bf16.mxu0 0
  %1863 = vmatpush1.bf16.msra.mxu0 0
  %1864 = vmatprep.subr.bf16.mxu0 0
  %1865 = vmatpush1.bf16.msra.mxu0 0
  %1866 = vmatprep.subr.bf16.mxu0 0
  %1867 = vmatpush1.bf16.msra.mxu0 0
  %1868 = vmatprep.mubr.bf16.mxu0 0
  %1869 = vmatmul.mubr.bf16.gmra.mrb[0].mxu0 %v1595
  %v1870 = vpop.f32.mrb[0].mxu0
  %v1871 = vadd.f32 %v1633, %v1870
  %v1872 = vpop.f32.mrb[0].mxu0
  %v1873 = vadd.f32 %v1634, %v1872
  %v1874 = vpop.f32.mrb[0].mxu0
  %v1875 = vpop.f32.mrb[0].mxu0
  %1876 = vdwg.mxu0
  %v1877 = vxor.u32 %v1830, 2147483648
  %v1878 = vmul.f32 %v1877, 1.442695
  %v1879 = vpow.pop %v1878
  %v1880 = vadd.f32 %v1879, 1.0
  %v1881 = vrcp.pop %v1880
  %v1882 = vmul.f32 1.0, %v1881
  %v1883 = vxor.u32 %v1832, 2147483648
  %v1884 = vmul.f32 %v1883, 1.442695
  %v1885 = vpow.pop %v1884
  %v1886 = vadd.f32 %v1885, 1.0
  %v1887 = vrcp.pop %v1886
  %v1888 = vmul.f32 1.0, %v1887
  %v1889 = vtanh.pop %v1871
  %v1890 = vxor.u32 %v1873, 2147483648
  %v1891 = vmul.f32 %v1890, 1.442695
  %v1892 = vpow.pop %v1891
  %v1893 = vadd.f32 %v1892, 1.0
  %v1894 = vrcp.pop %v1893
  %v1895 = vmul.f32 1.0, %v1894
  %v1896 = vld [vmem:[#allocation3] sm:$0xff]
  %v1897 = vmul.f32 %v1888, %v1896
  %v1898 = vmul.f32 %v1882, %v1889
  %v1899 = vadd.f32 %v1897, %v1898
  %v1900 = vtanh.pop %v1899
  %v1901 = vmul.f32 %v1895, %v1900
  %1902 = vst [vmem:[#allocation3] sm:$0xff] %v1899
  %1903 = vst [vmem:[#allocation2] sm:$0xff] %v1901
  %v1904 = vpack.c.bf16 %v1901, %v1901
  %1905 = vst [vmem:[#allocation4] sm:$0xf] %v1904
  %s1906 = scalar_lea.vmem %s4, 20
  %1907 = vst [vmem:[%s1906] sm:$0xf] %v1904
  %v1908 = vld [vmem:[#allocation4] sm:$0xf]
  %v1909 = vld [vmem:[%s1] sm:$0xff]
  %v1910 = vld [vmem:[%s1 + $0x8] sm:$0xff]
  %v1911 = vld [vmem:[%s1 + $0x10] sm:$0xff]
  %v1912 = vld [vmem:[%s1 + $0x18] sm:$0xff]
  %v1913 = vld [vmem:[%s1 + $0x20] sm:$0xff]
  %v1914 = vld [vmem:[%s1 + $0x28] sm:$0xff]
  %v1915 = vld [vmem:[%s1 + $0x30] sm:$0xff]
  %v1916 = vld [vmem:[%s1 + $0x38] sm:$0xff]
  %v1917 = vld [vmem:[%s1 + $0x40] sm:$0xff]
  %v1918 = vld [vmem:[%s1 + $0x48] sm:$0xff]
  %v1919 = vld [vmem:[%s1 + $0x50] sm:$0xff]
  %v1920 = vld [vmem:[%s1 + $0x58] sm:$0xff]
  %v1921 = vld [vmem:[%s1 + $0x60] sm:$0xff]
  %v1922 = vld [vmem:[%s1 + $0x68] sm:$0xff]
  %v1923 = vld [vmem:[%s1 + $0x70] sm:$0xff]
  %v1924 = vld [vmem:[%s1 + $0x78] sm:$0xff]
  %v1925 = vld [vmem:[%s1 + $0x80] sm:$0xff]
  %v1926 = vld [vmem:[%s1 + $0x88] sm:$0xff]
  %v1927 = vld [vmem:[%s1 + $0x90] sm:$0xff]
  %v1928 = vld [vmem:[%s1 + $0x98] sm:$0xff]
  %v1929 = vld [vmem:[%s1 + $0xa0] sm:$0xff]
  %v1930 = vld [vmem:[%s1 + $0xa8] sm:$0xff]
  %v1931 = vld [vmem:[%s1 + $0xb0] sm:$0xff]
  %v1932 = vld [vmem:[%s1 + $0xb8] sm:$0xff]
  %v1933 = vld [vmem:[%s1 + $0xc0] sm:$0xff]
  %v1934 = vld [vmem:[%s1 + $0xc8] sm:$0xff]
  %v1935 = vld [vmem:[%s1 + $0xd0] sm:$0xff]
  %v1936 = vld [vmem:[%s1 + $0xd8] sm:$0xff]
  %v1937 = vld [vmem:[%s1 + $0xe0] sm:$0xff]
  %v1938 = vld [vmem:[%s1 + $0xe8] sm:$0xff]
  %v1939 = vld [vmem:[%s1 + $0xf0] sm:$0xff]
  %v1940 = vld [vmem:[%s1 + $0xf8] sm:$0xff]
  %s1941 = scalar_lea.vmem %s0, 96
  %v1942 = vld [vmem:[%s1941] sm:$0xff]
  %v1943 = vld [vmem:[%s1941 + $0x8] sm:$0xff]
  %v1944 = vunpack.c.l.bf16 %v1942
  %v1945 = vunpack.c.h.bf16 %v1942
  %v1946 = vunpack.c.l.bf16 %v1943
  %v1947 = vunpack.c.h.bf16 %v1943
  %v1980 = vunpack.c.l.b16 %v1909
  %v1981 = vunpack.c.h.b16 %v1909
  %v1982 = vunpack.c.l.b16 %v1910
  %v1983 = vunpack.c.h.b16 %v1910
  %v1984 = vunpack.c.l.b16 %v1911
  %v1985 = vunpack.c.h.b16 %v1911
  %v1986 = vunpack.c.l.b16 %v1912
  %v1987 = vunpack.c.h.b16 %v1912
  %v1988 = vunpack.c.l.b16 %v1913
  %v1989 = vunpack.c.h.b16 %v1913
  %v1990 = vunpack.c.l.b16 %v1914
  %v1991 = vunpack.c.h.b16 %v1914
  %v1992 = vunpack.c.l.b16 %v1915
  %v1993 = vunpack.c.h.b16 %v1915
  %v1994 = vunpack.c.l.b16 %v1916
  %v1995 = vunpack.c.h.b16 %v1916
  %v1996 = vunpack.c.l.b16 %v1917
  %v1997 = vunpack.c.h.b16 %v1917
  %v1998 = vunpack.c.l.b16 %v1918
  %v1999 = vunpack.c.h.b16 %v1918
  %v2000 = vunpack.c.l.b16 %v1919
  %v2001 = vunpack.c.h.b16 %v1919
  %v2002 = vunpack.c.l.b16 %v1920
  %v2003 = vunpack.c.h.b16 %v1920
  %v2004 = vunpack.c.l.b16 %v1921
  %v2005 = vunpack.c.h.b16 %v1921
  %v2006 = vunpack.c.l.b16 %v1922
  %v2007 = vunpack.c.h.b16 %v1922
  %v2008 = vunpack.c.l.b16 %v1923
  %v2009 = vunpack.c.h.b16 %v1923
  %v2010 = vunpack.c.l.b16 %v1924
  %v2011 = vunpack.c.h.b16 %v1924
  %v2012 = vunpack.c.l.b16 %v1925
  %v2013 = vunpack.c.h.b16 %v1925
  %v2014 = vunpack.c.l.b16 %v1926
  %v2015 = vunpack.c.h.b16 %v1926
  %v2016 = vunpack.c.l.b16 %v1927
  %v2017 = vunpack.c.h.b16 %v1927
  %v2018 = vunpack.c.l.b16 %v1928
  %v2019 = vunpack.c.h.b16 %v1928
  %v2020 = vunpack.c.l.b16 %v1929
  %v2021 = vunpack.c.h.b16 %v1929
  %v2022 = vunpack.c.l.b16 %v1930
  %v2023 = vunpack.c.h.b16 %v1930
  %v2024 = vunpack.c.l.b16 %v1931
  %v2025 = vunpack.c.h.b16 %v1931
  %v2026 = vunpack.c.l.b16 %v1932
  %v2027 = vunpack.c.h.b16 %v1932
  %v2028 = vunpack.c.l.b16 %v1933
  %v2029 = vunpack.c.h.b16 %v1933
  %v2030 = vunpack.c.l.b16 %v1934
  %v2031 = vunpack.c.h.b16 %v1934
  %v2032 = vunpack.c.l.b16 %v1935
  %v2033 = vunpack.c.h.b16 %v1935
  %v2034 = vunpack.c.l.b16 %v1936
  %v2035 = vunpack.c.h.b16 %v1936
  %v2036 = vunpack.c.l.b16 %v1937
  %v2037 = vunpack.c.h.b16 %v1937
  %v2038 = vunpack.c.l.b16 %v1938
  %v2039 = vunpack.c.h.b16 %v1938
  %v2040 = vunpack.c.l.b16 %v1939
  %v2041 = vunpack.c.h.b16 %v1939
  %v2042 = vunpack.c.l.b16 %v1940
  %v2043 = vunpack.c.h.b16 %v1940
  %v2044 = vpack.c.b16 %v1984, %v1980
  %v2045 = vpack.c.b16 %v1985, %v1981
  %v2046 = vpack.c.b16 %v1986, %v1982
  %v2047 = vpack.c.b16 %v1987, %v1983
  %v2048 = vpack.c.b16 %v1992, %v1988
  %v2049 = vpack.c.b16 %v1993, %v1989
  %v2050 = vpack.c.b16 %v1994, %v1990
  %v2051 = vpack.c.b16 %v1995, %v1991
  %v2052 = vpack.c.b16 %v2000, %v1996
  %v2053 = vpack.c.b16 %v2001, %v1997
  %v2054 = vpack.c.b16 %v2002, %v1998
  %v2055 = vpack.c.b16 %v2003, %v1999
  %v2056 = vpack.c.b16 %v2008, %v2004
  %v2057 = vpack.c.b16 %v2009, %v2005
  %v2058 = vpack.c.b16 %v2010, %v2006
  %v2059 = vpack.c.b16 %v2011, %v2007
  %v2060 = vpack.c.b16 %v2016, %v2012
  %v2061 = vpack.c.b16 %v2017, %v2013
  %v2062 = vpack.c.b16 %v2018, %v2014
  %v2063 = vpack.c.b16 %v2019, %v2015
  %v2064 = vpack.c.b16 %v2024, %v2020
  %v2065 = vpack.c.b16 %v2025, %v2021
  %v2066 = vpack.c.b16 %v2026, %v2022
  %v2067 = vpack.c.b16 %v2027, %v2023
  %v2068 = vpack.c.b16 %v2032, %v2028
  %v2069 = vpack.c.b16 %v2033, %v2029
  %v2070 = vpack.c.b16 %v2034, %v2030
  %v2071 = vpack.c.b16 %v2035, %v2031
  %v2072 = vpack.c.b16 %v2040, %v2036
  %v2073 = vpack.c.b16 %v2041, %v2037
  %v2074 = vpack.c.b16 %v2042, %v2038
  %v2075 = vpack.c.b16 %v2043, %v2039
  %2108 = vmatprep.subr.bf16.mxu0 %v2045
  %2109 = vmatpush1.bf16.msra.mxu0 %v2044
  %2110 = vmatprep.subr.bf16.mxu0 %v2049
  %2111 = vmatpush1.bf16.msra.mxu0 %v2048
  %2112 = vmatprep.subr.bf16.mxu0 %v2053
  %2113 = vmatpush1.bf16.msra.mxu0 %v2052
  %2114 = vmatprep.subr.bf16.mxu0 %v2057
  %2115 = vmatpush1.bf16.msra.mxu0 %v2056
  %2116 = vmatprep.subr.bf16.mxu0 %v2061
  %2117 = vmatpush1.bf16.msra.mxu0 %v2060
  %2118 = vmatprep.subr.bf16.mxu0 %v2065
  %2119 = vmatpush1.bf16.msra.mxu0 %v2064
  %2120 = vmatprep.subr.bf16.mxu0 %v2069
  %2121 = vmatpush1.bf16.msra.mxu0 %v2068
  %2122 = vmatprep.subr.bf16.mxu0 %v2073
  %2123 = vmatpush1.bf16.msra.mxu0 %v2072
  %2124 = vmatprep.subr.bf16.mxu0 0
  %2125 = vmatpush1.bf16.msra.mxu0 0
  %2126 = vmatprep.subr.bf16.mxu0 0
  %2127 = vmatpush1.bf16.msra.mxu0 0
  %2128 = vmatprep.subr.bf16.mxu0 0
  %2129 = vmatpush1.bf16.msra.mxu0 0
  %2130 = vmatprep.subr.bf16.mxu0 0
  %2131 = vmatpush1.bf16.msra.mxu0 0
  %2132 = vmatprep.subr.bf16.mxu0 0
  %2133 = vmatpush1.bf16.msra.mxu0 0
  %2134 = vmatprep.subr.bf16.mxu0 0
  %2135 = vmatpush1.bf16.msra.mxu0 0
  %2136 = vmatprep.subr.bf16.mxu0 0
  %2137 = vmatpush1.bf16.msra.mxu0 0
  %2138 = vmatprep.subr.bf16.mxu0 0
  %2139 = vmatpush1.bf16.msra.mxu0 0
  %2140 = vmatprep.mubr.bf16.mxu0 0
  %2141 = vmatmul.mubr.bf16.gmra.mrb[0].mxu0 %v1908
  %v2142 = vpop.f32.mrb[0].mxu0
  %v2143 = vadd.f32 %v1944, %v2142
  %v2144 = vpop.f32.mrb[0].mxu0
  %v2145 = vadd.f32 %v1945, %v2144
  %v2146 = vpop.f32.mrb[0].mxu0
  %v2147 = vpop.f32.mrb[0].mxu0
  %2148 = vdwg.mxu0
  %2149 = vmatprep.subr.bf16.mxu0 %v2047
  %2150 = vmatpush1.bf16.msra.mxu0 %v2046
  %2151 = vmatprep.subr.bf16.mxu0 %v2051
  %2152 = vmatpush1.bf16.msra.mxu0 %v2050
  %2153 = vmatprep.subr.bf16.mxu0 %v2055
  %2154 = vmatpush1.bf16.msra.mxu0 %v2054
  %2155 = vmatprep.subr.bf16.mxu0 %v2059
  %2156 = vmatpush1.bf16.msra.mxu0 %v2058
  %2157 = vmatprep.subr.bf16.mxu0 %v2063
  %2158 = vmatpush1.bf16.msra.mxu0 %v2062
  %2159 = vmatprep.subr.bf16.mxu0 %v2067
  %2160 = vmatpush1.bf16.msra.mxu0 %v2066
  %2161 = vmatprep.subr.bf16.mxu0 %v2071
  %2162 = vmatpush1.bf16.msra.mxu0 %v2070
  %2163 = vmatprep.subr.bf16.mxu0 %v2075
  %2164 = vmatpush1.bf16.msra.mxu0 %v2074
  %2165 = vmatprep.subr.bf16.mxu0 0
  %2166 = vmatpush1.bf16.msra.mxu0 0
  %2167 = vmatprep.subr.bf16.mxu0 0
  %2168 = vmatpush1.bf16.msra.mxu0 0
  %2169 = vmatprep.subr.bf16.mxu0 0
  %2170 = vmatpush1.bf16.msra.mxu0 0
  %2171 = vmatprep.subr.bf16.mxu0 0
  %2172 = vmatpush1.bf16.msra.mxu0 0
  %2173 = vmatprep.subr.bf16.mxu0 0
  %2174 = vmatpush1.bf16.msra.mxu0 0
  %2175 = vmatprep.subr.bf16.mxu0 0
  %2176 = vmatpush1.bf16.msra.mxu0 0
  %2177 = vmatprep.subr.bf16.mxu0 0
  %2178 = vmatpush1.bf16.msra.mxu0 0
  %2179 = vmatprep.subr.bf16.mxu0 0
  %2180 = vmatpush1.bf16.msra.mxu0 0
  %2181 = vmatprep.mubr.bf16.mxu0 0
  %2182 = vmatmul.mubr.bf16.gmra.mrb[0].mxu0 %v1908
  %v2183 = vpop.f32.mrb[0].mxu0
  %v2184 = vadd.f32 %v1946, %v2183
  %v2185 = vpop.f32.mrb[0].mxu0
  %v2186 = vadd.f32 %v1947, %v2185
  %v2187 = vpop.f32.mrb[0].mxu0
  %v2188 = vpop.f32.mrb[0].mxu0
  %2189 = vdwg.mxu0
  %v2190 = vxor.u32 %v2143, 2147483648
  %v2191 = vmul.f32 %v2190, 1.442695
  %v2192 = vpow.pop %v2191
  %v2193 = vadd.f32 %v2192, 1.0
  %v2194 = vrcp.pop %v2193
  %v2195 = vmul.f32 1.0, %v2194
  %v2196 = vxor.u32 %v2145, 2147483648
  %v2197 = vmul.f32 %v2196, 1.442695
  %v2198 = vpow.pop %v2197
  %v2199 = vadd.f32 %v2198, 1.0
  %v2200 = vrcp.pop %v2199
  %v2201 = vmul.f32 1.0, %v2200
  %v2202 = vtanh.pop %v2184
  %v2203 = vxor.u32 %v2186, 2147483648
  %v2204 = vmul.f32 %v2203, 1.442695
  %v2205 = vpow.pop %v2204
  %v2206 = vadd.f32 %v2205, 1.0
  %v2207 = vrcp.pop %v2206
  %v2208 = vmul.f32 1.0, %v2207
  %v2209 = vld [vmem:[#allocation3] sm:$0xff]
  %v2210 = vmul.f32 %v2201, %v2209
  %v2211 = vmul.f32 %v2195, %v2202
  %v2212 = vadd.f32 %v2210, %v2211
  %v2213 = vtanh.pop %v2212
  %v2214 = vmul.f32 %v2208, %v2213
  %2215 = vst [vmem:[#allocation3] sm:$0xff] %v2212
  %2216 = vst [vmem:[#allocation2] sm:$0xff] %v2214
  %v2217 = vpack.c.bf16 %v2214, %v2214
  %2218 = vst [vmem:[#allocation4] sm:$0xf] %v2217
  %s2219 = scalar_lea.vmem %s4, 24
  %2220 = vst [vmem:[%s2219] sm:$0xf] %v2217
  %v2221 = vld [vmem:[#allocation4] sm:$0xf]
  %v2222 = vld [vmem:[%s1] sm:$0xff]
  %v2223 = vld [vmem:[%s1 + $0x8] sm:$0xff]
  %v2224 = vld [vmem:[%s1 + $0x10] sm:$0xff]
  %v2225 = vld [vmem:[%s1 + $0x18] sm:$0xff]
  %v2226 = vld [vmem:[%s1 + $0x20] sm:$0xff]
  %v2227 = vld [vmem:[%s1 + $0x28] sm:$0xff]
  %v2228 = vld [vmem:[%s1 + $0x30] sm:$0xff]
  %v2229 = vld [vmem:[%s1 + $0x38] sm:$0xff]
  %v2230 = vld [vmem:[%s1 + $0x40] sm:$0xff]
  %v2231 = vld [vmem:[%s1 + $0x48] sm:$0xff]
  %v2232 = vld [vmem:[%s1 + $0x50] sm:$0xff]
  %v2233 = vld [vmem:[%s1 + $0x58] sm:$0xff]
  %v2234 = vld [vmem:[%s1 + $0x60] sm:$0xff]
  %v2235 = vld [vmem:[%s1 + $0x68] sm:$0xff]
  %v2236 = vld [vmem:[%s1 + $0x70] sm:$0xff]
  %v2237 = vld [vmem:[%s1 + $0x78] sm:$0xff]
  %v2238 = vld [vmem:[%s1 + $0x80] sm:$0xff]
  %v2239 = vld [vmem:[%s1 + $0x88] sm:$0xff]
  %v2240 = vld [vmem:[%s1 + $0x90] sm:$0xff]
  %v2241 = vld [vmem:[%s1 + $0x98] sm:$0xff]
  %v2242 = vld [vmem:[%s1 + $0xa0] sm:$0xff]
  %v2243 = vld [vmem:[%s1 + $0xa8] sm:$0xff]
  %v2244 = vld [vmem:[%s1 + $0xb0] sm:$0xff]
  %v2245 = vld [vmem:[%s1 + $0xb8] sm:$0xff]
  %v2246 = vld [vmem:[%s1 + $0xc0] sm:$0xff]
  %v2247 = vld [vmem:[%s1 + $0xc8] sm:$0xff]
  %v2248 = vld [vmem:[%s1 + $0xd0] sm:$0xff]
  %v2249 = vld [vmem:[%s1 + $0xd8] sm:$0xff]
  %v2250 = vld [vmem:[%s1 + $0xe0] sm:$0xff]
  %v2251 = vld [vmem:[%s1 + $0xe8] sm:$0xff]
  %v2252 = vld [vmem:[%s1 + $0xf0] sm:$0xff]
  %v2253 = vld [vmem:[%s1 + $0xf8] sm:$0xff]
  %s2254 = scalar_lea.vmem %s0, 112
  %v2255 = vld [vmem:[%s2254] sm:$0xff]
  %v2256 = vld [vmem:[%s2254 + $0x8] sm:$0xff]
  %v2257 = vunpack.c.l.bf16 %v2255
  %v2258 = vunpack.c.h.bf16 %v2255
  %v2259 = vunpack.c.l.bf16 %v2256
  %v2260 = vunpack.c.h.bf16 %v2256
  %v2293 = vunpack.c.l.b16 %v2222
  %v2294 = vunpack.c.h.b16 %v2222
  %v2295 = vunpack.c.l.b16 %v2223
  %v2296 = vunpack.c.h.b16 %v2223
  %v2297 = vunpack.c.l.b16 %v2224
  %v2298 = vunpack.c.h.b16 %v2224
  %v2299 = vunpack.c.l.b16 %v2225
  %v2300 = vunpack.c.h.b16 %v2225
  %v2301 = vunpack.c.l.b16 %v2226
  %v2302 = vunpack.c.h.b16 %v2226
  %v2303 = vunpack.c.l.b16 %v2227
  %v2304 = vunpack.c.h.b16 %v2227
  %v2305 = vunpack.c.l.b16 %v2228
  %v2306 = vunpack.c.h.b16 %v2228
  %v2307 = vunpack.c.l.b16 %v2229
  %v2308 = vunpack.c.h.b16 %v2229
  %v2309 = vunpack.c.l.b16 %v2230
  %v2310 = vunpack.c.h.b16 %v2230
  %v2311 = vunpack.c.l.b16 %v2231
  %v2312 = vunpack.c.h.b16 %v2231
  %v2313 = vunpack.c.l.b16 %v2232
  %v2314 = vunpack.c.h.b16 %v2232
  %v2315 = vunpack.c.l.b16 %v2233
  %v2316 = vunpack.c.h.b16 %v2233
  %v2317 = vunpack.c.l.b16 %v2234
  %v2318 = vunpack.c.h.b16 %v2234
  %v2319 = vunpack.c.l.b16 %v2235
  %v2320 = vunpack.c.h.b16 %v2235
  %v2321 = vunpack.c.l.b16 %v2236
  %v2322 = vunpack.c.h.b16 %v2236
  %v2323 = vunpack.c.l.b16 %v2237
  %v2324 = vunpack.c.h.b16 %v2237
  %v2325 = vunpack.c.l.b16 %v2238
  %v2326 = vunpack.c.h.b16 %v2238
  %v2327 = vunpack.c.l.b16 %v2239
  %v2328 = vunpack.c.h.b16 %v2239
  %v2329 = vunpack.c.l.b16 %v2240
  %v2330 = vunpack.c.h.b16 %v2240
  %v2331 = vunpack.c.l.b16 %v2241
  %v2332 = vunpack.c.h.b16 %v2241
  %v2333 = vunpack.c.l.b16 %v2242
  %v2334 = vunpack.c.h.b16 %v2242
  %v2335 = vunpack.c.l.b16 %v2243
  %v2336 = vunpack.c.h.b16 %v2243
  %v2337 = vunpack.c.l.b16 %v2244
  %v2338 = vunpack.c.h.b16 %v2244
  %v2339 = vunpack.c.l.b16 %v2245
  %v2340 = vunpack.c.h.b16 %v2245
  %v2341 = vunpack.c.l.b16 %v2246
  %v2342 = vunpack.c.h.b16 %v2246
  %v2343 = vunpack.c.l.b16 %v2247
  %v2344 = vunpack.c.h.b16 %v2247
  %v2345 = vunpack.c.l.b16 %v2248
  %v2346 = vunpack.c.h.b16 %v2248
  %v2347 = vunpack.c.l.b16 %v2249
  %v2348 = vunpack.c.h.b16 %v2249
  %v2349 = vunpack.c.l.b16 %v2250
  %v2350 = vunpack.c.h.b16 %v2250
  %v2351 = vunpack.c.l.b16 %v2251
  %v2352 = vunpack.c.h.b16 %v2251
  %v2353 = vunpack.c.l.b16 %v2252
  %v2354 = vunpack.c.h.b16 %v2252
  %v2355 = vunpack.c.l.b16 %v2253
  %v2356 = vunpack.c.h.b16 %v2253
  %v2357 = vpack.c.b16 %v2297, %v2293
  %v2358 = vpack.c.b16 %v2298, %v2294
  %v2359 = vpack.c.b16 %v2299, %v2295
  %v2360 = vpack.c.b16 %v2300, %v2296
  %v2361 = vpack.c.b16 %v2305, %v2301
  %v2362 = vpack.c.b16 %v2306, %v2302
  %v2363 = vpack.c.b16 %v2307, %v2303
  %v2364 = vpack.c.b16 %v2308, %v2304
  %v2365 = vpack.c.b16 %v2313, %v2309
  %v2366 = vpack.c.b16 %v2314, %v2310
  %v2367 = vpack.c.b16 %v2315, %v2311
  %v2368 = vpack.c.b16 %v2316, %v2312
  %v2369 = vpack.c.b16 %v2321, %v2317
  %v2370 = vpack.c.b16 %v2322, %v2318
  %v2371 = vpack.c.b16 %v2323, %v2319
  %v2372 = vpack.c.b16 %v2324, %v2320
  %v2373 = vpack.c.b16 %v2329, %v2325
  %v2374 = vpack.c.b16 %v2330, %v2326
  %v2375 = vpack.c.b16 %v2331, %v2327
  %v2376 = vpack.c.b16 %v2332, %v2328
  %v2377 = vpack.c.b16 %v2337, %v2333
  %v2378 = vpack.c.b16 %v2338, %v2334
  %v2379 = vpack.c.b16 %v2339, %v2335
  %v2380 = vpack.c.b16 %v2340, %v2336
  %v2381 = vpack.c.b16 %v2345, %v2341
  %v2382 = vpack.c.b16 %v2346, %v2342
  %v2383 = vpack.c.b16 %v2347, %v2343
  %v2384 = vpack.c.b16 %v2348, %v2344
  %v2385 = vpack.c.b16 %v2353, %v2349
  %v2386 = vpack.c.b16 %v2354, %v2350
  %v2387 = vpack.c.b16 %v2355, %v2351
  %v2388 = vpack.c.b16 %v2356, %v2352
  %2421 = vmatprep.subr.bf16.mxu0 %v2358
  %2422 = vmatpush1.bf16.msra.mxu0 %v2357
  %2423 = vmatprep.subr.bf16.mxu0 %v2362
  %2424 = vmatpush1.bf16.msra.mxu0 %v2361
  %2425 = vmatprep.subr.bf16.mxu0 %v2366
  %2426 = vmatpush1.bf16.msra.mxu0 %v2365
  %2427 = vmatprep.subr.bf16.mxu0 %v2370
  %2428 = vmatpush1.bf16.msra.mxu0 %v2369
  %2429 = vmatprep.subr.bf16.mxu0 %v2374
  %2430 = vmatpush1.bf16.msra.mxu0 %v2373
  %2431 = vmatprep.subr.bf16.mxu0 %v2378
  %2432 = vmatpush1.bf16.msra.mxu0 %v2377
  %2433 = vmatprep.subr.bf16.mxu0 %v2382
  %2434 = vmatpush1.bf16.msra.mxu0 %v2381
  %2435 = vmatprep.subr.bf16.mxu0 %v2386
  %2436 = vmatpush1.bf16.msra.mxu0 %v2385
  %2437 = vmatprep.subr.bf16.mxu0 0
  %2438 = vmatpush1.bf16.msra.mxu0 0
  %2439 = vmatprep.subr.bf16.mxu0 0
  %2440 = vmatpush1.bf16.msra.mxu0 0
  %2441 = vmatprep.subr.bf16.mxu0 0
  %2442 = vmatpush1.bf16.msra.mxu0 0
  %2443 = vmatprep.subr.bf16.mxu0 0
  %2444 = vmatpush1.bf16.msra.mxu0 0
  %2445 = vmatprep.subr.bf16.mxu0 0
  %2446 = vmatpush1.bf16.msra.mxu0 0
  %2447 = vmatprep.subr.bf16.mxu0 0
  %2448 = vmatpush1.bf16.msra.mxu0 0
  %2449 = vmatprep.subr.bf16.mxu0 0
  %2450 = vmatpush1.bf16.msra.mxu0 0
  %2451 = vmatprep.subr.bf16.mxu0 0
  %2452 = vmatpush1.bf16.msra.mxu0 0
  %2453 = vmatprep.mubr.bf16.mxu0 0
  %2454 = vmatmul.mubr.bf16.gmra.mrb[0].mxu0 %v2221
  %v2455 = vpop.f32.mrb[0].mxu0
  %v2456 = vadd.f32 %v2257, %v2455
  %v2457 = vpop.f32.mrb[0].mxu0
  %v2458 = vadd.f32 %v2258, %v2457
  %v2459 = vpop.f32.mrb[0].mxu0
  %v2460 = vpop.f32.mrb[0].mxu0
  %2461 = vdwg.mxu0
  %2462 = vmatprep.subr.bf16.mxu0 %v2360
  %2463 = vmatpush1.bf16.msra.mxu0 %v2359
  %2464 = vmatprep.subr.bf16.mxu0 %v2364
  %2465 = vmatpush1.bf16.msra.mxu0 %v2363
  %2466 = vmatprep.subr.bf16.mxu0 %v2368
  %2467 = vmatpush1.bf16.msra.mxu0 %v2367
  %2468 = vmatprep.subr.bf16.mxu0 %v2372
  %2469 = vmatpush1.bf16.msra.mxu0 %v2371
  %2470 = vmatprep.subr.bf16.mxu0 %v2376
  %2471 = vmatpush1.bf16.msra.mxu0 %v2375
  %2472 = vmatprep.subr.bf16.mxu0 %v2380
  %2473 = vmatpush1.bf16.msra.mxu0 %v2379
  %2474 = vmatprep.subr.bf16.mxu0 %v2384
  %2475 = vmatpush1.bf16.msra.mxu0 %v2383
  %2476 = vmatprep.subr.bf16.mxu0 %v2388
  %2477 = vmatpush1.bf16.msra.mxu0 %v2387
  %2478 = vmatprep.subr.bf16.mxu0 0
  %2479 = vmatpush1.bf16.msra.mxu0 0
  %2480 = vmatprep.subr.bf16.mxu0 0
  %2481 = vmatpush1.bf16.msra.mxu0 0
  %2482 = vmatprep.subr.bf16.mxu0 0
  %2483 = vmatpush1.bf16.msra.mxu0 0
  %2484 = vmatprep.subr.bf16.mxu0 0
  %2485 = vmatpush1.bf16.msra.mxu0 0
  %2486 = vmatprep.subr.bf16.mxu0 0
  %2487 = vmatpush1.bf16.msra.mxu0 0
  %2488 = vmatprep.subr.bf16.mxu0 0
  %2489 = vmatpush1.bf16.msra.mxu0 0
  %2490 = vmatprep.subr.bf16.mxu0 0
  %2491 = vmatpush1.bf16.msra.mxu0 0
  %2492 = vmatprep.subr.bf16.mxu0 0
  %2493 = vmatpush1.bf16.msra.mxu0 0
  %2494 = vmatprep.mubr.bf16.mxu0 0
  %2495 = vmatmul.mubr.bf16.gmra.mrb[0].mxu0 %v2221
  %v2496 = vpop.f32.mrb[0].mxu0
  %v2497 = vadd.f32 %v2259, %v2496
  %v2498 = vpop.f32.mrb[0].mxu0
  %v2499 = vadd.f32 %v2260, %v2498
  %v2500 = vpop.f32.mrb[0].mxu0
  %v2501 = vpop.f32.mrb[0].mxu0
  %2502 = vdwg.mxu0
  %v2503 = vxor.u32 %v2456, 2147483648
  %v2504 = vmul.f32 %v2503, 1.442695
  %v2505 = vpow.pop %v2504
  %v2506 = vadd.f32 %v2505, 1.0
  %v2507 = vrcp.pop %v2506
  %v2508 = vmul.f32 1.0, %v2507
  %v2509 = vxor.u32 %v2458, 2147483648
  %v2510 = vmul.f32 %v2509, 1.442695
  %v2511 = vpow.pop %v2510
  %v2512 = vadd.f32 %v2511, 1.0
  %v2513 = vrcp.pop %v2512
  %v2514 = vmul.f32 1.0, %v2513
  %v2515 = vtanh.pop %v2497
  %v2516 = vxor.u32 %v2499, 2147483648
  %v2517 = vmul.f32 %v2516, 1.442695
  %v2518 = vpow.pop %v2517
  %v2519 = vadd.f32 %v2518, 1.0
  %v2520 = vrcp.pop %v2519
  %v2521 = vmul.f32 1.0, %v2520
  %v2522 = vld [vmem:[#allocation3] sm:$0xff]
  %v2523 = vmul.f32 %v2514, %v2522
  %v2524 = vmul.f32 %v2508, %v2515
  %v2525 = vadd.f32 %v2523, %v2524
  %v2526 = vtanh.pop %v2525
  %v2527 = vmul.f32 %v2521, %v2526
  %2528 = vst [vmem:[#allocation3] sm:$0xff] %v2525
  %2529 = vst [vmem:[#allocation2] sm:$0xff] %v2527
  %v2530 = vpack.c.bf16 %v2527, %v2527
  %2531 = vst [vmem:[#allocation4] sm:$0xf] %v2530
  %s2532 = scalar_lea.vmem %s4, 28
  %2533 = vst [vmem:[%s2532] sm:$0xf] %v2530
  // Predicated region
  $region22: #{_lambda_.8} parent=0 // pred_check
    %p2534 = pneg %p21
  $region23: #{_lambda_.8} parent=0 // pred_check_branch
    %2536 = sbr.rel (%p2534) target = $region25
  $region24: #{_lambda_.8} parent=0 // pred_region
    %v2537 = vld [vmem:[#allocation2] sm:$0xff]
    %2538 = vst [vmem:[%s5] sm:$0xff] %v2537
    %v2539 = vld [vmem:[#allocation3] sm:$0xff]
    %2540 = vst [vmem:[%s6] sm:$0xff] %v2539
  $region25: #{_lambda_.8} parent=0 // pred_fallthru
    _
  // Predicated region
  $region26: #{_lambda_.8} parent=0 // pred_check
    _
  $region27: #{_lambda_.8} parent=0 // pred_check_branch
    %2542 = sbr.rel (0) target = $region29
  $region28: #{_lambda_.8} parent=0 // pred_region
    _
  $region29: #{_lambda_.8} parent=0 // pred_fallthru
    _
  // Predicated region
  $region30: #{_lambda_.8} parent=0 // pred_check
    _
  $region31: #{_lambda_.8} parent=0 // pred_check_branch
    %2544 = sbr.rel (0) target = $region33
  $region32: #{_lambda_.8} parent=0 // pred_region
    _
  $region33: #{_lambda_.8} parent=0 // pred_fallthru
    _
  // Predicated region
  $region34: #{_lambda_.8} parent=0 // pred_check
    _
  $region35: #{_lambda_.8} parent=0 // pred_check_branch
    %2546 = sbr.rel (0) target = $region37
  $region36: #{_lambda_.8} parent=0 // pred_region
    _
  $region37: #{_lambda_.8} parent=0 // pred_fallthru
    _
  // Predicated region
  $region38: #{_lambda_.8} parent=0 // pred_check
    _
  $region39: #{_lambda_.8} parent=0 // pred_check_branch
    %2548 = sbr.rel (0) target = $region41
  $region40: #{_lambda_.8} parent=0 // pred_region
    _
  $region41: #{_lambda_.8} parent=0 // pred_fallthru
    _
  // Predicated region
  $region42: #{_lambda_.8} parent=0 // pred_check
    _
  $region43: #{_lambda_.8} parent=0 // pred_check_branch
    %2550 = sbr.rel (0) target = $region45
  $region44: #{_lambda_.8} parent=0 // pred_region
    _
  $region45: #{_lambda_.8} parent=0 // pred_fallthru
    _
  // Predicated region
  $region46: #{_lambda_.8} parent=0 // pred_check
    _
  $region47: #{_lambda_.8} parent=0 // pred_check_branch
    %2552 = sbr.rel (0) target = $region49
  $region48: #{_lambda_.8} parent=0 // pred_region
    _
  $region49: #{_lambda_.8} parent=0 // pred_fallthru
    _

</llo_original>
